<compile_context>
chip_gen: v7x
topology: tpu7x:2x2x1
jax: 0.10.0
libtpu: 0.0.40
codegen_flags: <defaults>
</compile_context>

<pallas_src>
import jax
import jax.numpy as jnp
import numpy as np
from jax import lax
from jax.experimental import pallas as pl
from jax.experimental.pallas import tpu as pltpu

C1 = 4              # 1x1-branch output channels
C3 = 4              # 3x3-branch output channels
C_OUT = C1 + C3     # total inception output channels
NUM_CLASSES = 10
KP = 128            # classifier output padded to a full 128-lane vreg
OUT_ROWS = 8        # output block sublane padding -> aligned (8,128) stores


# --------------------------------------------------------------------------
# Fused kernel: per-batch  (1x1 conv + 3x3 conv + ReLU) -> flatten -> linear
# --------------------------------------------------------------------------
def fused_kernel(x_ref, w1_ref, b1_ref, w3_ref, b3_ref, wb_ref, bl_ref,
                 o_ref, feat_ref):
    # x_ref   : (1, 1, H, W)        VMEM  -- one batch element
    # w1_ref  : (C1,)               SMEM  -- 1x1 conv weights
    # b1_ref  : (C1,)               SMEM
    # w3_ref  : (C3*9,)             SMEM  -- 3x3 conv weights, (c, ky, kx) flat
    # b3_ref  : (C3,)               SMEM
    # wb_ref  : (H, C_OUT*W, KP)    VMEM  -- resident, pre-arranged classifier W
    # bl_ref  : (1, KP)             VMEM  -- resident, padded classifier bias
    # o_ref   : (1, OUT_ROWS, KP)   VMEM  -- padded logits tile for this batch
    # feat_ref: (H, C_OUT*W)        VMEM scratch -- lane-dense feature slab
    H = x_ref.shape[2]
    W = x_ref.shape[3]

    x2d = x_ref[0, 0]                                    # (H, W)

    hid = lax.broadcasted_iota(jnp.int32, (H, W), 0)
    wid = lax.broadcasted_iota(jnp.int32, (H, W), 1)

    def shifted(dr, dc):
        # shifted[h, w] = x[h + dr, w + dc], zero outside the image.
        if dr == 0 and dc == 0:
            return x2d
        v = x2d
        if dr != 0:
            v = pltpu.roll(v, (-dr) % H, 0)
        if dc != 0:
            v = pltpu.roll(v, (-dc) % W, 1)
        valid = ((hid + dr >= 0) & (hid + dr < H) &
                 (wid + dc >= 0) & (wid + dc < W))
        return jnp.where(valid, v, 0.0)

    # 9 zero-padded taps, built once and shared by all 3x3 output channels.
    taps = [[shifted(dy - 1, dx - 1) for dx in range(3)] for dy in range(3)]

    # 1x1 branch + ReLU -> slab columns [c*W, (c+1)*W)
    for c in range(C1):
        plane = jnp.maximum(x2d * w1_ref[c] + b1_ref[c], 0.0)       # (H, W)
        feat_ref[:, c * W:(c + 1) * W] = plane

    # 3x3 branch (padding=1) + ReLU -> slab columns [(C1+c)*W, (C1+c+1)*W)
    for c in range(C3):
        acc = None
        for dy in range(3):
            for dx in range(3):
                term = taps[dy][dx] * w3_ref[c * 9 + dy * 3 + dx]
                acc = term if acc is None else acc + term
        plane = jnp.maximum(acc + b3_ref[c], 0.0)                   # (H, W)
        feat_ref[:, (C1 + c) * W:(C1 + c + 1) * W] = plane

    # Classifier:  y[k] = bl[k] + sum_h  feat[h, :] @ wb[h, :, k]
    # (flatten order (C, H, W) is encoded in how wb was pre-arranged on host)
    gt = feat_ref[...]                                   # (H, C_OUT*W)
    y = bl_ref[...]                                      # (1, KP)
    for h in range(H):
        y = y + jnp.dot(gt[h:h + 1, :], wb_ref[h],
                        preferred_element_type=jnp.float32)
    o_ref[0] = jnp.broadcast_to(y, (OUT_ROWS, KP))


# --------------------------------------------------------------------------
# One-time parameter preprocessing (kept OUT of the per-call hot path)
# --------------------------------------------------------------------------
def prepare_params(params, H, W):
    # classifier weight (num_classes, C_OUT*H*W) -> (H, C_OUT*W, KP)
    wl = params["wl"]
    nc = wl.shape[0]
    wr = wl.reshape(nc, C_OUT, H, W)         # wr[k,c,h,w] = wl[k, c*H*W+h*W+w]
    wb = jnp.transpose(wr, (2, 1, 3, 0))     # (H, C_OUT, W, nc)
    wb = wb.reshape(H, C_OUT * W, nc)        # wb[h, c*W+w, k]
    wb = jnp.pad(wb, ((0, 0), (0, 0), (0, KP - nc)))
    bl = jnp.pad(params["bl"], (0, KP - nc)).reshape(1, KP)
    return dict(w1=params["w1"], b1=params["b1"],
                w3=params["w3"], b3=params["b3"],
                wb=wb, bl=bl)


# --------------------------------------------------------------------------
# Full model forward (single fused pallas_call)
# --------------------------------------------------------------------------
def d1d2_forward(x, kp):
    # x: (N, 1, H, W) float32
    N, _, H, W = x.shape
    CW = C_OUT * W
    raw = pl.pallas_call(
        fused_kernel,
        out_shape=jax.ShapeDtypeStruct((N, OUT_ROWS, KP), jnp.float32),
        grid=(N,),
        in_specs=[
            pl.BlockSpec((1, 1, H, W), lambda n: (n, 0, 0, 0)),
            pl.BlockSpec(memory_space=pltpu.MemorySpace.SMEM),   # w1
            pl.BlockSpec(memory_space=pltpu.MemorySpace.SMEM),   # b1
            pl.BlockSpec(memory_space=pltpu.MemorySpace.SMEM),   # w3
            pl.BlockSpec(memory_space=pltpu.MemorySpace.SMEM),   # b3
            pl.BlockSpec((H, CW, KP), lambda n: (0, 0, 0)),      # resident W
            pl.BlockSpec((1, KP), lambda n: (0, 0)),             # resident b
        ],
        out_specs=pl.BlockSpec((1, OUT_ROWS, KP), lambda n: (n, 0, 0)),
        scratch_shapes=[pltpu.VMEM((H, CW), jnp.float32)],
        compiler_params=pltpu.CompilerParams(
            dimension_semantics=("parallel",)),
    )(x, kp["w1"], kp["b1"], kp["w3"], kp["b3"], kp["wb"], kp["bl"])
    return raw[:, 0, :NUM_CLASSES]


# --------------------------------------------------------------------------
# Pure-JAX reference for the correctness check
# --------------------------------------------------------------------------
def d1d2_reference(x, params):
    N, _, H, W = x.shape
    b1x1 = (x[:, 0:1] * params["w1"].reshape(1, C1, 1, 1)
            + params["b1"].reshape(1, C1, 1, 1))
    w3 = params["w3"].reshape(C3, 1, 3, 3)
    b3x3 = lax.conv_general_dilated(
        x, w3, window_strides=(1, 1), padding="SAME",
        dimension_numbers=("NCHW", "OIHW", "NCHW"),
    ) + params["b3"].reshape(1, C3, 1, 1)
    feat = jnp.maximum(jnp.concatenate([b1x1, b3x3], axis=1), 0.0)
    x_flat = feat.reshape(N, -1)
    return x_flat @ params["wl"].T + params["bl"]


if __name__ == "__main__":
    N, H, W = 2, 16, 16
    inchannel = C_OUT * H * W

    key = jax.random.PRNGKey(0)
    k1, k2, k3, k4, k5, k6, kx = jax.random.split(key, 7)
    params = {
        "w1": 0.2 * jax.random.normal(k1, (C1,), jnp.float32),
        "b1": 0.1 * jax.random.normal(k2, (C1,), jnp.float32),
        "w3": 0.2 * jax.random.normal(k3, (C3 * 9,), jnp.float32),
        "b3": 0.1 * jax.random.normal(k4, (C3,), jnp.float32),
        "wl": 0.05 * jax.random.normal(k5, (NUM_CLASSES, inchannel), jnp.float32),
        "bl": 0.1 * jax.random.normal(k6, (NUM_CLASSES,), jnp.float32),
    }

    x = jax.random.normal(kx, (N, 1, H, W), jnp.float32)

    kp = prepare_params(params, H, W)   # one-time weight re-layout / padding

    out = jax.block_until_ready(d1d2_forward(x, kp))
    ref = jax.block_until_ready(d1d2_reference(x, params))

    assert out.shape == (N, NUM_CLASSES)
    np.testing.assert_allclose(np.asarray(out), np.asarray(ref),
                               rtol=1e-3, atol=1e-3)
    print("KERNEL_OK")
</pallas_src>

<mosaic_0001>
module attributes {stable_mosaic.version = 11 : i64} {
  func.func @fused_kernel(%arg0: i32, %arg1: memref<1x1x16x16xf32, #tpu.memory_space<vmem>>, %arg2: memref<4xf32, #tpu.memory_space<smem>>, %arg3: memref<4xf32, #tpu.memory_space<smem>>, %arg4: memref<36xf32, #tpu.memory_space<smem>>, %arg5: memref<4xf32, #tpu.memory_space<smem>>, %arg6: memref<16x128x128xf32, #tpu.memory_space<vmem>>, %arg7: memref<1x128xf32, #tpu.memory_space<vmem>>, %arg8: memref<1x8x128xf32, #tpu.memory_space<vmem>>, %arg9: memref<16x128xf32, #tpu.memory_space<vmem>>) attributes {dimension_semantics = [#tpu.dimension_semantics<parallel>], iteration_bounds = array<i64: 2>, scalar_prefetch = 0 : i64, scratch_operands = 1 : i64, tpu.core_type = #tpu.core_type<tc>, window_params = [{transform_indices = @transform_0, window_bounds = array<i64: 1, 1, 16, 16>}, {transform_indices = @transform_1, window_bounds = array<i64: 4>}, {transform_indices = @transform_2, window_bounds = array<i64: 4>}, {transform_indices = @transform_3, window_bounds = array<i64: 36>}, {transform_indices = @transform_4, window_bounds = array<i64: 4>}, {pipeline_mode = #tpu.pipeline_mode<synchronous>, transform_indices = @transform_5, window_bounds = array<i64: 16, 128, 128>}, {pipeline_mode = #tpu.pipeline_mode<synchronous>, transform_indices = @transform_6, window_bounds = array<i64: 1, 128>}, {transform_indices = @transform_7, window_bounds = array<i64: 1, 8, 128>}]} {
    %c0 = arith.constant 0 : index
    %c0_0 = arith.constant 0 : index
    %c0_1 = arith.constant 0 : index
    %c0_2 = arith.constant 0 : index
    %0 = vector.load %arg1[%c0, %c0_0, %c0_1, %c0_2] : memref<1x1x16x16xf32, #tpu.memory_space<vmem>>, vector<1x1x16x16xf32>
    %1 = vector.shape_cast %0 : vector<1x1x16x16xf32> to vector<16x16xf32>
    %2 = tpu.iota {dimensions = array<i32: 0>} : vector<16x16xi32>
    %3 = tpu.iota {dimensions = array<i32: 1>} : vector<16x16xi32>
    %c1_i32 = arith.constant 1 : i32
    %4 = tpu.dynamic_rotate %1 by %c1_i32 dim 0 : vector<16x16xf32>, i32 -> vector<16x16xf32>
    %c1_i32_3 = arith.constant 1 : i32
    %5 = tpu.dynamic_rotate %4 by %c1_i32_3 dim 1 : vector<16x16xf32>, i32 -> vector<16x16xf32>
    %c-1_i32 = arith.constant -1 : i32
    %6 = vector.broadcast %c-1_i32 : i32 to vector<16x16xi32>
    %7 = arith.addi %2, %6 : vector<16x16xi32>
    %c0_i32 = arith.constant 0 : i32
    %8 = vector.broadcast %c0_i32 : i32 to vector<16x16xi32>
    %9 = arith.cmpi sge, %7, %8 : vector<16x16xi32>
    %c-1_i32_4 = arith.constant -1 : i32
    %10 = vector.broadcast %c-1_i32_4 : i32 to vector<16x16xi32>
    %11 = arith.addi %2, %10 : vector<16x16xi32>
    %c16_i32 = arith.constant 16 : i32
    %12 = vector.broadcast %c16_i32 : i32 to vector<16x16xi32>
    %13 = arith.cmpi slt, %11, %12 : vector<16x16xi32>
    %14 = arith.andi %9, %13 : vector<16x16xi1>
    %c-1_i32_5 = arith.constant -1 : i32
    %15 = vector.broadcast %c-1_i32_5 : i32 to vector<16x16xi32>
    %16 = arith.addi %3, %15 : vector<16x16xi32>
    %c0_i32_6 = arith.constant 0 : i32
    %17 = vector.broadcast %c0_i32_6 : i32 to vector<16x16xi32>
    %18 = arith.cmpi sge, %16, %17 : vector<16x16xi32>
    %19 = arith.andi %14, %18 : vector<16x16xi1>
    %c-1_i32_7 = arith.constant -1 : i32
    %20 = vector.broadcast %c-1_i32_7 : i32 to vector<16x16xi32>
    %21 = arith.addi %3, %20 : vector<16x16xi32>
    %c16_i32_8 = arith.constant 16 : i32
    %22 = vector.broadcast %c16_i32_8 : i32 to vector<16x16xi32>
    %23 = arith.cmpi slt, %21, %22 : vector<16x16xi32>
    %24 = arith.andi %19, %23 : vector<16x16xi1>
    %cst = arith.constant 0.000000e+00 : f32
    %25 = vector.broadcast %cst : f32 to vector<16x16xf32>
    %26 = arith.select %24, %5, %25 : vector<16x16xi1>, vector<16x16xf32>
    %c1_i32_9 = arith.constant 1 : i32
    %27 = tpu.dynamic_rotate %1 by %c1_i32_9 dim 0 : vector<16x16xf32>, i32 -> vector<16x16xf32>
    %c-1_i32_10 = arith.constant -1 : i32
    %28 = vector.broadcast %c-1_i32_10 : i32 to vector<16x16xi32>
    %29 = arith.addi %2, %28 : vector<16x16xi32>
    %c0_i32_11 = arith.constant 0 : i32
    %30 = vector.broadcast %c0_i32_11 : i32 to vector<16x16xi32>
    %31 = arith.cmpi sge, %29, %30 : vector<16x16xi32>
    %c-1_i32_12 = arith.constant -1 : i32
    %32 = vector.broadcast %c-1_i32_12 : i32 to vector<16x16xi32>
    %33 = arith.addi %2, %32 : vector<16x16xi32>
    %c16_i32_13 = arith.constant 16 : i32
    %34 = vector.broadcast %c16_i32_13 : i32 to vector<16x16xi32>
    %35 = arith.cmpi slt, %33, %34 : vector<16x16xi32>
    %36 = arith.andi %31, %35 : vector<16x16xi1>
    %c0_i32_14 = arith.constant 0 : i32
    %37 = vector.broadcast %c0_i32_14 : i32 to vector<16x16xi32>
    %38 = arith.addi %3, %37 : vector<16x16xi32>
    %c0_i32_15 = arith.constant 0 : i32
    %39 = vector.broadcast %c0_i32_15 : i32 to vector<16x16xi32>
    %40 = arith.cmpi sge, %38, %39 : vector<16x16xi32>
    %41 = arith.andi %36, %40 : vector<16x16xi1>
    %c0_i32_16 = arith.constant 0 : i32
    %42 = vector.broadcast %c0_i32_16 : i32 to vector<16x16xi32>
    %43 = arith.addi %3, %42 : vector<16x16xi32>
    %c16_i32_17 = arith.constant 16 : i32
    %44 = vector.broadcast %c16_i32_17 : i32 to vector<16x16xi32>
    %45 = arith.cmpi slt, %43, %44 : vector<16x16xi32>
    %46 = arith.andi %41, %45 : vector<16x16xi1>
    %cst_18 = arith.constant 0.000000e+00 : f32
    %47 = vector.broadcast %cst_18 : f32 to vector<16x16xf32>
    %48 = arith.select %46, %27, %47 : vector<16x16xi1>, vector<16x16xf32>
    %c1_i32_19 = arith.constant 1 : i32
    %49 = tpu.dynamic_rotate %1 by %c1_i32_19 dim 0 : vector<16x16xf32>, i32 -> vector<16x16xf32>
    %c15_i32 = arith.constant 15 : i32
    %50 = tpu.dynamic_rotate %49 by %c15_i32 dim 1 : vector<16x16xf32>, i32 -> vector<16x16xf32>
    %c-1_i32_20 = arith.constant -1 : i32
    %51 = vector.broadcast %c-1_i32_20 : i32 to vector<16x16xi32>
    %52 = arith.addi %2, %51 : vector<16x16xi32>
    %c0_i32_21 = arith.constant 0 : i32
    %53 = vector.broadcast %c0_i32_21 : i32 to vector<16x16xi32>
    %54 = arith.cmpi sge, %52, %53 : vector<16x16xi32>
    %c-1_i32_22 = arith.constant -1 : i32
    %55 = vector.broadcast %c-1_i32_22 : i32 to vector<16x16xi32>
    %56 = arith.addi %2, %55 : vector<16x16xi32>
    %c16_i32_23 = arith.constant 16 : i32
    %57 = vector.broadcast %c16_i32_23 : i32 to vector<16x16xi32>
    %58 = arith.cmpi slt, %56, %57 : vector<16x16xi32>
    %59 = arith.andi %54, %58 : vector<16x16xi1>
    %c1_i32_24 = arith.constant 1 : i32
    %60 = vector.broadcast %c1_i32_24 : i32 to vector<16x16xi32>
    %61 = arith.addi %3, %60 : vector<16x16xi32>
    %c0_i32_25 = arith.constant 0 : i32
    %62 = vector.broadcast %c0_i32_25 : i32 to vector<16x16xi32>
    %63 = arith.cmpi sge, %61, %62 : vector<16x16xi32>
    %64 = arith.andi %59, %63 : vector<16x16xi1>
    %c1_i32_26 = arith.constant 1 : i32
    %65 = vector.broadcast %c1_i32_26 : i32 to vector<16x16xi32>
    %66 = arith.addi %3, %65 : vector<16x16xi32>
    %c16_i32_27 = arith.constant 16 : i32
    %67 = vector.broadcast %c16_i32_27 : i32 to vector<16x16xi32>
    %68 = arith.cmpi slt, %66, %67 : vector<16x16xi32>
    %69 = arith.andi %64, %68 : vector<16x16xi1>
    %cst_28 = arith.constant 0.000000e+00 : f32
    %70 = vector.broadcast %cst_28 : f32 to vector<16x16xf32>
    %71 = arith.select %69, %50, %70 : vector<16x16xi1>, vector<16x16xf32>
    %c1_i32_29 = arith.constant 1 : i32
    %72 = tpu.dynamic_rotate %1 by %c1_i32_29 dim 1 : vector<16x16xf32>, i32 -> vector<16x16xf32>
    %c0_i32_30 = arith.constant 0 : i32
    %73 = vector.broadcast %c0_i32_30 : i32 to vector<16x16xi32>
    %74 = arith.addi %2, %73 : vector<16x16xi32>
    %c0_i32_31 = arith.constant 0 : i32
    %75 = vector.broadcast %c0_i32_31 : i32 to vector<16x16xi32>
    %76 = arith.cmpi sge, %74, %75 : vector<16x16xi32>
    %c0_i32_32 = arith.constant 0 : i32
    %77 = vector.broadcast %c0_i32_32 : i32 to vector<16x16xi32>
    %78 = arith.addi %2, %77 : vector<16x16xi32>
    %c16_i32_33 = arith.constant 16 : i32
    %79 = vector.broadcast %c16_i32_33 : i32 to vector<16x16xi32>
    %80 = arith.cmpi slt, %78, %79 : vector<16x16xi32>
    %81 = arith.andi %76, %80 : vector<16x16xi1>
    %c-1_i32_34 = arith.constant -1 : i32
    %82 = vector.broadcast %c-1_i32_34 : i32 to vector<16x16xi32>
    %83 = arith.addi %3, %82 : vector<16x16xi32>
    %c0_i32_35 = arith.constant 0 : i32
    %84 = vector.broadcast %c0_i32_35 : i32 to vector<16x16xi32>
    %85 = arith.cmpi sge, %83, %84 : vector<16x16xi32>
    %86 = arith.andi %81, %85 : vector<16x16xi1>
    %c-1_i32_36 = arith.constant -1 : i32
    %87 = vector.broadcast %c-1_i32_36 : i32 to vector<16x16xi32>
    %88 = arith.addi %3, %87 : vector<16x16xi32>
    %c16_i32_37 = arith.constant 16 : i32
    %89 = vector.broadcast %c16_i32_37 : i32 to vector<16x16xi32>
    %90 = arith.cmpi slt, %88, %89 : vector<16x16xi32>
    %91 = arith.andi %86, %90 : vector<16x16xi1>
    %cst_38 = arith.constant 0.000000e+00 : f32
    %92 = vector.broadcast %cst_38 : f32 to vector<16x16xf32>
    %93 = arith.select %91, %72, %92 : vector<16x16xi1>, vector<16x16xf32>
    %c15_i32_39 = arith.constant 15 : i32
    %94 = tpu.dynamic_rotate %1 by %c15_i32_39 dim 1 : vector<16x16xf32>, i32 -> vector<16x16xf32>
    %c0_i32_40 = arith.constant 0 : i32
    %95 = vector.broadcast %c0_i32_40 : i32 to vector<16x16xi32>
    %96 = arith.addi %2, %95 : vector<16x16xi32>
    %c0_i32_41 = arith.constant 0 : i32
    %97 = vector.broadcast %c0_i32_41 : i32 to vector<16x16xi32>
    %98 = arith.cmpi sge, %96, %97 : vector<16x16xi32>
    %c0_i32_42 = arith.constant 0 : i32
    %99 = vector.broadcast %c0_i32_42 : i32 to vector<16x16xi32>
    %100 = arith.addi %2, %99 : vector<16x16xi32>
    %c16_i32_43 = arith.constant 16 : i32
    %101 = vector.broadcast %c16_i32_43 : i32 to vector<16x16xi32>
    %102 = arith.cmpi slt, %100, %101 : vector<16x16xi32>
    %103 = arith.andi %98, %102 : vector<16x16xi1>
    %c1_i32_44 = arith.constant 1 : i32
    %104 = vector.broadcast %c1_i32_44 : i32 to vector<16x16xi32>
    %105 = arith.addi %3, %104 : vector<16x16xi32>
    %c0_i32_45 = arith.constant 0 : i32
    %106 = vector.broadcast %c0_i32_45 : i32 to vector<16x16xi32>
    %107 = arith.cmpi sge, %105, %106 : vector<16x16xi32>
    %108 = arith.andi %103, %107 : vector<16x16xi1>
    %c1_i32_46 = arith.constant 1 : i32
    %109 = vector.broadcast %c1_i32_46 : i32 to vector<16x16xi32>
    %110 = arith.addi %3, %109 : vector<16x16xi32>
    %c16_i32_47 = arith.constant 16 : i32
    %111 = vector.broadcast %c16_i32_47 : i32 to vector<16x16xi32>
    %112 = arith.cmpi slt, %110, %111 : vector<16x16xi32>
    %113 = arith.andi %108, %112 : vector<16x16xi1>
    %cst_48 = arith.constant 0.000000e+00 : f32
    %114 = vector.broadcast %cst_48 : f32 to vector<16x16xf32>
    %115 = arith.select %113, %94, %114 : vector<16x16xi1>, vector<16x16xf32>
    %c15_i32_49 = arith.constant 15 : i32
    %116 = tpu.dynamic_rotate %1 by %c15_i32_49 dim 0 : vector<16x16xf32>, i32 -> vector<16x16xf32>
    %c1_i32_50 = arith.constant 1 : i32
    %117 = tpu.dynamic_rotate %116 by %c1_i32_50 dim 1 : vector<16x16xf32>, i32 -> vector<16x16xf32>
    %c1_i32_51 = arith.constant 1 : i32
    %118 = vector.broadcast %c1_i32_51 : i32 to vector<16x16xi32>
    %119 = arith.addi %2, %118 : vector<16x16xi32>
    %c0_i32_52 = arith.constant 0 : i32
    %120 = vector.broadcast %c0_i32_52 : i32 to vector<16x16xi32>
    %121 = arith.cmpi sge, %119, %120 : vector<16x16xi32>
    %c1_i32_53 = arith.constant 1 : i32
    %122 = vector.broadcast %c1_i32_53 : i32 to vector<16x16xi32>
    %123 = arith.addi %2, %122 : vector<16x16xi32>
    %c16_i32_54 = arith.constant 16 : i32
    %124 = vector.broadcast %c16_i32_54 : i32 to vector<16x16xi32>
    %125 = arith.cmpi slt, %123, %124 : vector<16x16xi32>
    %126 = arith.andi %121, %125 : vector<16x16xi1>
    %c-1_i32_55 = arith.constant -1 : i32
    %127 = vector.broadcast %c-1_i32_55 : i32 to vector<16x16xi32>
    %128 = arith.addi %3, %127 : vector<16x16xi32>
    %c0_i32_56 = arith.constant 0 : i32
    %129 = vector.broadcast %c0_i32_56 : i32 to vector<16x16xi32>
    %130 = arith.cmpi sge, %128, %129 : vector<16x16xi32>
    %131 = arith.andi %126, %130 : vector<16x16xi1>
    %c-1_i32_57 = arith.constant -1 : i32
    %132 = vector.broadcast %c-1_i32_57 : i32 to vector<16x16xi32>
    %133 = arith.addi %3, %132 : vector<16x16xi32>
    %c16_i32_58 = arith.constant 16 : i32
    %134 = vector.broadcast %c16_i32_58 : i32 to vector<16x16xi32>
    %135 = arith.cmpi slt, %133, %134 : vector<16x16xi32>
    %136 = arith.andi %131, %135 : vector<16x16xi1>
    %cst_59 = arith.constant 0.000000e+00 : f32
    %137 = vector.broadcast %cst_59 : f32 to vector<16x16xf32>
    %138 = arith.select %136, %117, %137 : vector<16x16xi1>, vector<16x16xf32>
    %c15_i32_60 = arith.constant 15 : i32
    %139 = tpu.dynamic_rotate %1 by %c15_i32_60 dim 0 : vector<16x16xf32>, i32 -> vector<16x16xf32>
    %c1_i32_61 = arith.constant 1 : i32
    %140 = vector.broadcast %c1_i32_61 : i32 to vector<16x16xi32>
    %141 = arith.addi %2, %140 : vector<16x16xi32>
    %c0_i32_62 = arith.constant 0 : i32
    %142 = vector.broadcast %c0_i32_62 : i32 to vector<16x16xi32>
    %143 = arith.cmpi sge, %141, %142 : vector<16x16xi32>
    %c1_i32_63 = arith.constant 1 : i32
    %144 = vector.broadcast %c1_i32_63 : i32 to vector<16x16xi32>
    %145 = arith.addi %2, %144 : vector<16x16xi32>
    %c16_i32_64 = arith.constant 16 : i32
    %146 = vector.broadcast %c16_i32_64 : i32 to vector<16x16xi32>
    %147 = arith.cmpi slt, %145, %146 : vector<16x16xi32>
    %148 = arith.andi %143, %147 : vector<16x16xi1>
    %c0_i32_65 = arith.constant 0 : i32
    %149 = vector.broadcast %c0_i32_65 : i32 to vector<16x16xi32>
    %150 = arith.addi %3, %149 : vector<16x16xi32>
    %c0_i32_66 = arith.constant 0 : i32
    %151 = vector.broadcast %c0_i32_66 : i32 to vector<16x16xi32>
    %152 = arith.cmpi sge, %150, %151 : vector<16x16xi32>
    %153 = arith.andi %148, %152 : vector<16x16xi1>
    %c0_i32_67 = arith.constant 0 : i32
    %154 = vector.broadcast %c0_i32_67 : i32 to vector<16x16xi32>
    %155 = arith.addi %3, %154 : vector<16x16xi32>
    %c16_i32_68 = arith.constant 16 : i32
    %156 = vector.broadcast %c16_i32_68 : i32 to vector<16x16xi32>
    %157 = arith.cmpi slt, %155, %156 : vector<16x16xi32>
    %158 = arith.andi %153, %157 : vector<16x16xi1>
    %cst_69 = arith.constant 0.000000e+00 : f32
    %159 = vector.broadcast %cst_69 : f32 to vector<16x16xf32>
    %160 = arith.select %158, %139, %159 : vector<16x16xi1>, vector<16x16xf32>
    %c15_i32_70 = arith.constant 15 : i32
    %161 = tpu.dynamic_rotate %1 by %c15_i32_70 dim 0 : vector<16x16xf32>, i32 -> vector<16x16xf32>
    %c15_i32_71 = arith.constant 15 : i32
    %162 = tpu.dynamic_rotate %161 by %c15_i32_71 dim 1 : vector<16x16xf32>, i32 -> vector<16x16xf32>
    %c1_i32_72 = arith.constant 1 : i32
    %163 = vector.broadcast %c1_i32_72 : i32 to vector<16x16xi32>
    %164 = arith.addi %2, %163 : vector<16x16xi32>
    %c0_i32_73 = arith.constant 0 : i32
    %165 = vector.broadcast %c0_i32_73 : i32 to vector<16x16xi32>
    %166 = arith.cmpi sge, %164, %165 : vector<16x16xi32>
    %c1_i32_74 = arith.constant 1 : i32
    %167 = vector.broadcast %c1_i32_74 : i32 to vector<16x16xi32>
    %168 = arith.addi %2, %167 : vector<16x16xi32>
    %c16_i32_75 = arith.constant 16 : i32
    %169 = vector.broadcast %c16_i32_75 : i32 to vector<16x16xi32>
    %170 = arith.cmpi slt, %168, %169 : vector<16x16xi32>
    %171 = arith.andi %166, %170 : vector<16x16xi1>
    %c1_i32_76 = arith.constant 1 : i32
    %172 = vector.broadcast %c1_i32_76 : i32 to vector<16x16xi32>
    %173 = arith.addi %3, %172 : vector<16x16xi32>
    %c0_i32_77 = arith.constant 0 : i32
    %174 = vector.broadcast %c0_i32_77 : i32 to vector<16x16xi32>
    %175 = arith.cmpi sge, %173, %174 : vector<16x16xi32>
    %176 = arith.andi %171, %175 : vector<16x16xi1>
    %c1_i32_78 = arith.constant 1 : i32
    %177 = vector.broadcast %c1_i32_78 : i32 to vector<16x16xi32>
    %178 = arith.addi %3, %177 : vector<16x16xi32>
    %c16_i32_79 = arith.constant 16 : i32
    %179 = vector.broadcast %c16_i32_79 : i32 to vector<16x16xi32>
    %180 = arith.cmpi slt, %178, %179 : vector<16x16xi32>
    %181 = arith.andi %176, %180 : vector<16x16xi1>
    %cst_80 = arith.constant 0.000000e+00 : f32
    %182 = vector.broadcast %cst_80 : f32 to vector<16x16xf32>
    %183 = arith.select %181, %162, %182 : vector<16x16xi1>, vector<16x16xf32>
    %c0_81 = arith.constant 0 : index
    %184 = memref.load %arg2[%c0_81] : memref<4xf32, #tpu.memory_space<smem>>
    %185 = vector.broadcast %184 : f32 to vector<16x16xf32>
    %186 = arith.mulf %1, %185 : vector<16x16xf32>
    %c0_82 = arith.constant 0 : index
    %187 = memref.load %arg3[%c0_82] : memref<4xf32, #tpu.memory_space<smem>>
    %188 = vector.broadcast %187 : f32 to vector<16x16xf32>
    %189 = arith.addf %186, %188 : vector<16x16xf32>
    %cst_83 = arith.constant 0.000000e+00 : f32
    %190 = vector.broadcast %cst_83 : f32 to vector<16x16xf32>
    %191 = arith.maximumf %189, %190 : vector<16x16xf32>
    %c0_84 = arith.constant 0 : index
    %c0_85 = arith.constant 0 : index
    %192 = vector.load %arg9[%c0_84, %c0_85] : memref<16x128xf32, #tpu.memory_space<vmem>>, vector<16x16xf32>
    tpu.vector_store %arg9[%c0_84, %c0_85], %191 {strides = array<i32>} : memref<16x128xf32, #tpu.memory_space<vmem>>, vector<16x16xf32>,
    %c1 = arith.constant 1 : index
    %193 = memref.load %arg2[%c1] : memref<4xf32, #tpu.memory_space<smem>>
    %194 = vector.broadcast %193 : f32 to vector<16x16xf32>
    %195 = arith.mulf %1, %194 : vector<16x16xf32>
    %c1_86 = arith.constant 1 : index
    %196 = memref.load %arg3[%c1_86] : memref<4xf32, #tpu.memory_space<smem>>
    %197 = vector.broadcast %196 : f32 to vector<16x16xf32>
    %198 = arith.addf %195, %197 : vector<16x16xf32>
    %cst_87 = arith.constant 0.000000e+00 : f32
    %199 = vector.broadcast %cst_87 : f32 to vector<16x16xf32>
    %200 = arith.maximumf %198, %199 : vector<16x16xf32>
    %c0_88 = arith.constant 0 : index
    %c16 = arith.constant 16 : index
    %201 = vector.load %arg9[%c0_88, %c16] : memref<16x128xf32, #tpu.memory_space<vmem>>, vector<16x16xf32>
    tpu.vector_store %arg9[%c0_88, %c16], %200 {strides = array<i32>} : memref<16x128xf32, #tpu.memory_space<vmem>>, vector<16x16xf32>,
    %c2 = arith.constant 2 : index
    %202 = memref.load %arg2[%c2] : memref<4xf32, #tpu.memory_space<smem>>
    %203 = vector.broadcast %202 : f32 to vector<16x16xf32>
    %204 = arith.mulf %1, %203 : vector<16x16xf32>
    %c2_89 = arith.constant 2 : index
    %205 = memref.load %arg3[%c2_89] : memref<4xf32, #tpu.memory_space<smem>>
    %206 = vector.broadcast %205 : f32 to vector<16x16xf32>
    %207 = arith.addf %204, %206 : vector<16x16xf32>
    %cst_90 = arith.constant 0.000000e+00 : f32
    %208 = vector.broadcast %cst_90 : f32 to vector<16x16xf32>
    %209 = arith.maximumf %207, %208 : vector<16x16xf32>
    %c0_91 = arith.constant 0 : index
    %c32 = arith.constant 32 : index
    %210 = vector.load %arg9[%c0_91, %c32] : memref<16x128xf32, #tpu.memory_space<vmem>>, vector<16x16xf32>
    tpu.vector_store %arg9[%c0_91, %c32], %209 {strides = array<i32>} : memref<16x128xf32, #tpu.memory_space<vmem>>, vector<16x16xf32>,
    %c3 = arith.constant 3 : index
    %211 = memref.load %arg2[%c3] : memref<4xf32, #tpu.memory_space<smem>>
    %212 = vector.broadcast %211 : f32 to vector<16x16xf32>
    %213 = arith.mulf %1, %212 : vector<16x16xf32>
    %c3_92 = arith.constant 3 : index
    %214 = memref.load %arg3[%c3_92] : memref<4xf32, #tpu.memory_space<smem>>
    %215 = vector.broadcast %214 : f32 to vector<16x16xf32>
    %216 = arith.addf %213, %215 : vector<16x16xf32>
    %cst_93 = arith.constant 0.000000e+00 : f32
    %217 = vector.broadcast %cst_93 : f32 to vector<16x16xf32>
    %218 = arith.maximumf %216, %217 : vector<16x16xf32>
    %c0_94 = arith.constant 0 : index
    %c48 = arith.constant 48 : index
    %219 = vector.load %arg9[%c0_94, %c48] : memref<16x128xf32, #tpu.memory_space<vmem>>, vector<16x16xf32>
    tpu.vector_store %arg9[%c0_94, %c48], %218 {strides = array<i32>} : memref<16x128xf32, #tpu.memory_space<vmem>>, vector<16x16xf32>,
    %c0_95 = arith.constant 0 : index
    %220 = memref.load %arg4[%c0_95] : memref<36xf32, #tpu.memory_space<smem>>
    %221 = vector.broadcast %220 : f32 to vector<16x16xf32>
    %222 = arith.mulf %26, %221 : vector<16x16xf32>
    %c1_96 = arith.constant 1 : index
    %223 = memref.load %arg4[%c1_96] : memref<36xf32, #tpu.memory_space<smem>>
    %224 = vector.broadcast %223 : f32 to vector<16x16xf32>
    %225 = arith.mulf %48, %224 : vector<16x16xf32>
    %226 = arith.addf %222, %225 : vector<16x16xf32>
    %c2_97 = arith.constant 2 : index
    %227 = memref.load %arg4[%c2_97] : memref<36xf32, #tpu.memory_space<smem>>
    %228 = vector.broadcast %227 : f32 to vector<16x16xf32>
    %229 = arith.mulf %71, %228 : vector<16x16xf32>
    %230 = arith.addf %226, %229 : vector<16x16xf32>
    %c3_98 = arith.constant 3 : index
    %231 = memref.load %arg4[%c3_98] : memref<36xf32, #tpu.memory_space<smem>>
    %232 = vector.broadcast %231 : f32 to vector<16x16xf32>
    %233 = arith.mulf %93, %232 : vector<16x16xf32>
    %234 = arith.addf %230, %233 : vector<16x16xf32>
    %c4 = arith.constant 4 : index
    %235 = memref.load %arg4[%c4] : memref<36xf32, #tpu.memory_space<smem>>
    %236 = vector.broadcast %235 : f32 to vector<16x16xf32>
    %237 = arith.mulf %1, %236 : vector<16x16xf32>
    %238 = arith.addf %234, %237 : vector<16x16xf32>
    %c5 = arith.constant 5 : index
    %239 = memref.load %arg4[%c5] : memref<36xf32, #tpu.memory_space<smem>>
    %240 = vector.broadcast %239 : f32 to vector<16x16xf32>
    %241 = arith.mulf %115, %240 : vector<16x16xf32>
    %242 = arith.addf %238, %241 : vector<16x16xf32>
    %c6 = arith.constant 6 : index
    %243 = memref.load %arg4[%c6] : memref<36xf32, #tpu.memory_space<smem>>
    %244 = vector.broadcast %243 : f32 to vector<16x16xf32>
    %245 = arith.mulf %138, %244 : vector<16x16xf32>
    %246 = arith.addf %242, %245 : vector<16x16xf32>
    %c7 = arith.constant 7 : index
    %247 = memref.load %arg4[%c7] : memref<36xf32, #tpu.memory_space<smem>>
    %248 = vector.broadcast %247 : f32 to vector<16x16xf32>
    %249 = arith.mulf %160, %248 : vector<16x16xf32>
    %250 = arith.addf %246, %249 : vector<16x16xf32>
    %c8 = arith.constant 8 : index
    %251 = memref.load %arg4[%c8] : memref<36xf32, #tpu.memory_space<smem>>
    %252 = vector.broadcast %251 : f32 to vector<16x16xf32>
    %253 = arith.mulf %183, %252 : vector<16x16xf32>
    %254 = arith.addf %250, %253 : vector<16x16xf32>
    %c0_99 = arith.constant 0 : index
    %255 = memref.load %arg5[%c0_99] : memref<4xf32, #tpu.memory_space<smem>>
    %256 = vector.broadcast %255 : f32 to vector<16x16xf32>
    %257 = arith.addf %254, %256 : vector<16x16xf32>
    %cst_100 = arith.constant 0.000000e+00 : f32
    %258 = vector.broadcast %cst_100 : f32 to vector<16x16xf32>
    %259 = arith.maximumf %257, %258 : vector<16x16xf32>
    %c0_101 = arith.constant 0 : index
    %c64 = arith.constant 64 : index
    %260 = vector.load %arg9[%c0_101, %c64] : memref<16x128xf32, #tpu.memory_space<vmem>>, vector<16x16xf32>
    tpu.vector_store %arg9[%c0_101, %c64], %259 {strides = array<i32>} : memref<16x128xf32, #tpu.memory_space<vmem>>, vector<16x16xf32>,
    %c9 = arith.constant 9 : index
    %261 = memref.load %arg4[%c9] : memref<36xf32, #tpu.memory_space<smem>>
    %262 = vector.broadcast %261 : f32 to vector<16x16xf32>
    %263 = arith.mulf %26, %262 : vector<16x16xf32>
    %c10 = arith.constant 10 : index
    %264 = memref.load %arg4[%c10] : memref<36xf32, #tpu.memory_space<smem>>
    %265 = vector.broadcast %264 : f32 to vector<16x16xf32>
    %266 = arith.mulf %48, %265 : vector<16x16xf32>
    %267 = arith.addf %263, %266 : vector<16x16xf32>
    %c11 = arith.constant 11 : index
    %268 = memref.load %arg4[%c11] : memref<36xf32, #tpu.memory_space<smem>>
    %269 = vector.broadcast %268 : f32 to vector<16x16xf32>
    %270 = arith.mulf %71, %269 : vector<16x16xf32>
    %271 = arith.addf %267, %270 : vector<16x16xf32>
    %c12 = arith.constant 12 : index
    %272 = memref.load %arg4[%c12] : memref<36xf32, #tpu.memory_space<smem>>
    %273 = vector.broadcast %272 : f32 to vector<16x16xf32>
    %274 = arith.mulf %93, %273 : vector<16x16xf32>
    %275 = arith.addf %271, %274 : vector<16x16xf32>
    %c13 = arith.constant 13 : index
    %276 = memref.load %arg4[%c13] : memref<36xf32, #tpu.memory_space<smem>>
    %277 = vector.broadcast %276 : f32 to vector<16x16xf32>
    %278 = arith.mulf %1, %277 : vector<16x16xf32>
    %279 = arith.addf %275, %278 : vector<16x16xf32>
    %c14 = arith.constant 14 : index
    %280 = memref.load %arg4[%c14] : memref<36xf32, #tpu.memory_space<smem>>
    %281 = vector.broadcast %280 : f32 to vector<16x16xf32>
    %282 = arith.mulf %115, %281 : vector<16x16xf32>
    %283 = arith.addf %279, %282 : vector<16x16xf32>
    %c15 = arith.constant 15 : index
    %284 = memref.load %arg4[%c15] : memref<36xf32, #tpu.memory_space<smem>>
    %285 = vector.broadcast %284 : f32 to vector<16x16xf32>
    %286 = arith.mulf %138, %285 : vector<16x16xf32>
    %287 = arith.addf %283, %286 : vector<16x16xf32>
    %c16_102 = arith.constant 16 : index
    %288 = memref.load %arg4[%c16_102] : memref<36xf32, #tpu.memory_space<smem>>
    %289 = vector.broadcast %288 : f32 to vector<16x16xf32>
    %290 = arith.mulf %160, %289 : vector<16x16xf32>
    %291 = arith.addf %287, %290 : vector<16x16xf32>
    %c17 = arith.constant 17 : index
    %292 = memref.load %arg4[%c17] : memref<36xf32, #tpu.memory_space<smem>>
    %293 = vector.broadcast %292 : f32 to vector<16x16xf32>
    %294 = arith.mulf %183, %293 : vector<16x16xf32>
    %295 = arith.addf %291, %294 : vector<16x16xf32>
    %c1_103 = arith.constant 1 : index
    %296 = memref.load %arg5[%c1_103] : memref<4xf32, #tpu.memory_space<smem>>
    %297 = vector.broadcast %296 : f32 to vector<16x16xf32>
    %298 = arith.addf %295, %297 : vector<16x16xf32>
    %cst_104 = arith.constant 0.000000e+00 : f32
    %299 = vector.broadcast %cst_104 : f32 to vector<16x16xf32>
    %300 = arith.maximumf %298, %299 : vector<16x16xf32>
    %c0_105 = arith.constant 0 : index
    %c80 = arith.constant 80 : index
    %301 = vector.load %arg9[%c0_105, %c80] : memref<16x128xf32, #tpu.memory_space<vmem>>, vector<16x16xf32>
    tpu.vector_store %arg9[%c0_105, %c80], %300 {strides = array<i32>} : memref<16x128xf32, #tpu.memory_space<vmem>>, vector<16x16xf32>,
    %c18 = arith.constant 18 : index
    %302 = memref.load %arg4[%c18] : memref<36xf32, #tpu.memory_space<smem>>
    %303 = vector.broadcast %302 : f32 to vector<16x16xf32>
    %304 = arith.mulf %26, %303 : vector<16x16xf32>
    %c19 = arith.constant 19 : index
    %305 = memref.load %arg4[%c19] : memref<36xf32, #tpu.memory_space<smem>>
    %306 = vector.broadcast %305 : f32 to vector<16x16xf32>
    %307 = arith.mulf %48, %306 : vector<16x16xf32>
    %308 = arith.addf %304, %307 : vector<16x16xf32>
    %c20 = arith.constant 20 : index
    %309 = memref.load %arg4[%c20] : memref<36xf32, #tpu.memory_space<smem>>
    %310 = vector.broadcast %309 : f32 to vector<16x16xf32>
    %311 = arith.mulf %71, %310 : vector<16x16xf32>
    %312 = arith.addf %308, %311 : vector<16x16xf32>
    %c21 = arith.constant 21 : index
    %313 = memref.load %arg4[%c21] : memref<36xf32, #tpu.memory_space<smem>>
    %314 = vector.broadcast %313 : f32 to vector<16x16xf32>
    %315 = arith.mulf %93, %314 : vector<16x16xf32>
    %316 = arith.addf %312, %315 : vector<16x16xf32>
    %c22 = arith.constant 22 : index
    %317 = memref.load %arg4[%c22] : memref<36xf32, #tpu.memory_space<smem>>
    %318 = vector.broadcast %317 : f32 to vector<16x16xf32>
    %319 = arith.mulf %1, %318 : vector<16x16xf32>
    %320 = arith.addf %316, %319 : vector<16x16xf32>
    %c23 = arith.constant 23 : index
    %321 = memref.load %arg4[%c23] : memref<36xf32, #tpu.memory_space<smem>>
    %322 = vector.broadcast %321 : f32 to vector<16x16xf32>
    %323 = arith.mulf %115, %322 : vector<16x16xf32>
    %324 = arith.addf %320, %323 : vector<16x16xf32>
    %c24 = arith.constant 24 : index
    %325 = memref.load %arg4[%c24] : memref<36xf32, #tpu.memory_space<smem>>
    %326 = vector.broadcast %325 : f32 to vector<16x16xf32>
    %327 = arith.mulf %138, %326 : vector<16x16xf32>
    %328 = arith.addf %324, %327 : vector<16x16xf32>
    %c25 = arith.constant 25 : index
    %329 = memref.load %arg4[%c25] : memref<36xf32, #tpu.memory_space<smem>>
    %330 = vector.broadcast %329 : f32 to vector<16x16xf32>
    %331 = arith.mulf %160, %330 : vector<16x16xf32>
    %332 = arith.addf %328, %331 : vector<16x16xf32>
    %c26 = arith.constant 26 : index
    %333 = memref.load %arg4[%c26] : memref<36xf32, #tpu.memory_space<smem>>
    %334 = vector.broadcast %333 : f32 to vector<16x16xf32>
    %335 = arith.mulf %183, %334 : vector<16x16xf32>
    %336 = arith.addf %332, %335 : vector<16x16xf32>
    %c2_106 = arith.constant 2 : index
    %337 = memref.load %arg5[%c2_106] : memref<4xf32, #tpu.memory_space<smem>>
    %338 = vector.broadcast %337 : f32 to vector<16x16xf32>
    %339 = arith.addf %336, %338 : vector<16x16xf32>
    %cst_107 = arith.constant 0.000000e+00 : f32
    %340 = vector.broadcast %cst_107 : f32 to vector<16x16xf32>
    %341 = arith.maximumf %339, %340 : vector<16x16xf32>
    %c0_108 = arith.constant 0 : index
    %c96 = arith.constant 96 : index
    %342 = vector.load %arg9[%c0_108, %c96] : memref<16x128xf32, #tpu.memory_space<vmem>>, vector<16x16xf32>
    tpu.vector_store %arg9[%c0_108, %c96], %341 {strides = array<i32>} : memref<16x128xf32, #tpu.memory_space<vmem>>, vector<16x16xf32>,
    %c27 = arith.constant 27 : index
    %343 = memref.load %arg4[%c27] : memref<36xf32, #tpu.memory_space<smem>>
    %344 = vector.broadcast %343 : f32 to vector<16x16xf32>
    %345 = arith.mulf %26, %344 : vector<16x16xf32>
    %c28 = arith.constant 28 : index
    %346 = memref.load %arg4[%c28] : memref<36xf32, #tpu.memory_space<smem>>
    %347 = vector.broadcast %346 : f32 to vector<16x16xf32>
    %348 = arith.mulf %48, %347 : vector<16x16xf32>
    %349 = arith.addf %345, %348 : vector<16x16xf32>
    %c29 = arith.constant 29 : index
    %350 = memref.load %arg4[%c29] : memref<36xf32, #tpu.memory_space<smem>>
    %351 = vector.broadcast %350 : f32 to vector<16x16xf32>
    %352 = arith.mulf %71, %351 : vector<16x16xf32>
    %353 = arith.addf %349, %352 : vector<16x16xf32>
    %c30 = arith.constant 30 : index
    %354 = memref.load %arg4[%c30] : memref<36xf32, #tpu.memory_space<smem>>
    %355 = vector.broadcast %354 : f32 to vector<16x16xf32>
    %356 = arith.mulf %93, %355 : vector<16x16xf32>
    %357 = arith.addf %353, %356 : vector<16x16xf32>
    %c31 = arith.constant 31 : index
    %358 = memref.load %arg4[%c31] : memref<36xf32, #tpu.memory_space<smem>>
    %359 = vector.broadcast %358 : f32 to vector<16x16xf32>
    %360 = arith.mulf %1, %359 : vector<16x16xf32>
    %361 = arith.addf %357, %360 : vector<16x16xf32>
    %c32_109 = arith.constant 32 : index
    %362 = memref.load %arg4[%c32_109] : memref<36xf32, #tpu.memory_space<smem>>
    %363 = vector.broadcast %362 : f32 to vector<16x16xf32>
    %364 = arith.mulf %115, %363 : vector<16x16xf32>
    %365 = arith.addf %361, %364 : vector<16x16xf32>
    %c33 = arith.constant 33 : index
    %366 = memref.load %arg4[%c33] : memref<36xf32, #tpu.memory_space<smem>>
    %367 = vector.broadcast %366 : f32 to vector<16x16xf32>
    %368 = arith.mulf %138, %367 : vector<16x16xf32>
    %369 = arith.addf %365, %368 : vector<16x16xf32>
    %c34 = arith.constant 34 : index
    %370 = memref.load %arg4[%c34] : memref<36xf32, #tpu.memory_space<smem>>
    %371 = vector.broadcast %370 : f32 to vector<16x16xf32>
    %372 = arith.mulf %160, %371 : vector<16x16xf32>
    %373 = arith.addf %369, %372 : vector<16x16xf32>
    %c35 = arith.constant 35 : index
    %374 = memref.load %arg4[%c35] : memref<36xf32, #tpu.memory_space<smem>>
    %375 = vector.broadcast %374 : f32 to vector<16x16xf32>
    %376 = arith.mulf %183, %375 : vector<16x16xf32>
    %377 = arith.addf %373, %376 : vector<16x16xf32>
    %c3_110 = arith.constant 3 : index
    %378 = memref.load %arg5[%c3_110] : memref<4xf32, #tpu.memory_space<smem>>
    %379 = vector.broadcast %378 : f32 to vector<16x16xf32>
    %380 = arith.addf %377, %379 : vector<16x16xf32>
    %cst_111 = arith.constant 0.000000e+00 : f32
    %381 = vector.broadcast %cst_111 : f32 to vector<16x16xf32>
    %382 = arith.maximumf %380, %381 : vector<16x16xf32>
    %c0_112 = arith.constant 0 : index
    %c112 = arith.constant 112 : index
    %383 = vector.load %arg9[%c0_112, %c112] : memref<16x128xf32, #tpu.memory_space<vmem>>, vector<16x16xf32>
    tpu.vector_store %arg9[%c0_112, %c112], %382 {strides = array<i32>} : memref<16x128xf32, #tpu.memory_space<vmem>>, vector<16x16xf32>,
    %c0_113 = arith.constant 0 : index
    %c0_114 = arith.constant 0 : index
    %384 = vector.load %arg9[%c0_113, %c0_114] : memref<16x128xf32, #tpu.memory_space<vmem>>, vector<16x128xf32>
    %c0_115 = arith.constant 0 : index
    %c0_116 = arith.constant 0 : index
    %385 = vector.load %arg7[%c0_115, %c0_116] : memref<1x128xf32, #tpu.memory_space<vmem>>, vector<1x128xf32>
    %386 = vector.extract_strided_slice %384 {offsets = [0, 0], sizes = [1, 128], strides = [1, 1]} : vector<16x128xf32> to vector<1x128xf32>
    %c0_117 = arith.constant 0 : index
    %c0_118 = arith.constant 0 : index
    %c0_119 = arith.constant 0 : index
    %387 = vector.load %arg6[%c0_117, %c0_118, %c0_119] : memref<16x128x128xf32, #tpu.memory_space<vmem>>, vector<1x128x128xf32>
    %388 = vector.shape_cast %387 : vector<1x128x128xf32> to vector<128x128xf32>
    %cst_120 = arith.constant dense<0.000000e+00> : vector<1x128xf32>
    %389 = tpu.matmul %386, %388, %cst_120 {dimension_numbers = #tpu.dot_dimension_numbers<[1], [0], [0], [1], [0, 0, 1, 1], [], []>} : vector<1x128xf32>, vector<128x128xf32>, vector<1x128xf32> -> vector<1x128xf32>
    %390 = arith.addf %385, %389 : vector<1x128xf32>
    %391 = vector.extract_strided_slice %384 {offsets = [1, 0], sizes = [1, 128], strides = [1, 1]} : vector<16x128xf32> to vector<1x128xf32>
    %c1_121 = arith.constant 1 : index
    %c0_122 = arith.constant 0 : index
    %c0_123 = arith.constant 0 : index
    %392 = vector.load %arg6[%c1_121, %c0_122, %c0_123] : memref<16x128x128xf32, #tpu.memory_space<vmem>>, vector<1x128x128xf32>
    %393 = vector.shape_cast %392 : vector<1x128x128xf32> to vector<128x128xf32>
    %cst_124 = arith.constant dense<0.000000e+00> : vector<1x128xf32>
    %394 = tpu.matmul %391, %393, %cst_124 {dimension_numbers = #tpu.dot_dimension_numbers<[1], [0], [0], [1], [0, 0, 1, 1], [], []>} : vector<1x128xf32>, vector<128x128xf32>, vector<1x128xf32> -> vector<1x128xf32>
    %395 = arith.addf %390, %394 : vector<1x128xf32>
    %396 = vector.extract_strided_slice %384 {offsets = [2, 0], sizes = [1, 128], strides = [1, 1]} : vector<16x128xf32> to vector<1x128xf32>
    %c2_125 = arith.constant 2 : index
    %c0_126 = arith.constant 0 : index
    %c0_127 = arith.constant 0 : index
    %397 = vector.load %arg6[%c2_125, %c0_126, %c0_127] : memref<16x128x128xf32, #tpu.memory_space<vmem>>, vector<1x128x128xf32>
    %398 = vector.shape_cast %397 : vector<1x128x128xf32> to vector<128x128xf32>
    %cst_128 = arith.constant dense<0.000000e+00> : vector<1x128xf32>
    %399 = tpu.matmul %396, %398, %cst_128 {dimension_numbers = #tpu.dot_dimension_numbers<[1], [0], [0], [1], [0, 0, 1, 1], [], []>} : vector<1x128xf32>, vector<128x128xf32>, vector<1x128xf32> -> vector<1x128xf32>
    %400 = arith.addf %395, %399 : vector<1x128xf32>
    %401 = vector.extract_strided_slice %384 {offsets = [3, 0], sizes = [1, 128], strides = [1, 1]} : vector<16x128xf32> to vector<1x128xf32>
    %c3_129 = arith.constant 3 : index
    %c0_130 = arith.constant 0 : index
    %c0_131 = arith.constant 0 : index
    %402 = vector.load %arg6[%c3_129, %c0_130, %c0_131] : memref<16x128x128xf32, #tpu.memory_space<vmem>>, vector<1x128x128xf32>
    %403 = vector.shape_cast %402 : vector<1x128x128xf32> to vector<128x128xf32>
    %cst_132 = arith.constant dense<0.000000e+00> : vector<1x128xf32>
    %404 = tpu.matmul %401, %403, %cst_132 {dimension_numbers = #tpu.dot_dimension_numbers<[1], [0], [0], [1], [0, 0, 1, 1], [], []>} : vector<1x128xf32>, vector<128x128xf32>, vector<1x128xf32> -> vector<1x128xf32>
    %405 = arith.addf %400, %404 : vector<1x128xf32>
    %406 = vector.extract_strided_slice %384 {offsets = [4, 0], sizes = [1, 128], strides = [1, 1]} : vector<16x128xf32> to vector<1x128xf32>
    %c4_133 = arith.constant 4 : index
    %c0_134 = arith.constant 0 : index
    %c0_135 = arith.constant 0 : index
    %407 = vector.load %arg6[%c4_133, %c0_134, %c0_135] : memref<16x128x128xf32, #tpu.memory_space<vmem>>, vector<1x128x128xf32>
    %408 = vector.shape_cast %407 : vector<1x128x128xf32> to vector<128x128xf32>
    %cst_136 = arith.constant dense<0.000000e+00> : vector<1x128xf32>
    %409 = tpu.matmul %406, %408, %cst_136 {dimension_numbers = #tpu.dot_dimension_numbers<[1], [0], [0], [1], [0, 0, 1, 1], [], []>} : vector<1x128xf32>, vector<128x128xf32>, vector<1x128xf32> -> vector<1x128xf32>
    %410 = arith.addf %405, %409 : vector<1x128xf32>
    %411 = vector.extract_strided_slice %384 {offsets = [5, 0], sizes = [1, 128], strides = [1, 1]} : vector<16x128xf32> to vector<1x128xf32>
    %c5_137 = arith.constant 5 : index
    %c0_138 = arith.constant 0 : index
    %c0_139 = arith.constant 0 : index
    %412 = vector.load %arg6[%c5_137, %c0_138, %c0_139] : memref<16x128x128xf32, #tpu.memory_space<vmem>>, vector<1x128x128xf32>
    %413 = vector.shape_cast %412 : vector<1x128x128xf32> to vector<128x128xf32>
    %cst_140 = arith.constant dense<0.000000e+00> : vector<1x128xf32>
    %414 = tpu.matmul %411, %413, %cst_140 {dimension_numbers = #tpu.dot_dimension_numbers<[1], [0], [0], [1], [0, 0, 1, 1], [], []>} : vector<1x128xf32>, vector<128x128xf32>, vector<1x128xf32> -> vector<1x128xf32>
    %415 = arith.addf %410, %414 : vector<1x128xf32>
    %416 = vector.extract_strided_slice %384 {offsets = [6, 0], sizes = [1, 128], strides = [1, 1]} : vector<16x128xf32> to vector<1x128xf32>
    %c6_141 = arith.constant 6 : index
    %c0_142 = arith.constant 0 : index
    %c0_143 = arith.constant 0 : index
    %417 = vector.load %arg6[%c6_141, %c0_142, %c0_143] : memref<16x128x128xf32, #tpu.memory_space<vmem>>, vector<1x128x128xf32>
    %418 = vector.shape_cast %417 : vector<1x128x128xf32> to vector<128x128xf32>
    %cst_144 = arith.constant dense<0.000000e+00> : vector<1x128xf32>
    %419 = tpu.matmul %416, %418, %cst_144 {dimension_numbers = #tpu.dot_dimension_numbers<[1], [0], [0], [1], [0, 0, 1, 1], [], []>} : vector<1x128xf32>, vector<128x128xf32>, vector<1x128xf32> -> vector<1x128xf32>
    %420 = arith.addf %415, %419 : vector<1x128xf32>
    %421 = vector.extract_strided_slice %384 {offsets = [7, 0], sizes = [1, 128], strides = [1, 1]} : vector<16x128xf32> to vector<1x128xf32>
    %c7_145 = arith.constant 7 : index
    %c0_146 = arith.constant 0 : index
    %c0_147 = arith.constant 0 : index
    %422 = vector.load %arg6[%c7_145, %c0_146, %c0_147] : memref<16x128x128xf32, #tpu.memory_space<vmem>>, vector<1x128x128xf32>
    %423 = vector.shape_cast %422 : vector<1x128x128xf32> to vector<128x128xf32>
    %cst_148 = arith.constant dense<0.000000e+00> : vector<1x128xf32>
    %424 = tpu.matmul %421, %423, %cst_148 {dimension_numbers = #tpu.dot_dimension_numbers<[1], [0], [0], [1], [0, 0, 1, 1], [], []>} : vector<1x128xf32>, vector<128x128xf32>, vector<1x128xf32> -> vector<1x128xf32>
    %425 = arith.addf %420, %424 : vector<1x128xf32>
    %426 = vector.extract_strided_slice %384 {offsets = [8, 0], sizes = [1, 128], strides = [1, 1]} : vector<16x128xf32> to vector<1x128xf32>
    %c8_149 = arith.constant 8 : index
    %c0_150 = arith.constant 0 : index
    %c0_151 = arith.constant 0 : index
    %427 = vector.load %arg6[%c8_149, %c0_150, %c0_151] : memref<16x128x128xf32, #tpu.memory_space<vmem>>, vector<1x128x128xf32>
    %428 = vector.shape_cast %427 : vector<1x128x128xf32> to vector<128x128xf32>
    %cst_152 = arith.constant dense<0.000000e+00> : vector<1x128xf32>
    %429 = tpu.matmul %426, %428, %cst_152 {dimension_numbers = #tpu.dot_dimension_numbers<[1], [0], [0], [1], [0, 0, 1, 1], [], []>} : vector<1x128xf32>, vector<128x128xf32>, vector<1x128xf32> -> vector<1x128xf32>
    %430 = arith.addf %425, %429 : vector<1x128xf32>
    %431 = vector.extract_strided_slice %384 {offsets = [9, 0], sizes = [1, 128], strides = [1, 1]} : vector<16x128xf32> to vector<1x128xf32>
    %c9_153 = arith.constant 9 : index
    %c0_154 = arith.constant 0 : index
    %c0_155 = arith.constant 0 : index
    %432 = vector.load %arg6[%c9_153, %c0_154, %c0_155] : memref<16x128x128xf32, #tpu.memory_space<vmem>>, vector<1x128x128xf32>
    %433 = vector.shape_cast %432 : vector<1x128x128xf32> to vector<128x128xf32>
    %cst_156 = arith.constant dense<0.000000e+00> : vector<1x128xf32>
    %434 = tpu.matmul %431, %433, %cst_156 {dimension_numbers = #tpu.dot_dimension_numbers<[1], [0], [0], [1], [0, 0, 1, 1], [], []>} : vector<1x128xf32>, vector<128x128xf32>, vector<1x128xf32> -> vector<1x128xf32>
    %435 = arith.addf %430, %434 : vector<1x128xf32>
    %436 = vector.extract_strided_slice %384 {offsets = [10, 0], sizes = [1, 128], strides = [1, 1]} : vector<16x128xf32> to vector<1x128xf32>
    %c10_157 = arith.constant 10 : index
    %c0_158 = arith.constant 0 : index
    %c0_159 = arith.constant 0 : index
    %437 = vector.load %arg6[%c10_157, %c0_158, %c0_159] : memref<16x128x128xf32, #tpu.memory_space<vmem>>, vector<1x128x128xf32>
    %438 = vector.shape_cast %437 : vector<1x128x128xf32> to vector<128x128xf32>
    %cst_160 = arith.constant dense<0.000000e+00> : vector<1x128xf32>
    %439 = tpu.matmul %436, %438, %cst_160 {dimension_numbers = #tpu.dot_dimension_numbers<[1], [0], [0], [1], [0, 0, 1, 1], [], []>} : vector<1x128xf32>, vector<128x128xf32>, vector<1x128xf32> -> vector<1x128xf32>
    %440 = arith.addf %435, %439 : vector<1x128xf32>
    %441 = vector.extract_strided_slice %384 {offsets = [11, 0], sizes = [1, 128], strides = [1, 1]} : vector<16x128xf32> to vector<1x128xf32>
    %c11_161 = arith.constant 11 : index
    %c0_162 = arith.constant 0 : index
    %c0_163 = arith.constant 0 : index
    %442 = vector.load %arg6[%c11_161, %c0_162, %c0_163] : memref<16x128x128xf32, #tpu.memory_space<vmem>>, vector<1x128x128xf32>
    %443 = vector.shape_cast %442 : vector<1x128x128xf32> to vector<128x128xf32>
    %cst_164 = arith.constant dense<0.000000e+00> : vector<1x128xf32>
    %444 = tpu.matmul %441, %443, %cst_164 {dimension_numbers = #tpu.dot_dimension_numbers<[1], [0], [0], [1], [0, 0, 1, 1], [], []>} : vector<1x128xf32>, vector<128x128xf32>, vector<1x128xf32> -> vector<1x128xf32>
    %445 = arith.addf %440, %444 : vector<1x128xf32>
    %446 = vector.extract_strided_slice %384 {offsets = [12, 0], sizes = [1, 128], strides = [1, 1]} : vector<16x128xf32> to vector<1x128xf32>
    %c12_165 = arith.constant 12 : index
    %c0_166 = arith.constant 0 : index
    %c0_167 = arith.constant 0 : index
    %447 = vector.load %arg6[%c12_165, %c0_166, %c0_167] : memref<16x128x128xf32, #tpu.memory_space<vmem>>, vector<1x128x128xf32>
    %448 = vector.shape_cast %447 : vector<1x128x128xf32> to vector<128x128xf32>
    %cst_168 = arith.constant dense<0.000000e+00> : vector<1x128xf32>
    %449 = tpu.matmul %446, %448, %cst_168 {dimension_numbers = #tpu.dot_dimension_numbers<[1], [0], [0], [1], [0, 0, 1, 1], [], []>} : vector<1x128xf32>, vector<128x128xf32>, vector<1x128xf32> -> vector<1x128xf32>
    %450 = arith.addf %445, %449 : vector<1x128xf32>
    %451 = vector.extract_strided_slice %384 {offsets = [13, 0], sizes = [1, 128], strides = [1, 1]} : vector<16x128xf32> to vector<1x128xf32>
    %c13_169 = arith.constant 13 : index
    %c0_170 = arith.constant 0 : index
    %c0_171 = arith.constant 0 : index
    %452 = vector.load %arg6[%c13_169, %c0_170, %c0_171] : memref<16x128x128xf32, #tpu.memory_space<vmem>>, vector<1x128x128xf32>
    %453 = vector.shape_cast %452 : vector<1x128x128xf32> to vector<128x128xf32>
    %cst_172 = arith.constant dense<0.000000e+00> : vector<1x128xf32>
    %454 = tpu.matmul %451, %453, %cst_172 {dimension_numbers = #tpu.dot_dimension_numbers<[1], [0], [0], [1], [0, 0, 1, 1], [], []>} : vector<1x128xf32>, vector<128x128xf32>, vector<1x128xf32> -> vector<1x128xf32>
    %455 = arith.addf %450, %454 : vector<1x128xf32>
    %456 = vector.extract_strided_slice %384 {offsets = [14, 0], sizes = [1, 128], strides = [1, 1]} : vector<16x128xf32> to vector<1x128xf32>
    %c14_173 = arith.constant 14 : index
    %c0_174 = arith.constant 0 : index
    %c0_175 = arith.constant 0 : index
    %457 = vector.load %arg6[%c14_173, %c0_174, %c0_175] : memref<16x128x128xf32, #tpu.memory_space<vmem>>, vector<1x128x128xf32>
    %458 = vector.shape_cast %457 : vector<1x128x128xf32> to vector<128x128xf32>
    %cst_176 = arith.constant dense<0.000000e+00> : vector<1x128xf32>
    %459 = tpu.matmul %456, %458, %cst_176 {dimension_numbers = #tpu.dot_dimension_numbers<[1], [0], [0], [1], [0, 0, 1, 1], [], []>} : vector<1x128xf32>, vector<128x128xf32>, vector<1x128xf32> -> vector<1x128xf32>
    %460 = arith.addf %455, %459 : vector<1x128xf32>
    %461 = vector.extract_strided_slice %384 {offsets = [15, 0], sizes = [1, 128], strides = [1, 1]} : vector<16x128xf32> to vector<1x128xf32>
    %c15_177 = arith.constant 15 : index
    %c0_178 = arith.constant 0 : index
    %c0_179 = arith.constant 0 : index
    %462 = vector.load %arg6[%c15_177, %c0_178, %c0_179] : memref<16x128x128xf32, #tpu.memory_space<vmem>>, vector<1x128x128xf32>
    %463 = vector.shape_cast %462 : vector<1x128x128xf32> to vector<128x128xf32>
    %cst_180 = arith.constant dense<0.000000e+00> : vector<1x128xf32>
    %464 = tpu.matmul %461, %463, %cst_180 {dimension_numbers = #tpu.dot_dimension_numbers<[1], [0], [0], [1], [0, 0, 1, 1], [], []>} : vector<1x128xf32>, vector<128x128xf32>, vector<1x128xf32> -> vector<1x128xf32>
    %465 = arith.addf %460, %464 : vector<1x128xf32>
    %466 = vector.shape_cast %465 : vector<1x128xf32> to vector<1x128xf32>
    %467 = vector.broadcast %466 : vector<1x128xf32> to vector<8x128xf32>
    %c0_181 = arith.constant 0 : index
    %c0_182 = arith.constant 0 : index
    %c0_183 = arith.constant 0 : index
    %468 = vector.load %arg8[%c0_181, %c0_182, %c0_183] : memref<1x8x128xf32, #tpu.memory_space<vmem>>, vector<1x8x128xf32>
    %469 = vector.shape_cast %468 : vector<1x8x128xf32> to vector<8x128xf32>
    %470 = vector.shape_cast %467 : vector<8x128xf32> to vector<1x8x128xf32>
    tpu.vector_store %arg8[%c0_181, %c0_182, %c0_183], %470 {strides = array<i32>} : memref<1x8x128xf32, #tpu.memory_space<vmem>>, vector<1x8x128xf32>,
    return
  }
  func.func @transform_0(%arg0: i32) -> (i32, i32, i32, i32) {
    %c0_i32 = arith.constant 0 : i32
    %c0_i32_0 = arith.constant 0 : i32
    %c0_i32_1 = arith.constant 0 : i32
    %c0_i32_2 = arith.constant 0 : i32
    return %arg0, %c0_i32, %c0_i32_0, %c0_i32_1 : i32, i32, i32, i32
  }
  func.func @transform_1(%arg0: i32) -> i32 {
    %c0_i32 = arith.constant 0 : i32
    %c0_i32_0 = arith.constant 0 : i32
    return %c0_i32 : i32
  }
  func.func @transform_2(%arg0: i32) -> i32 {
    %c0_i32 = arith.constant 0 : i32
    %c0_i32_0 = arith.constant 0 : i32
    return %c0_i32 : i32
  }
  func.func @transform_3(%arg0: i32) -> i32 {
    %c0_i32 = arith.constant 0 : i32
    %c0_i32_0 = arith.constant 0 : i32
    return %c0_i32 : i32
  }
  func.func @transform_4(%arg0: i32) -> i32 {
    %c0_i32 = arith.constant 0 : i32
    %c0_i32_0 = arith.constant 0 : i32
    return %c0_i32 : i32
  }
  func.func @transform_5(%arg0: i32) -> (i32, i32, i32) {
    %c0_i32 = arith.constant 0 : i32
    %c0_i32_0 = arith.constant 0 : i32
    %c0_i32_1 = arith.constant 0 : i32
    %c0_i32_2 = arith.constant 0 : i32
    return %c0_i32, %c0_i32_0, %c0_i32_1 : i32, i32, i32
  }
  func.func @transform_6(%arg0: i32) -> (i32, i32) {
    %c0_i32 = arith.constant 0 : i32
    %c0_i32_0 = arith.constant 0 : i32
    %c0_i32_1 = arith.constant 0 : i32
    return %c0_i32, %c0_i32_0 : i32, i32
  }
  func.func @transform_7(%arg0: i32) -> (i32, i32, i32) {
    %c0_i32 = arith.constant 0 : i32
    %c0_i32_0 = arith.constant 0 : i32
    %c0_i32_1 = arith.constant 0 : i32
    return %arg0, %c0_i32, %c0_i32_0 : i32, i32, i32
  }
}

</mosaic_0001>

<llo_original>
// kernel: tpu_custom_call.1
$region0: #{tpu_custom_call.1}
  #allocation0 [shape = 'u32[]', space=smem, size = 0x4, offset = 0x4, fixed_abs, tag = 'smem constant byte address 0x4 - core index']
  #allocation1 [shape = 'u32[144,128]{1,0:T(1,128)}', space=vmem, size = 0x12000, scoped, tag = 'internal scratch']
  #allocation2 [shape = 'f32[16,128]{1,0:T(8,128)}', space=vmem, size = 0x2000, scoped, tag = 'scratch operand']
  %s0 = inlined_call_operand.hbm [shape: f32[2,1,16,16], index: 0, kind: input, shape index: {}]
  %s1 = inlined_call_operand.vmem [shape: f32[4], index: 1, kind: input, shape index: {}]
  %s2 = inlined_call_operand.vmem [shape: f32[4], index: 2, kind: input, shape index: {}]
  %s3 = inlined_call_operand.vmem [shape: f32[36], index: 3, kind: input, shape index: {}]
  %s4 = inlined_call_operand.vmem [shape: f32[4], index: 4, kind: input, shape index: {}]
  %s5 = inlined_call_operand.hbm [shape: f32[16,128,128], index: 5, kind: input, shape index: {}]
  %s6 = inlined_call_operand.vmem [shape: f32[1,128], index: 6, kind: input, shape index: {}]
  %s7 = inlined_call_operand.hbm [shape: f32[2,8,128], index: 7, kind: output, shape index: {}]
  %s8 = sld [smem:[#allocation0]]
  $region85: #{tpu_custom_call.1} parent=0
    _
  %s10 = ssub.s32 1, %s8
  %s11 = scalar_select 0, %s10, %s8
  $region1: #{tpu_custom_call.1} parent=0
    #allocation3 [shape = 'u8[16384]{0}', space=vmem, size = 0x4000, scoped, tag = 'input window, operand 0']
    #allocation4 [shape = 's32[2]{0}', space=sflag, size = 0x8, scoped, tag = 'scoped memory for tpu_custom_call.1']
    #allocation5 [shape = 's32[2]{0}', space=sflag, size = 0x8, scoped, tag = 'scoped memory for tpu_custom_call.1']
    #allocation6 [shape = 's32[2]{0}', space=sflag, size = 0x8, scoped, tag = 'scoped memory for tpu_custom_call.1']
    #allocation7 [shape = 'u8[512]{0}', space=smem, size = 0x200, scoped, tag = 'input window, operand 1, single buffered']
    #allocation8 [shape = 'u8[512]{0}', space=smem, size = 0x200, scoped, tag = 'input window, operand 2, single buffered']
    #allocation9 [shape = 's32[1]{0}', space=sflag, size = 0x4, scoped, tag = 'scoped memory for tpu_custom_call.1']
    #allocation10 [shape = 'u8[512]{0}', space=smem, size = 0x200, scoped, tag = 'input window, operand 3, single buffered']
    #allocation11 [shape = 'u8[512]{0}', space=smem, size = 0x200, scoped, tag = 'input window, operand 4, single buffered']
    #allocation12 [shape = 's32[1]{0}', space=sflag, size = 0x4, scoped, tag = 'scoped memory for tpu_custom_call.1']
    #allocation13 [shape = 'u8[1048576]{0}', space=vmem, size = 0x100000, scoped, tag = 'input window, operand 5, single buffered']
    #allocation14 [shape = 's32[1]{0}', space=sflag, size = 0x4, scoped, tag = 'scoped memory for tpu_custom_call.1']
    #allocation15 [shape = 'u8[8192]{0}', space=vmem, size = 0x2000, scoped, tag = 'output window, operand 0']
    %12 = vsyncpa [#allocation4], 0
    %s13 = scalar_lea.sflag [#allocation4], 1
    %14 = vsyncpa %s13, 0
    %15 = vsyncpa [#allocation6], 0
    %16 = vsyncpa [#allocation9], 0
    %17 = vsyncpa [#allocation12], 0
    %18 = vsyncpa [#allocation14], 0
    %19 = vsyncpa [#allocation5], 0
    %s20 = scalar_lea.sflag [#allocation5], 1
    %21 = vsyncpa %s20, 0
    loop: start=0, step=1, limit=4
    $region2: #{tpu_custom_call.1} parent=1 // loop_pre_header
      _
    $region3: #{tpu_custom_call.1} parent=1 // loop_header
      %s23 = sphi 0, %s27
      %p24 = scmp.ge.s32.totalorder %s23, 4
      %s33 = sphi 0, %s35
      %s36 = sphi 0, %s33
      %s37 = sphi 0, %s36
      %s53 = sphi 0, %s37
      %s57 = sphi 0, %s57
      %s59 = sphi 0, %s57
      %s60 = sphi 0, %s59
      %s74 = sphi 0, %s60
      %s78 = sphi 0, %s78
      %s80 = sphi 0, %s78
      %s81 = sphi 0, %s80
      %s95 = sphi 0, %s81
      %s99 = sphi 0, %s99
      %s101 = sphi 0, %s99
      %s102 = sphi 0, %s101
      %s116 = sphi 0, %s102
      %s120 = sphi 0, %s120
      %s122 = sphi 0, %s120
      %s123 = sphi 0, %s122
      %s137 = sphi 0, %s123
      %s141 = sphi 0, %s141
      %s143 = sphi 0, %s141
      %s144 = sphi 0, %s143
      %s158 = sphi 0, %s144
      %s162 = sphi 0, %s162
      %s164 = sphi 0, %s162
      %s165 = sphi 0, %s164
      %s179 = sphi 0, %s165
      %s185 = sphi 0, %s187
      %s188 = sphi 0, %s185
      %s189 = sphi 0, %s188
      %s205 = sphi 0, %s189
    $region4: #{tpu_custom_call.1} parent=1 // loop_header_branch
      %26 = sbr.rel (%p24) target = $region8
    $region5: #{tpu_custom_call.1} parent=1 // loop_body
      %s28 = ssub.s32 %s23, 1
      %s29 = ssub.s32 %s23, 2
      %s30 = sadd.s32 %s23, 1
      %s31 = ssub.s32 %s23, %s30
      %p32 = scmp.eq.s32.totalorder %s31, 0
      %s34 = sadd.s32 %s33, 1
      %s35 = scalar_select %p32, %s33, %s34
      %p38 = pneg %p32
      %p39 = scmp.eq.s32.totalorder %s23, 1
      %p40 = por %p38, %p39
      %p41 = scmp.ne.s32.totalorder %s33, %s36
      %p42 = scmp.eq.s32.totalorder %s23, 0
      %p43 = por %p41, %p42
      %p44 = scmp.ne.s32.totalorder %s33, %s36
      %p45 = scmp.eq.s32.totalorder %s28, 1
      %p46 = por %p44, %p45
      %p47 = scmp.ne.s32.totalorder %s36, %s37
      %p48 = scmp.eq.s32.totalorder %s28, 0
      %p49 = por %p47, %p48
      %p50 = scmp.ne.s32.totalorder %s36, %s37
      %p51 = scmp.eq.s32.totalorder %s29, 1
      %p52 = por %p50, %p51
      %p54 = scmp.ne.s32.totalorder %s37, %s53
      %p55 = scmp.eq.s32.totalorder %s29, 0
      %p56 = por %p54, %p55
      %s58 = sadd.s32 %s57, 1
      %p61 = scmp.eq.s32.totalorder %s23, 1
      %p62 = scmp.ne.s32.totalorder %s57, %s59
      %p63 = scmp.eq.s32.totalorder %s23, 0
      %p64 = por %p62, %p63
      %p65 = scmp.ne.s32.totalorder %s57, %s59
      %p66 = scmp.eq.s32.totalorder %s28, 1
      %p67 = por %p65, %p66
      %p68 = scmp.ne.s32.totalorder %s59, %s60
      %p69 = scmp.eq.s32.totalorder %s28, 0
      %p70 = por %p68, %p69
      %p71 = scmp.ne.s32.totalorder %s59, %s60
      %p72 = scmp.eq.s32.totalorder %s29, 1
      %p73 = por %p71, %p72
      %p75 = scmp.ne.s32.totalorder %s60, %s74
      %p76 = scmp.eq.s32.totalorder %s29, 0
      %p77 = por %p75, %p76
      %s79 = sadd.s32 %s78, 1
      %p82 = scmp.eq.s32.totalorder %s23, 1
      %p83 = scmp.ne.s32.totalorder %s78, %s80
      %p84 = scmp.eq.s32.totalorder %s23, 0
      %p85 = por %p83, %p84
      %p86 = scmp.ne.s32.totalorder %s78, %s80
      %p87 = scmp.eq.s32.totalorder %s28, 1
      %p88 = por %p86, %p87
      %p89 = scmp.ne.s32.totalorder %s80, %s81
      %p90 = scmp.eq.s32.totalorder %s28, 0
      %p91 = por %p89, %p90
      %p92 = scmp.ne.s32.totalorder %s80, %s81
      %p93 = scmp.eq.s32.totalorder %s29, 1
      %p94 = por %p92, %p93
      %p96 = scmp.ne.s32.totalorder %s81, %s95
      %p97 = scmp.eq.s32.totalorder %s29, 0
      %p98 = por %p96, %p97
      %s100 = sadd.s32 %s99, 1
      %p103 = scmp.eq.s32.totalorder %s23, 1
      %p104 = scmp.ne.s32.totalorder %s99, %s101
      %p105 = scmp.eq.s32.totalorder %s23, 0
      %p106 = por %p104, %p105
      %p107 = scmp.ne.s32.totalorder %s99, %s101
      %p108 = scmp.eq.s32.totalorder %s28, 1
      %p109 = por %p107, %p108
      %p110 = scmp.ne.s32.totalorder %s101, %s102
      %p111 = scmp.eq.s32.totalorder %s28, 0
      %p112 = por %p110, %p111
      %p113 = scmp.ne.s32.totalorder %s101, %s102
      %p114 = scmp.eq.s32.totalorder %s29, 1
      %p115 = por %p113, %p114
      %p117 = scmp.ne.s32.totalorder %s102, %s116
      %p118 = scmp.eq.s32.totalorder %s29, 0
      %p119 = por %p117, %p118
      %s121 = sadd.s32 %s120, 1
      %p124 = scmp.eq.s32.totalorder %s23, 1
      %p125 = scmp.ne.s32.totalorder %s120, %s122
      %p126 = scmp.eq.s32.totalorder %s23, 0
      %p127 = por %p125, %p126
      %p128 = scmp.ne.s32.totalorder %s120, %s122
      %p129 = scmp.eq.s32.totalorder %s28, 1
      %p130 = por %p128, %p129
      %p131 = scmp.ne.s32.totalorder %s122, %s123
      %p132 = scmp.eq.s32.totalorder %s28, 0
      %p133 = por %p131, %p132
      %p134 = scmp.ne.s32.totalorder %s122, %s123
      %p135 = scmp.eq.s32.totalorder %s29, 1
      %p136 = por %p134, %p135
      %p138 = scmp.ne.s32.totalorder %s123, %s137
      %p139 = scmp.eq.s32.totalorder %s29, 0
      %p140 = por %p138, %p139
      %s142 = sadd.s32 %s141, 1
      %p145 = scmp.eq.s32.totalorder %s23, 1
      %p146 = scmp.ne.s32.totalorder %s141, %s143
      %p147 = scmp.eq.s32.totalorder %s23, 0
      %p148 = por %p146, %p147
      %p149 = scmp.ne.s32.totalorder %s141, %s143
      %p150 = scmp.eq.s32.totalorder %s28, 1
      %p151 = por %p149, %p150
      %p152 = scmp.ne.s32.totalorder %s143, %s144
      %p153 = scmp.eq.s32.totalorder %s28, 0
      %p154 = por %p152, %p153
      %p155 = scmp.ne.s32.totalorder %s143, %s144
      %p156 = scmp.eq.s32.totalorder %s29, 1
      %p157 = por %p155, %p156
      %p159 = scmp.ne.s32.totalorder %s144, %s158
      %p160 = scmp.eq.s32.totalorder %s29, 0
      %p161 = por %p159, %p160
      %s163 = sadd.s32 %s162, 1
      %p166 = scmp.eq.s32.totalorder %s23, 1
      %p167 = scmp.ne.s32.totalorder %s162, %s164
      %p168 = scmp.eq.s32.totalorder %s23, 0
      %p169 = por %p167, %p168
      %p170 = scmp.ne.s32.totalorder %s162, %s164
      %p171 = scmp.eq.s32.totalorder %s28, 1
      %p172 = por %p170, %p171
      %p173 = scmp.ne.s32.totalorder %s164, %s165
      %p174 = scmp.eq.s32.totalorder %s28, 0
      %p175 = por %p173, %p174
      %p176 = scmp.ne.s32.totalorder %s164, %s165
      %p177 = scmp.eq.s32.totalorder %s29, 1
      %p178 = por %p176, %p177
      %p180 = scmp.ne.s32.totalorder %s165, %s179
      %p181 = scmp.eq.s32.totalorder %s29, 0
      %p182 = por %p180, %p181
      %s183 = ssub.s32 %s23, %s30
      %p184 = scmp.eq.s32.totalorder %s183, 0
      %s186 = sadd.s32 %s185, 1
      %s187 = scalar_select %p184, %s185, %s186
      %p190 = pneg %p184
      %p191 = scmp.eq.s32.totalorder %s23, 1
      %p192 = por %p190, %p191
      %p193 = scmp.ne.s32.totalorder %s185, %s188
      %p194 = scmp.eq.s32.totalorder %s23, 0
      %p195 = por %p193, %p194
      %p196 = scmp.ne.s32.totalorder %s185, %s188
      %p197 = scmp.eq.s32.totalorder %s28, 1
      %p198 = por %p196, %p197
      %p199 = scmp.ne.s32.totalorder %s188, %s189
      %p200 = scmp.eq.s32.totalorder %s28, 0
      %p201 = por %p199, %p200
      %p202 = scmp.ne.s32.totalorder %s188, %s189
      %p203 = scmp.eq.s32.totalorder %s29, 1
      %p204 = por %p202, %p203
      %p206 = scmp.ne.s32.totalorder %s189, %s205
      %p207 = scmp.eq.s32.totalorder %s29, 0
      %p208 = por %p206, %p207
      %p209 = scmp.le.s32.totalorder 1, %s23
      %p210 = scmp.lt.s32.totalorder %s23, 3
      %p211 = pnand %p209, %p210
      %p212 = pneg %p211
      // Predicated region
      $region9: #{tpu_custom_call.1} parent=5 // pred_check
        _
      $region10: #{tpu_custom_call.1} parent=5 // pred_check_branch
        %214 = sbr.rel (%p211) target = $region12
      $region11: #{tpu_custom_call.1} parent=5 // pred_region
        %s215 = ssub.s32 %s23, 1
        // Predicated region
        $region13: #{tpu_custom_call.1} parent=11 // pred_check
          %p216 = pneg %p70
        $region14: #{tpu_custom_call.1} parent=11 // pred_check_branch
          %218 = sbr.rel (%p216) target = $region16
        $region15: #{tpu_custom_call.1} parent=11 // pred_region
          %s220 = ssub.s32 16, 16
          %221 = vsyncadd [#allocation6], %s220
          %s223 = sshll.u32 %s1, 4
          %s224 = int_to_ptr.vmem [resolvable:$true] %s223
          %226 = dma.vmem_to_smem %s224, 16, [#allocation7], [#allocation6]
        $region16: #{tpu_custom_call.1} parent=11 // pred_fallthru
          _
        // Predicated region
        $region17: #{tpu_custom_call.1} parent=11 // pred_check
          %p227 = pneg %p91
        $region18: #{tpu_custom_call.1} parent=11 // pred_check_branch
          %229 = sbr.rel (%p227) target = $region20
        $region19: #{tpu_custom_call.1} parent=11 // pred_region
          %s231 = ssub.s32 16, 16
          %232 = vsyncadd [#allocation9], %s231
          %s234 = sshll.u32 %s2, 4
          %s235 = int_to_ptr.vmem [resolvable:$true] %s234
          %237 = dma.vmem_to_smem %s235, 16, [#allocation8], [#allocation9]
        $region20: #{tpu_custom_call.1} parent=11 // pred_fallthru
          _
        // Predicated region
        $region21: #{tpu_custom_call.1} parent=11 // pred_check
          %p238 = pneg %p112
        $region22: #{tpu_custom_call.1} parent=11 // pred_check_branch
          %240 = sbr.rel (%p238) target = $region24
        $region23: #{tpu_custom_call.1} parent=11 // pred_region
          %s242 = ssub.s32 16, 16
          %243 = vsyncadd [#allocation9], %s242
          %s245 = sshll.u32 %s3, 4
          %s246 = int_to_ptr.vmem [resolvable:$true] %s245
          %248 = dma.vmem_to_smem %s246, 16, [#allocation10], [#allocation9]
        $region24: #{tpu_custom_call.1} parent=11 // pred_fallthru
          _
        // Predicated region
        $region25: #{tpu_custom_call.1} parent=11 // pred_check
          %p249 = pneg %p133
        $region26: #{tpu_custom_call.1} parent=11 // pred_check_branch
          %251 = sbr.rel (%p249) target = $region28
        $region27: #{tpu_custom_call.1} parent=11 // pred_region
          %s253 = ssub.s32 16, 16
          %254 = vsyncadd [#allocation12], %s253
          %s256 = sshll.u32 %s4, 4
          %s257 = int_to_ptr.vmem [resolvable:$true] %s256
          %259 = dma.vmem_to_smem %s257, 16, [#allocation11], [#allocation12]
        $region28: #{tpu_custom_call.1} parent=11 // pred_fallthru
          _
        // Predicated region
        $region29: #{tpu_custom_call.1} parent=11 // pred_check
          %p260 = pneg %p154
        $region30: #{tpu_custom_call.1} parent=11 // pred_check_branch
          %262 = sbr.rel (%p260) target = $region32
        $region31: #{tpu_custom_call.1} parent=11 // pred_region
          %s264 = ssub.s32 32768, 32768
          %265 = vsyncadd [#allocation14], %s264
          %s266 = sshll.u32 [#allocation13], 4
          %s267 = int_to_ptr.vmem [resolvable:$true] %s266
          %272 = dma.hbm_to_vmem [thread:$0]  %s5, 32768, %s267, [#allocation14], 128, 128, 8
        $region32: #{tpu_custom_call.1} parent=11 // pred_fallthru
          _
        // Predicated region
        $region33: #{tpu_custom_call.1} parent=11 // pred_check
          %p273 = pneg %p175
        $region34: #{tpu_custom_call.1} parent=11 // pred_check_branch
          %275 = sbr.rel (%p273) target = $region36
        $region35: #{tpu_custom_call.1} parent=11 // pred_region
          _
        $region36: #{tpu_custom_call.1} parent=11 // pred_fallthru
          _
      $region12: #{tpu_custom_call.1} parent=5 // pred_fallthru
        _
      %p276 = scmp.lt.s32.totalorder %s23, 2
      // Predicated region
      $region37: #{tpu_custom_call.1} parent=5 // pred_check
        %p277 = pneg %p276
      $region38: #{tpu_custom_call.1} parent=5 // pred_check_branch
        %279 = sbr.rel (%p277) target = $region40
      $region39: #{tpu_custom_call.1} parent=5 // pred_region
        // Predicated region
        $region41: #{tpu_custom_call.1} parent=39 // pred_check
          %p280 = pneg %p43
        $region42: #{tpu_custom_call.1} parent=39 // pred_check_branch
          %282 = sbr.rel (%p280) target = $region44
        $region43: #{tpu_custom_call.1} parent=39 // pred_region
          %s283 = sand.u32 %s33, 1
          %s284 = scalar_lea.sflag [#allocation4], %s283
          %s285 = sand.u32 %s33, 1
          %s286 = smul.addr %s285, 16
          %s287 = scalar_lea.vmem [#allocation3], %s286
          %s289 = ssub.s32 256, 256
          %290 = vsyncadd %s284, %s289
          %s291 = smul.addr %s23, 2
          %s292 = smul.addr %s291, 128
          %s293 = scalar_lea.hbm %s0, %s292
          %s294 = sshll.u32 %s287, 4
          %s295 = int_to_ptr.vmem [resolvable:$true] %s294
          %300 = dma.hbm_to_vmem [thread:$0]  %s293, 256, %s295, %s284, 128, 128, 8
        $region44: #{tpu_custom_call.1} parent=39 // pred_fallthru
          _
      $region40: #{tpu_custom_call.1} parent=5 // pred_fallthru
        _
      %p301 = scmp.le.s32.totalorder 1, %s23
      %p302 = scmp.lt.s32.totalorder %s23, 3
      %p303 = pnand %p301, %p302
      %p304 = pneg %p303
      // Predicated region
      $region45: #{tpu_custom_call.1} parent=5 // pred_check
        _
      $region46: #{tpu_custom_call.1} parent=5 // pred_check_branch
        %306 = sbr.rel (%p303) target = $region48
      $region47: #{tpu_custom_call.1} parent=5 // pred_region
        %s307 = ssub.s32 %s23, 1
        %s308 = sand.u32 %s36, 1
        %s309 = scalar_lea.sflag [#allocation4], %s308
        %s310 = sand.u32 %s36, 1
        %s311 = smul.addr %s310, 16
        %s312 = scalar_lea.vmem [#allocation3], %s311
        // Predicated region
        $region49: #{tpu_custom_call.1} parent=47 // pred_check
          %p313 = pneg %p49
        $region50: #{tpu_custom_call.1} parent=47 // pred_check_branch
          %315 = sbr.rel (%p313) target = $region52
        $region51: #{tpu_custom_call.1} parent=47 // pred_region
          %316 = dma.done %s309, 256
        $region52: #{tpu_custom_call.1} parent=47 // pred_fallthru
          _
        // Predicated region
        $region53: #{tpu_custom_call.1} parent=47 // pred_check
          %p317 = pneg %p70
        $region54: #{tpu_custom_call.1} parent=47 // pred_check_branch
          %319 = sbr.rel (%p317) target = $region56
        $region55: #{tpu_custom_call.1} parent=47 // pred_region
          %320 = dma.done [#allocation6], 16
        $region56: #{tpu_custom_call.1} parent=47 // pred_fallthru
          _
        // Predicated region
        $region57: #{tpu_custom_call.1} parent=47 // pred_check
          %p321 = pneg %p91
        $region58: #{tpu_custom_call.1} parent=47 // pred_check_branch
          %323 = sbr.rel (%p321) target = $region60
        $region59: #{tpu_custom_call.1} parent=47 // pred_region
          %324 = dma.done [#allocation9], 16
        $region60: #{tpu_custom_call.1} parent=47 // pred_fallthru
          _
        // Predicated region
        $region61: #{tpu_custom_call.1} parent=47 // pred_check
          %p325 = pneg %p112
        $region62: #{tpu_custom_call.1} parent=47 // pred_check_branch
          %327 = sbr.rel (%p325) target = $region64
        $region63: #{tpu_custom_call.1} parent=47 // pred_region
          %328 = dma.done [#allocation9], 16
        $region64: #{tpu_custom_call.1} parent=47 // pred_fallthru
          _
        // Predicated region
        $region65: #{tpu_custom_call.1} parent=47 // pred_check
          %p329 = pneg %p133
        $region66: #{tpu_custom_call.1} parent=47 // pred_check_branch
          %331 = sbr.rel (%p329) target = $region68
        $region67: #{tpu_custom_call.1} parent=47 // pred_region
          %332 = dma.done [#allocation12], 16
        $region68: #{tpu_custom_call.1} parent=47 // pred_fallthru
          _
        // Predicated region
        $region69: #{tpu_custom_call.1} parent=47 // pred_check
          %p333 = pneg %p154
        $region70: #{tpu_custom_call.1} parent=47 // pred_check_branch
          %335 = sbr.rel (%p333) target = $region72
        $region71: #{tpu_custom_call.1} parent=47 // pred_region
          %336 = dma.done [#allocation14], 32768
        $region72: #{tpu_custom_call.1} parent=47 // pred_fallthru
          _
        %337 = sfence
        %s338 = sand.u32 %s36, 1
        %s339 = scalar_lea.sflag [#allocation4], %s338
        %s340 = sand.u32 %s36, 1
        %s341 = smul.addr %s340, 16
        %s342 = scalar_lea.vmem [#allocation3], %s341
        %p343 = pneg %p49
        %p344 = pneg %p46
        %p345 = pneg %p70
        %p346 = pneg %p67
        %p347 = pneg %p91
        %p348 = pneg %p88
        %p349 = pneg %p112
        %p350 = pneg %p109
        %p351 = pneg %p133
        %p352 = pneg %p130
        %p353 = pneg %p154
        %p354 = pneg %p151
        %p355 = pneg %p175
        %p356 = pneg %p172
        %p357 = pneg %p201
        %p358 = pneg %p198
        %s359 = sand.u32 %s188, 1
        %s360 = scalar_lea.sflag [#allocation5], %s359
        %s361 = sand.u32 %s188, 1
        %s362 = smul.addr %s361, 8
        %s363 = scalar_lea.vmem [#allocation15], %s362
        %v364 = vld [vmem:[%s312] sm:$0xff]
        %v365 = vld [vmem:[%s312 + $0x8] sm:$0xff]
        %v366 = vlaneseq
        %v367 = vshrl.u32 %v366, 7
        %v368 = vadd.s32 %v367, 8
        %v369 = vlaneseq
        %v370 = vand.u32 %v369, 127
        %v371 = vrot.slane %v364, 7
        %v372 = vrot.slane %v365, 7
        %vm373 = vcmp.lt.s32.totalorder %v367, 1
        %v374 = vsel %vm373, %v371, %v372
        %v375 = vsel %vm373, %v372, %v371
        %vm376 = vcmask 1047680
        %377 = vrot.lane.b32.xlu0 %v375, 16
        %v378 = vpop.permute.xlu0 %377
        %v379 = vsel %vm376, %v378, %v375
        %380 = vrot.lane.b32.xlu0 %v374, 16
        %v381 = vpop.permute.xlu0 %380
        %v382 = vsel %vm376, %v381, %v374
        %383 = vrot.lane.b32.xlu0 %v379, 16
        %v384 = vpop.permute.xlu0 %383
        %385 = vrot.lane.b32.xlu0 %v382, 16
        %v386 = vpop.permute.xlu0 %385
        %v387 = vsel %vm376, %v384, %v375
        %v388 = vsel %vm376, %v386, %v374
        %v389 = vadd.s32 %v367, 4294967295
        %v390 = vadd.s32 %v368, 4294967295
        %vm391 = vcmp.ge.s32.totalorder %v389, 0
        %vm392 = vcmp.ge.s32.totalorder %v390, 0
        %vm393 = vcmp.lt.s32.totalorder %v389, 16
        %vm394 = vcmp.lt.s32.totalorder %v390, 16
        %vm395 = vmand %vm391, %vm393
        %vm396 = vmand %vm392, %vm394
        %v397 = vadd.s32 %v370, 4294967295
        %vm398 = vcmp.ge.s32.totalorder %v397, 0
        %vm399 = vmand %vm395, %vm398
        %vm400 = vmand %vm396, %vm398
        %vm401 = vcmp.lt.s32.totalorder %v397, 16
        %vm402 = vmand %vm399, %vm401
        %vm403 = vmand %vm400, %vm401
        %406 = vrot.lane.b32.xlu0 %v387, 113
        %v407 = vpop.permute.xlu0 %406
        %408 = vrot.lane.b32.xlu0 %v388, 113
        %v409 = vpop.permute.xlu0 %408
        %v412 = vsel %vm402, %v407, 0.0
        %v413 = vsel %vm403, %v409, 0.0
        %vm414 = vcmp.ge.s32.totalorder %v370, 0
        %vm415 = vmand %vm395, %vm414
        %vm416 = vmand %vm396, %vm414
        %vm417 = vcmp.lt.s32.totalorder %v370, 16
        %vm418 = vmand %vm415, %vm417
        %vm419 = vmand %vm416, %vm417
        %v420 = vsel %vm418, %v375, 0.0
        %v421 = vsel %vm419, %v374, 0.0
        %v422 = vadd.s32 %v370, 1
        %vm423 = vcmp.ge.s32.totalorder %v422, 0
        %vm424 = vmand %vm395, %vm423
        %vm425 = vmand %vm396, %vm423
        %vm426 = vcmp.lt.s32.totalorder %v422, 16
        %vm427 = vmand %vm424, %vm426
        %vm428 = vmand %vm425, %vm426
        %429 = vrot.lane.b32.xlu0 %v387, 127
        %v430 = vpop.permute.xlu0 %429
        %431 = vrot.lane.b32.xlu0 %v388, 127
        %v432 = vpop.permute.xlu0 %431
        %v435 = vsel %vm427, %v430, 0.0
        %v436 = vsel %vm428, %v432, 0.0
        %437 = vrot.lane.b32.xlu0 %v364, 16
        %v438 = vpop.permute.xlu0 %437
        %v439 = vsel %vm376, %v438, %v364
        %440 = vrot.lane.b32.xlu0 %v365, 16
        %v441 = vpop.permute.xlu0 %440
        %v442 = vsel %vm376, %v441, %v365
        %443 = vrot.lane.b32.xlu0 %v439, 16
        %v444 = vpop.permute.xlu0 %443
        %445 = vrot.lane.b32.xlu0 %v442, 16
        %v446 = vpop.permute.xlu0 %445
        %v447 = vsel %vm376, %v444, %v364
        %v448 = vsel %vm376, %v446, %v365
        %vm449 = vcmp.ge.s32.totalorder %v367, 0
        %vm450 = vcmp.ge.s32.totalorder %v368, 0
        %vm451 = vcmp.lt.s32.totalorder %v367, 16
        %vm452 = vcmp.lt.s32.totalorder %v368, 16
        %vm453 = vmand %vm449, %vm451
        %vm454 = vmand %vm450, %vm452
        %vm455 = vmand %vm453, %vm398
        %vm456 = vmand %vm454, %vm398
        %vm457 = vmand %vm455, %vm401
        %vm458 = vmand %vm456, %vm401
        %461 = vrot.lane.b32.xlu0 %v447, 113
        %v462 = vpop.permute.xlu0 %461
        %463 = vrot.lane.b32.xlu0 %v448, 113
        %v464 = vpop.permute.xlu0 %463
        %v467 = vsel %vm457, %v462, 0.0
        %v468 = vsel %vm458, %v464, 0.0
        %vm469 = vmand %vm453, %vm423
        %vm470 = vmand %vm454, %vm423
        %vm471 = vmand %vm469, %vm426
        %vm472 = vmand %vm470, %vm426
        %473 = vrot.lane.b32.xlu0 %v447, 127
        %v474 = vpop.permute.xlu0 %473
        %475 = vrot.lane.b32.xlu0 %v448, 127
        %v476 = vpop.permute.xlu0 %475
        %v479 = vsel %vm471, %v474, 0.0
        %v480 = vsel %vm472, %v476, 0.0
        %v481 = vrot.slane %v364, 1
        %v482 = vrot.slane %v365, 1
        %vm483 = vcmp.lt.s32.totalorder %v367, 7
        %v484 = vsel %vm483, %v481, %v482
        %v485 = vsel %vm483, %v482, %v481
        %486 = vrot.lane.b32.xlu0 %v484, 16
        %v487 = vpop.permute.xlu0 %486
        %v488 = vsel %vm376, %v487, %v484
        %489 = vrot.lane.b32.xlu0 %v485, 16
        %v490 = vpop.permute.xlu0 %489
        %v491 = vsel %vm376, %v490, %v485
        %492 = vrot.lane.b32.xlu0 %v488, 16
        %v493 = vpop.permute.xlu0 %492
        %494 = vrot.lane.b32.xlu0 %v491, 16
        %v495 = vpop.permute.xlu0 %494
        %v496 = vsel %vm376, %v493, %v484
        %v497 = vsel %vm376, %v495, %v485
        %v498 = vadd.s32 %v367, 1
        %v499 = vadd.s32 %v368, 1
        %vm500 = vcmp.ge.s32.totalorder %v498, 0
        %vm501 = vcmp.ge.s32.totalorder %v499, 0
        %vm502 = vcmp.lt.s32.totalorder %v498, 16
        %vm503 = vcmp.lt.s32.totalorder %v499, 16
        %vm504 = vmand %vm500, %vm502
        %vm505 = vmand %vm501, %vm503
        %vm506 = vmand %vm504, %vm398
        %vm507 = vmand %vm505, %vm398
        %vm508 = vmand %vm506, %vm401
        %vm509 = vmand %vm507, %vm401
        %512 = vrot.lane.b32.xlu0 %v496, 113
        %v513 = vpop.permute.xlu0 %512
        %514 = vrot.lane.b32.xlu0 %v497, 113
        %v515 = vpop.permute.xlu0 %514
        %v518 = vsel %vm508, %v513, 0.0
        %v519 = vsel %vm509, %v515, 0.0
        %vm520 = vmand %vm504, %vm414
        %vm521 = vmand %vm505, %vm414
        %vm522 = vmand %vm520, %vm417
        %vm523 = vmand %vm521, %vm417
        %v524 = vsel %vm522, %v484, 0.0
        %v525 = vsel %vm523, %v485, 0.0
        %vm526 = vmand %vm504, %vm423
        %vm527 = vmand %vm505, %vm423
        %vm528 = vmand %vm526, %vm426
        %vm529 = vmand %vm527, %vm426
        %530 = vrot.lane.b32.xlu0 %v496, 127
        %v531 = vpop.permute.xlu0 %530
        %532 = vrot.lane.b32.xlu0 %v497, 127
        %v533 = vpop.permute.xlu0 %532
        %v536 = vsel %vm528, %v531, 0.0
        %v537 = vsel %vm529, %v533, 0.0
        %s538 = sld [smem:[#allocation7]]
        %v539 = vstv %s538
        %v540 = vmul.f32 %v364, %v539
        %v541 = vmul.f32 %v365, %v539
        %s542 = sld [smem:[#allocation8]]
        %v543 = vstv %s542
        %v544 = vadd.f32 %v540, %v543
        %v545 = vadd.f32 %v541, %v543
        %v546 = vmax.f32 %v544, 0.0
        %v547 = vmax.f32 %v545, 0.0
        %vm548 = vcmask 130048
        %549 = vst.msk [vmem:[#allocation2] sm:$0xff] %vm548, %v546
        %550 = vst.msk [vmem:[#allocation2 + $0x8] sm:$0xff] %vm548, %v547
        %s551 = sld [smem:[#allocation7 + $0x1]]
        %v552 = vstv %s551
        %v553 = vmul.f32 %v364, %v552
        %v554 = vmul.f32 %v365, %v552
        %s555 = sld [smem:[#allocation8 + $0x1]]
        %v556 = vstv %s555
        %v557 = vadd.f32 %v553, %v556
        %v558 = vadd.f32 %v554, %v556
        %v559 = vmax.f32 %v557, 0.0
        %v560 = vmax.f32 %v558, 0.0
        %563 = vrot.lane.b32.xlu0 %v559, 16
        %v564 = vpop.permute.xlu0 %563
        %565 = vrot.lane.b32.xlu0 %v560, 16
        %v566 = vpop.permute.xlu0 %565
        %vm569 = vcmask 261248
        %570 = vst.msk [vmem:[#allocation2] sm:$0xff] %vm569, %v564
        %571 = vst.msk [vmem:[#allocation2 + $0x8] sm:$0xff] %vm569, %v566
        %s572 = sld [smem:[#allocation7 + $0x2]]
        %v573 = vstv %s572
        %v574 = vmul.f32 %v364, %v573
        %v575 = vmul.f32 %v365, %v573
        %s576 = sld [smem:[#allocation8 + $0x2]]
        %v577 = vstv %s576
        %v578 = vadd.f32 %v574, %v577
        %v579 = vadd.f32 %v575, %v577
        %v580 = vmax.f32 %v578, 0.0
        %v581 = vmax.f32 %v579, 0.0
        %584 = vrot.lane.b32.xlu0 %v580, 32
        %v585 = vpop.permute.xlu0 %584
        %586 = vrot.lane.b32.xlu0 %v581, 32
        %v587 = vpop.permute.xlu0 %586
        %vm590 = vcmask 392448
        %591 = vst.msk [vmem:[#allocation2] sm:$0xff] %vm590, %v585
        %592 = vst.msk [vmem:[#allocation2 + $0x8] sm:$0xff] %vm590, %v587
        %s593 = sld [smem:[#allocation7 + $0x3]]
        %v594 = vstv %s593
        %v595 = vmul.f32 %v364, %v594
        %v596 = vmul.f32 %v365, %v594
        %s597 = sld [smem:[#allocation8 + $0x3]]
        %v598 = vstv %s597
        %v599 = vadd.f32 %v595, %v598
        %v600 = vadd.f32 %v596, %v598
        %v601 = vmax.f32 %v599, 0.0
        %v602 = vmax.f32 %v600, 0.0
        %605 = vrot.lane.b32.xlu0 %v601, 48
        %v606 = vpop.permute.xlu0 %605
        %607 = vrot.lane.b32.xlu0 %v602, 48
        %v608 = vpop.permute.xlu0 %607
        %vm611 = vcmask 523648
        %612 = vst.msk [vmem:[#allocation2] sm:$0xff] %vm611, %v606
        %613 = vst.msk [vmem:[#allocation2 + $0x8] sm:$0xff] %vm611, %v608
        %s614 = sld [smem:[#allocation10]]
        %v615 = vstv %s614
        %v616 = vmul.f32 %v412, %v615
        %v617 = vmul.f32 %v413, %v615
        %s618 = sld [smem:[#allocation10 + $0x1]]
        %v619 = vstv %s618
        %v620 = vmul.f32 %v420, %v619
        %v621 = vmul.f32 %v421, %v619
        %v622 = vadd.f32 %v616, %v620
        %v623 = vadd.f32 %v617, %v621
        %s624 = sld [smem:[#allocation10 + $0x2]]
        %v625 = vstv %s624
        %v626 = vmul.f32 %v435, %v625
        %v627 = vmul.f32 %v436, %v625
        %v628 = vadd.f32 %v622, %v626
        %v629 = vadd.f32 %v623, %v627
        %s630 = sld [smem:[#allocation10 + $0x3]]
        %v631 = vstv %s630
        %v632 = vmul.f32 %v467, %v631
        %v633 = vmul.f32 %v468, %v631
        %v634 = vadd.f32 %v628, %v632
        %v635 = vadd.f32 %v629, %v633
        %s636 = sld [smem:[#allocation10 + $0x4]]
        %v637 = vstv %s636
        %v638 = vmul.f32 %v364, %v637
        %v639 = vmul.f32 %v365, %v637
        %v640 = vadd.f32 %v634, %v638
        %v641 = vadd.f32 %v635, %v639
        %s642 = sld [smem:[#allocation10 + $0x5]]
        %v643 = vstv %s642
        %v644 = vmul.f32 %v479, %v643
        %v645 = vmul.f32 %v480, %v643
        %v646 = vadd.f32 %v640, %v644
        %v647 = vadd.f32 %v641, %v645
        %s648 = sld [smem:[#allocation10 + $0x6]]
        %v649 = vstv %s648
        %v650 = vmul.f32 %v518, %v649
        %v651 = vmul.f32 %v519, %v649
        %v652 = vadd.f32 %v646, %v650
        %v653 = vadd.f32 %v647, %v651
        %s654 = sld [smem:[#allocation10 + $0x7]]
        %v655 = vstv %s654
        %v656 = vmul.f32 %v524, %v655
        %v657 = vmul.f32 %v525, %v655
        %v658 = vadd.f32 %v652, %v656
        %v659 = vadd.f32 %v653, %v657
        %s660 = sld [smem:[#allocation10 + $0x8]]
        %v661 = vstv %s660
        %v662 = vmul.f32 %v536, %v661
        %v663 = vmul.f32 %v537, %v661
        %v664 = vadd.f32 %v658, %v662
        %v665 = vadd.f32 %v659, %v663
        %s666 = sld [smem:[#allocation11]]
        %v667 = vstv %s666
        %v668 = vadd.f32 %v664, %v667
        %v669 = vadd.f32 %v665, %v667
        %v670 = vmax.f32 %v668, 0.0
        %v671 = vmax.f32 %v669, 0.0
        %674 = vrot.lane.b32.xlu0 %v670, 64
        %v675 = vpop.permute.xlu0 %674
        %676 = vrot.lane.b32.xlu0 %v671, 64
        %v677 = vpop.permute.xlu0 %676
        %vm680 = vcmask 654848
        %681 = vst.msk [vmem:[#allocation2] sm:$0xff] %vm680, %v675
        %682 = vst.msk [vmem:[#allocation2 + $0x8] sm:$0xff] %vm680, %v677
        %s683 = sld [smem:[#allocation10 + $0x9]]
        %v684 = vstv %s683
        %v685 = vmul.f32 %v412, %v684
        %v686 = vmul.f32 %v413, %v684
        %s687 = sld [smem:[#allocation10 + $0xa]]
        %v688 = vstv %s687
        %v689 = vmul.f32 %v420, %v688
        %v690 = vmul.f32 %v421, %v688
        %v691 = vadd.f32 %v685, %v689
        %v692 = vadd.f32 %v686, %v690
        %s693 = sld [smem:[#allocation10 + $0xb]]
        %v694 = vstv %s693
        %v695 = vmul.f32 %v435, %v694
        %v696 = vmul.f32 %v436, %v694
        %v697 = vadd.f32 %v691, %v695
        %v698 = vadd.f32 %v692, %v696
        %s699 = sld [smem:[#allocation10 + $0xc]]
        %v700 = vstv %s699
        %v701 = vmul.f32 %v467, %v700
        %v702 = vmul.f32 %v468, %v700
        %v703 = vadd.f32 %v697, %v701
        %v704 = vadd.f32 %v698, %v702
        %s705 = sld [smem:[#allocation10 + $0xd]]
        %v706 = vstv %s705
        %v707 = vmul.f32 %v364, %v706
        %v708 = vmul.f32 %v365, %v706
        %v709 = vadd.f32 %v703, %v707
        %v710 = vadd.f32 %v704, %v708
        %s711 = sld [smem:[#allocation10 + $0xe]]
        %v712 = vstv %s711
        %v713 = vmul.f32 %v479, %v712
        %v714 = vmul.f32 %v480, %v712
        %v715 = vadd.f32 %v709, %v713
        %v716 = vadd.f32 %v710, %v714
        %s717 = sld [smem:[#allocation10 + $0xf]]
        %v718 = vstv %s717
        %v719 = vmul.f32 %v518, %v718
        %v720 = vmul.f32 %v519, %v718
        %v721 = vadd.f32 %v715, %v719
        %v722 = vadd.f32 %v716, %v720
        %s723 = sld [smem:[#allocation10 + $0x10]]
        %v724 = vstv %s723
        %v725 = vmul.f32 %v524, %v724
        %v726 = vmul.f32 %v525, %v724
        %v727 = vadd.f32 %v721, %v725
        %v728 = vadd.f32 %v722, %v726
        %s729 = sld [smem:[#allocation10 + $0x11]]
        %v730 = vstv %s729
        %v731 = vmul.f32 %v536, %v730
        %v732 = vmul.f32 %v537, %v730
        %v733 = vadd.f32 %v727, %v731
        %v734 = vadd.f32 %v728, %v732
        %s735 = sld [smem:[#allocation11 + $0x1]]
        %v736 = vstv %s735
        %v737 = vadd.f32 %v733, %v736
        %v738 = vadd.f32 %v734, %v736
        %v739 = vmax.f32 %v737, 0.0
        %v740 = vmax.f32 %v738, 0.0
        %743 = vrot.lane.b32.xlu0 %v739, 80
        %v744 = vpop.permute.xlu0 %743
        %745 = vrot.lane.b32.xlu0 %v740, 80
        %v746 = vpop.permute.xlu0 %745
        %vm749 = vcmask 786048
        %750 = vst.msk [vmem:[#allocation2] sm:$0xff] %vm749, %v744
        %751 = vst.msk [vmem:[#allocation2 + $0x8] sm:$0xff] %vm749, %v746
        %s752 = sld [smem:[#allocation10 + $0x12]]
        %v753 = vstv %s752
        %v754 = vmul.f32 %v412, %v753
        %v755 = vmul.f32 %v413, %v753
        %s756 = sld [smem:[#allocation10 + $0x13]]
        %v757 = vstv %s756
        %v758 = vmul.f32 %v420, %v757
        %v759 = vmul.f32 %v421, %v757
        %v760 = vadd.f32 %v754, %v758
        %v761 = vadd.f32 %v755, %v759
        %s762 = sld [smem:[#allocation10 + $0x14]]
        %v763 = vstv %s762
        %v764 = vmul.f32 %v435, %v763
        %v765 = vmul.f32 %v436, %v763
        %v766 = vadd.f32 %v760, %v764
        %v767 = vadd.f32 %v761, %v765
        %s768 = sld [smem:[#allocation10 + $0x15]]
        %v769 = vstv %s768
        %v770 = vmul.f32 %v467, %v769
        %v771 = vmul.f32 %v468, %v769
        %v772 = vadd.f32 %v766, %v770
        %v773 = vadd.f32 %v767, %v771
        %s774 = sld [smem:[#allocation10 + $0x16]]
        %v775 = vstv %s774
        %v776 = vmul.f32 %v364, %v775
        %v777 = vmul.f32 %v365, %v775
        %v778 = vadd.f32 %v772, %v776
        %v779 = vadd.f32 %v773, %v777
        %s780 = sld [smem:[#allocation10 + $0x17]]
        %v781 = vstv %s780
        %v782 = vmul.f32 %v479, %v781
        %v783 = vmul.f32 %v480, %v781
        %v784 = vadd.f32 %v778, %v782
        %v785 = vadd.f32 %v779, %v783
        %s786 = sld [smem:[#allocation10 + $0x18]]
        %v787 = vstv %s786
        %v788 = vmul.f32 %v518, %v787
        %v789 = vmul.f32 %v519, %v787
        %v790 = vadd.f32 %v784, %v788
        %v791 = vadd.f32 %v785, %v789
        %s792 = sld [smem:[#allocation10 + $0x19]]
        %v793 = vstv %s792
        %v794 = vmul.f32 %v524, %v793
        %v795 = vmul.f32 %v525, %v793
        %v796 = vadd.f32 %v790, %v794
        %v797 = vadd.f32 %v791, %v795
        %s798 = sld [smem:[#allocation10 + $0x1a]]
        %v799 = vstv %s798
        %v800 = vmul.f32 %v536, %v799
        %v801 = vmul.f32 %v537, %v799
        %v802 = vadd.f32 %v796, %v800
        %v803 = vadd.f32 %v797, %v801
        %s804 = sld [smem:[#allocation11 + $0x2]]
        %v805 = vstv %s804
        %v806 = vadd.f32 %v802, %v805
        %v807 = vadd.f32 %v803, %v805
        %v808 = vmax.f32 %v806, 0.0
        %v809 = vmax.f32 %v807, 0.0
        %812 = vrot.lane.b32.xlu0 %v808, 96
        %v813 = vpop.permute.xlu0 %812
        %814 = vrot.lane.b32.xlu0 %v809, 96
        %v815 = vpop.permute.xlu0 %814
        %vm818 = vcmask 917248
        %819 = vst.msk [vmem:[#allocation2] sm:$0xff] %vm818, %v813
        %820 = vst.msk [vmem:[#allocation2 + $0x8] sm:$0xff] %vm818, %v815
        %s821 = sld [smem:[#allocation10 + $0x1b]]
        %v822 = vstv %s821
        %v823 = vmul.f32 %v412, %v822
        %v824 = vmul.f32 %v413, %v822
        %s825 = sld [smem:[#allocation10 + $0x1c]]
        %v826 = vstv %s825
        %v827 = vmul.f32 %v420, %v826
        %v828 = vmul.f32 %v421, %v826
        %v829 = vadd.f32 %v823, %v827
        %v830 = vadd.f32 %v824, %v828
        %s831 = sld [smem:[#allocation10 + $0x1d]]
        %v832 = vstv %s831
        %v833 = vmul.f32 %v435, %v832
        %v834 = vmul.f32 %v436, %v832
        %v835 = vadd.f32 %v829, %v833
        %v836 = vadd.f32 %v830, %v834
        %s837 = sld [smem:[#allocation10 + $0x1e]]
        %v838 = vstv %s837
        %v839 = vmul.f32 %v467, %v838
        %v840 = vmul.f32 %v468, %v838
        %v841 = vadd.f32 %v835, %v839
        %v842 = vadd.f32 %v836, %v840
        %s843 = sld [smem:[#allocation10 + $0x1f]]
        %v844 = vstv %s843
        %v845 = vmul.f32 %v364, %v844
        %v846 = vmul.f32 %v365, %v844
        %v847 = vadd.f32 %v841, %v845
        %v848 = vadd.f32 %v842, %v846
        %s849 = sld [smem:[#allocation10 + $0x20]]
        %v850 = vstv %s849
        %v851 = vmul.f32 %v479, %v850
        %v852 = vmul.f32 %v480, %v850
        %v853 = vadd.f32 %v847, %v851
        %v854 = vadd.f32 %v848, %v852
        %s855 = sld [smem:[#allocation10 + $0x21]]
        %v856 = vstv %s855
        %v857 = vmul.f32 %v518, %v856
        %v858 = vmul.f32 %v519, %v856
        %v859 = vadd.f32 %v853, %v857
        %v860 = vadd.f32 %v854, %v858
        %s861 = sld [smem:[#allocation10 + $0x22]]
        %v862 = vstv %s861
        %v863 = vmul.f32 %v524, %v862
        %v864 = vmul.f32 %v525, %v862
        %v865 = vadd.f32 %v859, %v863
        %v866 = vadd.f32 %v860, %v864
        %s867 = sld [smem:[#allocation10 + $0x23]]
        %v868 = vstv %s867
        %v869 = vmul.f32 %v536, %v868
        %v870 = vmul.f32 %v537, %v868
        %v871 = vadd.f32 %v865, %v869
        %v872 = vadd.f32 %v866, %v870
        %s873 = sld [smem:[#allocation11 + $0x3]]
        %v874 = vstv %s873
        %v875 = vadd.f32 %v871, %v874
        %v876 = vadd.f32 %v872, %v874
        %v877 = vmax.f32 %v875, 0.0
        %v878 = vmax.f32 %v876, 0.0
        %881 = vrot.lane.b32.xlu0 %v877, 112
        %v882 = vpop.permute.xlu0 %881
        %883 = vrot.lane.b32.xlu0 %v878, 112
        %v884 = vpop.permute.xlu0 %883
        %vm887 = vcmask 1048448
        %888 = vst.msk [vmem:[#allocation2] sm:$0xff] %vm887, %v882
        %889 = vst.msk [vmem:[#allocation2 + $0x8] sm:$0xff] %vm887, %v884
        %v890 = vld [vmem:[#allocation2] sm:$0xff]
        %v891 = vld [vmem:[#allocation2 + $0x8] sm:$0xff]
        %v892 = vld [vmem:[%s6] sm:$0x1]
        %v893 = vld [vmem:[#allocation13] sm:$0xff]
        %v894 = vld [vmem:[#allocation13 + $0x8] sm:$0xff]
        %v895 = vld [vmem:[#allocation13 + $0x10] sm:$0xff]
        %v896 = vld [vmem:[#allocation13 + $0x18] sm:$0xff]
        %v897 = vld [vmem:[#allocation13 + $0x20] sm:$0xff]
        %v898 = vld [vmem:[#allocation13 + $0x28] sm:$0xff]
        %v899 = vld [vmem:[#allocation13 + $0x30] sm:$0xff]
        %v900 = vld [vmem:[#allocation13 + $0x38] sm:$0xff]
        %v901 = vld [vmem:[#allocation13 + $0x40] sm:$0xff]
        %v902 = vld [vmem:[#allocation13 + $0x48] sm:$0xff]
        %v903 = vld [vmem:[#allocation13 + $0x50] sm:$0xff]
        %v904 = vld [vmem:[#allocation13 + $0x58] sm:$0xff]
        %v905 = vld [vmem:[#allocation13 + $0x60] sm:$0xff]
        %v906 = vld [vmem:[#allocation13 + $0x68] sm:$0xff]
        %v907 = vld [vmem:[#allocation13 + $0x70] sm:$0xff]
        %v908 = vld [vmem:[#allocation13 + $0x78] sm:$0xff]
        %909 = vmatprep.subr.mxu0 0.0
        %910 = vmatpush1.msra.mxu0 %v893
        %911 = vmatprep.subr.mxu0 0.0
        %912 = vmatpush1.msra.mxu0 %v894
        %913 = vmatprep.subr.mxu0 0.0
        %914 = vmatpush1.msra.mxu0 %v895
        %915 = vmatprep.subr.mxu0 0.0
        %916 = vmatpush1.msra.mxu0 %v896
        %917 = vmatprep.subr.mxu0 0.0
        %918 = vmatpush1.msra.mxu0 %v897
        %919 = vmatprep.subr.mxu0 0.0
        %920 = vmatpush1.msra.mxu0 %v898
        %921 = vmatprep.subr.mxu0 0.0
        %922 = vmatpush1.msra.mxu0 %v899
        %923 = vmatprep.subr.mxu0 0.0
        %924 = vmatpush1.msra.mxu0 %v900
        %925 = vmatprep.subr.mxu0 0.0
        %926 = vmatpush1.msra.mxu0 %v901
        %927 = vmatprep.subr.mxu0 0.0
        %928 = vmatpush1.msra.mxu0 %v902
        %929 = vmatprep.subr.mxu0 0.0
        %930 = vmatpush1.msra.mxu0 %v903
        %931 = vmatprep.subr.mxu0 0.0
        %932 = vmatpush1.msra.mxu0 %v904
        %933 = vmatprep.subr.mxu0 0.0
        %934 = vmatpush1.msra.mxu0 %v905
        %935 = vmatprep.subr.mxu0 0.0
        %936 = vmatpush1.msra.mxu0 %v906
        %937 = vmatprep.subr.mxu0 0.0
        %938 = vmatpush1.msra.mxu0 %v907
        %939 = vmatprep.subr.mxu0 0.0
        %940 = vmatpush1.msra.mxu0 %v908
        %941 = vmatprep.subr.mxu0 0.0
        %942 = vmatpush1.msra.mxu0 0.0
        %943 = vmatprep.subr.mxu0 0.0
        %944 = vmatpush1.msra.mxu0 0.0
        %945 = vmatprep.subr.mxu0 0.0
        %946 = vmatpush1.msra.mxu0 0.0
        %947 = vmatprep.subr.mxu0 0.0
        %948 = vmatpush1.msra.mxu0 0.0
        %949 = vmatprep.subr.mxu0 0.0
        %950 = vmatpush1.msra.mxu0 0.0
        %951 = vmatprep.subr.mxu0 0.0
        %952 = vmatpush1.msra.mxu0 0.0
        %953 = vmatprep.subr.mxu0 0.0
        %954 = vmatpush1.msra.mxu0 0.0
        %955 = vmatprep.subr.mxu0 0.0
        %956 = vmatpush1.msra.mxu0 0.0
        %957 = vmatprep.subr.mxu0 0.0
        %958 = vmatpush1.msra.mxu0 0.0
        %959 = vmatprep.subr.mxu0 0.0
        %960 = vmatpush1.msra.mxu0 0.0
        %961 = vmatprep.subr.mxu0 0.0
        %962 = vmatpush1.msra.mxu0 0.0
        %963 = vmatprep.subr.mxu0 0.0
        %964 = vmatpush1.msra.mxu0 0.0
        %965 = vmatprep.subr.mxu0 0.0
        %966 = vmatpush1.msra.mxu0 0.0
        %967 = vmatprep.subr.mxu0 0.0
        %968 = vmatpush1.msra.mxu0 0.0
        %969 = vmatprep.subr.mxu0 0.0
        %970 = vmatpush1.msra.mxu0 0.0
        %971 = vmatprep.subr.mxu0 0.0
        %972 = vmatpush1.msra.mxu0 0.0
        %973 = vmatprep.mubr.f32.mxu0 0.0
        %974 = vmatmul.mubr.f32.gmra.mrb[0].mxu0 %v890
        %v975 = vpop.f32.mrb[0].mxu0
        %v976 = vadd.f32 0.0, %v975
        %v977 = vpop.f32.mrb[0].mxu0
        %978 = vdwg.mxu0
        %v979 = vadd.f32 %v892, %v976
        %s980 = scalar_lea.vmem [#allocation13], 128
        %v981 = vld [vmem:[%s980] sm:$0xff]
        %v982 = vld [vmem:[%s980 + $0x8] sm:$0xff]
        %v983 = vld [vmem:[%s980 + $0x10] sm:$0xff]
        %v984 = vld [vmem:[%s980 + $0x18] sm:$0xff]
        %v985 = vld [vmem:[%s980 + $0x20] sm:$0xff]
        %v986 = vld [vmem:[%s980 + $0x28] sm:$0xff]
        %v987 = vld [vmem:[%s980 + $0x30] sm:$0xff]
        %v988 = vld [vmem:[%s980 + $0x38] sm:$0xff]
        %v989 = vld [vmem:[%s980 + $0x40] sm:$0xff]
        %v990 = vld [vmem:[%s980 + $0x48] sm:$0xff]
        %v991 = vld [vmem:[%s980 + $0x50] sm:$0xff]
        %v992 = vld [vmem:[%s980 + $0x58] sm:$0xff]
        %v993 = vld [vmem:[%s980 + $0x60] sm:$0xff]
        %v994 = vld [vmem:[%s980 + $0x68] sm:$0xff]
        %v995 = vld [vmem:[%s980 + $0x70] sm:$0xff]
        %v996 = vld [vmem:[%s980 + $0x78] sm:$0xff]
        %v998 = vrot.slane %v890, 1
        %1000 = vmatprep.subr.mxu0 0.0
        %1001 = vmatpush1.msra.mxu0 %v981
        %1002 = vmatprep.subr.mxu0 0.0
        %1003 = vmatpush1.msra.mxu0 %v982
        %1004 = vmatprep.subr.mxu0 0.0
        %1005 = vmatpush1.msra.mxu0 %v983
        %1006 = vmatprep.subr.mxu0 0.0
        %1007 = vmatpush1.msra.mxu0 %v984
        %1008 = vmatprep.subr.mxu0 0.0
        %1009 = vmatpush1.msra.mxu0 %v985
        %1010 = vmatprep.subr.mxu0 0.0
        %1011 = vmatpush1.msra.mxu0 %v986
        %1012 = vmatprep.subr.mxu0 0.0
        %1013 = vmatpush1.msra.mxu0 %v987
        %1014 = vmatprep.subr.mxu0 0.0
        %1015 = vmatpush1.msra.mxu0 %v988
        %1016 = vmatprep.subr.mxu0 0.0
        %1017 = vmatpush1.msra.mxu0 %v989
        %1018 = vmatprep.subr.mxu0 0.0
        %1019 = vmatpush1.msra.mxu0 %v990
        %1020 = vmatprep.subr.mxu0 0.0
        %1021 = vmatpush1.msra.mxu0 %v991
        %1022 = vmatprep.subr.mxu0 0.0
        %1023 = vmatpush1.msra.mxu0 %v992
        %1024 = vmatprep.subr.mxu0 0.0
        %1025 = vmatpush1.msra.mxu0 %v993
        %1026 = vmatprep.subr.mxu0 0.0
        %1027 = vmatpush1.msra.mxu0 %v994
        %1028 = vmatprep.subr.mxu0 0.0
        %1029 = vmatpush1.msra.mxu0 %v995
        %1030 = vmatprep.subr.mxu0 0.0
        %1031 = vmatpush1.msra.mxu0 %v996
        %1032 = vmatprep.subr.mxu0 0.0
        %1033 = vmatpush1.msra.mxu0 0.0
        %1034 = vmatprep.subr.mxu0 0.0
        %1035 = vmatpush1.msra.mxu0 0.0
        %1036 = vmatprep.subr.mxu0 0.0
        %1037 = vmatpush1.msra.mxu0 0.0
        %1038 = vmatprep.subr.mxu0 0.0
        %1039 = vmatpush1.msra.mxu0 0.0
        %1040 = vmatprep.subr.mxu0 0.0
        %1041 = vmatpush1.msra.mxu0 0.0
        %1042 = vmatprep.subr.mxu0 0.0
        %1043 = vmatpush1.msra.mxu0 0.0
        %1044 = vmatprep.subr.mxu0 0.0
        %1045 = vmatpush1.msra.mxu0 0.0
        %1046 = vmatprep.subr.mxu0 0.0
        %1047 = vmatpush1.msra.mxu0 0.0
        %1048 = vmatprep.subr.mxu0 0.0
        %1049 = vmatpush1.msra.mxu0 0.0
        %1050 = vmatprep.subr.mxu0 0.0
        %1051 = vmatpush1.msra.mxu0 0.0
        %1052 = vmatprep.subr.mxu0 0.0
        %1053 = vmatpush1.msra.mxu0 0.0
        %1054 = vmatprep.subr.mxu0 0.0
        %1055 = vmatpush1.msra.mxu0 0.0
        %1056 = vmatprep.subr.mxu0 0.0
        %1057 = vmatpush1.msra.mxu0 0.0
        %1058 = vmatprep.subr.mxu0 0.0
        %1059 = vmatpush1.msra.mxu0 0.0
        %1060 = vmatprep.subr.mxu0 0.0
        %1061 = vmatpush1.msra.mxu0 0.0
        %1062 = vmatprep.subr.mxu0 0.0
        %1063 = vmatpush1.msra.mxu0 0.0
        %1064 = vmatprep.mubr.f32.mxu0 0.0
        %1065 = vmatmul.mubr.f32.gmra.mrb[0].mxu0 %v998
        %v1066 = vpop.f32.mrb[0].mxu0
        %v1067 = vadd.f32 0.0, %v1066
        %v1068 = vpop.f32.mrb[0].mxu0
        %1069 = vdwg.mxu0
        %v1070 = vadd.f32 %v979, %v1067
        %s1071 = scalar_lea.vmem [#allocation13], 256
        %v1072 = vld [vmem:[%s1071] sm:$0xff]
        %v1073 = vld [vmem:[%s1071 + $0x8] sm:$0xff]
        %v1074 = vld [vmem:[%s1071 + $0x10] sm:$0xff]
        %v1075 = vld [vmem:[%s1071 + $0x18] sm:$0xff]
        %v1076 = vld [vmem:[%s1071 + $0x20] sm:$0xff]
        %v1077 = vld [vmem:[%s1071 + $0x28] sm:$0xff]
        %v1078 = vld [vmem:[%s1071 + $0x30] sm:$0xff]
        %v1079 = vld [vmem:[%s1071 + $0x38] sm:$0xff]
        %v1080 = vld [vmem:[%s1071 + $0x40] sm:$0xff]
        %v1081 = vld [vmem:[%s1071 + $0x48] sm:$0xff]
        %v1082 = vld [vmem:[%s1071 + $0x50] sm:$0xff]
        %v1083 = vld [vmem:[%s1071 + $0x58] sm:$0xff]
        %v1084 = vld [vmem:[%s1071 + $0x60] sm:$0xff]
        %v1085 = vld [vmem:[%s1071 + $0x68] sm:$0xff]
        %v1086 = vld [vmem:[%s1071 + $0x70] sm:$0xff]
        %v1087 = vld [vmem:[%s1071 + $0x78] sm:$0xff]
        %v1088 = vrot.slane %v890, 2
        %1090 = vmatprep.subr.mxu0 0.0
        %1091 = vmatpush1.msra.mxu0 %v1072
        %1092 = vmatprep.subr.mxu0 0.0
        %1093 = vmatpush1.msra.mxu0 %v1073
        %1094 = vmatprep.subr.mxu0 0.0
        %1095 = vmatpush1.msra.mxu0 %v1074
        %1096 = vmatprep.subr.mxu0 0.0
        %1097 = vmatpush1.msra.mxu0 %v1075
        %1098 = vmatprep.subr.mxu0 0.0
        %1099 = vmatpush1.msra.mxu0 %v1076
        %1100 = vmatprep.subr.mxu0 0.0
        %1101 = vmatpush1.msra.mxu0 %v1077
        %1102 = vmatprep.subr.mxu0 0.0
        %1103 = vmatpush1.msra.mxu0 %v1078
        %1104 = vmatprep.subr.mxu0 0.0
        %1105 = vmatpush1.msra.mxu0 %v1079
        %1106 = vmatprep.subr.mxu0 0.0
        %1107 = vmatpush1.msra.mxu0 %v1080
        %1108 = vmatprep.subr.mxu0 0.0
        %1109 = vmatpush1.msra.mxu0 %v1081
        %1110 = vmatprep.subr.mxu0 0.0
        %1111 = vmatpush1.msra.mxu0 %v1082
        %1112 = vmatprep.subr.mxu0 0.0
        %1113 = vmatpush1.msra.mxu0 %v1083
        %1114 = vmatprep.subr.mxu0 0.0
        %1115 = vmatpush1.msra.mxu0 %v1084
        %1116 = vmatprep.subr.mxu0 0.0
        %1117 = vmatpush1.msra.mxu0 %v1085
        %1118 = vmatprep.subr.mxu0 0.0
        %1119 = vmatpush1.msra.mxu0 %v1086
        %1120 = vmatprep.subr.mxu0 0.0
        %1121 = vmatpush1.msra.mxu0 %v1087
        %1122 = vmatprep.subr.mxu0 0.0
        %1123 = vmatpush1.msra.mxu0 0.0
        %1124 = vmatprep.subr.mxu0 0.0
        %1125 = vmatpush1.msra.mxu0 0.0
        %1126 = vmatprep.subr.mxu0 0.0
        %1127 = vmatpush1.msra.mxu0 0.0
        %1128 = vmatprep.subr.mxu0 0.0
        %1129 = vmatpush1.msra.mxu0 0.0
        %1130 = vmatprep.subr.mxu0 0.0
        %1131 = vmatpush1.msra.mxu0 0.0
        %1132 = vmatprep.subr.mxu0 0.0
        %1133 = vmatpush1.msra.mxu0 0.0
        %1134 = vmatprep.subr.mxu0 0.0
        %1135 = vmatpush1.msra.mxu0 0.0
        %1136 = vmatprep.subr.mxu0 0.0
        %1137 = vmatpush1.msra.mxu0 0.0
        %1138 = vmatprep.subr.mxu0 0.0
        %1139 = vmatpush1.msra.mxu0 0.0
        %1140 = vmatprep.subr.mxu0 0.0
        %1141 = vmatpush1.msra.mxu0 0.0
        %1142 = vmatprep.subr.mxu0 0.0
        %1143 = vmatpush1.msra.mxu0 0.0
        %1144 = vmatprep.subr.mxu0 0.0
        %1145 = vmatpush1.msra.mxu0 0.0
        %1146 = vmatprep.subr.mxu0 0.0
        %1147 = vmatpush1.msra.mxu0 0.0
        %1148 = vmatprep.subr.mxu0 0.0
        %1149 = vmatpush1.msra.mxu0 0.0
        %1150 = vmatprep.subr.mxu0 0.0
        %1151 = vmatpush1.msra.mxu0 0.0
        %1152 = vmatprep.subr.mxu0 0.0
        %1153 = vmatpush1.msra.mxu0 0.0
        %1154 = vmatprep.mubr.f32.mxu0 0.0
        %1155 = vmatmul.mubr.f32.gmra.mrb[0].mxu0 %v1088
        %v1156 = vpop.f32.mrb[0].mxu0
        %v1157 = vadd.f32 0.0, %v1156
        %v1158 = vpop.f32.mrb[0].mxu0
        %1159 = vdwg.mxu0
        %v1160 = vadd.f32 %v1070, %v1157
        %s1161 = scalar_lea.vmem [#allocation13], 384
        %v1162 = vld [vmem:[%s1161] sm:$0xff]
        %v1163 = vld [vmem:[%s1161 + $0x8] sm:$0xff]
        %v1164 = vld [vmem:[%s1161 + $0x10] sm:$0xff]
        %v1165 = vld [vmem:[%s1161 + $0x18] sm:$0xff]
        %v1166 = vld [vmem:[%s1161 + $0x20] sm:$0xff]
        %v1167 = vld [vmem:[%s1161 + $0x28] sm:$0xff]
        %v1168 = vld [vmem:[%s1161 + $0x30] sm:$0xff]
        %v1169 = vld [vmem:[%s1161 + $0x38] sm:$0xff]
        %v1170 = vld [vmem:[%s1161 + $0x40] sm:$0xff]
        %v1171 = vld [vmem:[%s1161 + $0x48] sm:$0xff]
        %v1172 = vld [vmem:[%s1161 + $0x50] sm:$0xff]
        %v1173 = vld [vmem:[%s1161 + $0x58] sm:$0xff]
        %v1174 = vld [vmem:[%s1161 + $0x60] sm:$0xff]
        %v1175 = vld [vmem:[%s1161 + $0x68] sm:$0xff]
        %v1176 = vld [vmem:[%s1161 + $0x70] sm:$0xff]
        %v1177 = vld [vmem:[%s1161 + $0x78] sm:$0xff]
        %v1178 = vrot.slane %v890, 3
        %1180 = vmatprep.subr.mxu0 0.0
        %1181 = vmatpush1.msra.mxu0 %v1162
        %1182 = vmatprep.subr.mxu0 0.0
        %1183 = vmatpush1.msra.mxu0 %v1163
        %1184 = vmatprep.subr.mxu0 0.0
        %1185 = vmatpush1.msra.mxu0 %v1164
        %1186 = vmatprep.subr.mxu0 0.0
        %1187 = vmatpush1.msra.mxu0 %v1165
        %1188 = vmatprep.subr.mxu0 0.0
        %1189 = vmatpush1.msra.mxu0 %v1166
        %1190 = vmatprep.subr.mxu0 0.0
        %1191 = vmatpush1.msra.mxu0 %v1167
        %1192 = vmatprep.subr.mxu0 0.0
        %1193 = vmatpush1.msra.mxu0 %v1168
        %1194 = vmatprep.subr.mxu0 0.0
        %1195 = vmatpush1.msra.mxu0 %v1169
        %1196 = vmatprep.subr.mxu0 0.0
        %1197 = vmatpush1.msra.mxu0 %v1170
        %1198 = vmatprep.subr.mxu0 0.0
        %1199 = vmatpush1.msra.mxu0 %v1171
        %1200 = vmatprep.subr.mxu0 0.0
        %1201 = vmatpush1.msra.mxu0 %v1172
        %1202 = vmatprep.subr.mxu0 0.0
        %1203 = vmatpush1.msra.mxu0 %v1173
        %1204 = vmatprep.subr.mxu0 0.0
        %1205 = vmatpush1.msra.mxu0 %v1174
        %1206 = vmatprep.subr.mxu0 0.0
        %1207 = vmatpush1.msra.mxu0 %v1175
        %1208 = vmatprep.subr.mxu0 0.0
        %1209 = vmatpush1.msra.mxu0 %v1176
        %1210 = vmatprep.subr.mxu0 0.0
        %1211 = vmatpush1.msra.mxu0 %v1177
        %1212 = vmatprep.subr.mxu0 0.0
        %1213 = vmatpush1.msra.mxu0 0.0
        %1214 = vmatprep.subr.mxu0 0.0
        %1215 = vmatpush1.msra.mxu0 0.0
        %1216 = vmatprep.subr.mxu0 0.0
        %1217 = vmatpush1.msra.mxu0 0.0
        %1218 = vmatprep.subr.mxu0 0.0
        %1219 = vmatpush1.msra.mxu0 0.0
        %1220 = vmatprep.subr.mxu0 0.0
        %1221 = vmatpush1.msra.mxu0 0.0
        %1222 = vmatprep.subr.mxu0 0.0
        %1223 = vmatpush1.msra.mxu0 0.0
        %1224 = vmatprep.subr.mxu0 0.0
        %1225 = vmatpush1.msra.mxu0 0.0
        %1226 = vmatprep.subr.mxu0 0.0
        %1227 = vmatpush1.msra.mxu0 0.0
        %1228 = vmatprep.subr.mxu0 0.0
        %1229 = vmatpush1.msra.mxu0 0.0
        %1230 = vmatprep.subr.mxu0 0.0
        %1231 = vmatpush1.msra.mxu0 0.0
        %1232 = vmatprep.subr.mxu0 0.0
        %1233 = vmatpush1.msra.mxu0 0.0
        %1234 = vmatprep.subr.mxu0 0.0
        %1235 = vmatpush1.msra.mxu0 0.0
        %1236 = vmatprep.subr.mxu0 0.0
        %1237 = vmatpush1.msra.mxu0 0.0
        %1238 = vmatprep.subr.mxu0 0.0
        %1239 = vmatpush1.msra.mxu0 0.0
        %1240 = vmatprep.subr.mxu0 0.0
        %1241 = vmatpush1.msra.mxu0 0.0
        %1242 = vmatprep.subr.mxu0 0.0
        %1243 = vmatpush1.msra.mxu0 0.0
        %1244 = vmatprep.mubr.f32.mxu0 0.0
        %1245 = vmatmul.mubr.f32.gmra.mrb[0].mxu0 %v1178
        %v1246 = vpop.f32.mrb[0].mxu0
        %v1247 = vadd.f32 0.0, %v1246
        %v1248 = vpop.f32.mrb[0].mxu0
        %1249 = vdwg.mxu0
        %v1250 = vadd.f32 %v1160, %v1247
        %s1251 = scalar_lea.vmem [#allocation13], 512
        %v1252 = vld [vmem:[%s1251] sm:$0xff]
        %v1253 = vld [vmem:[%s1251 + $0x8] sm:$0xff]
        %v1254 = vld [vmem:[%s1251 + $0x10] sm:$0xff]
        %v1255 = vld [vmem:[%s1251 + $0x18] sm:$0xff]
        %v1256 = vld [vmem:[%s1251 + $0x20] sm:$0xff]
        %v1257 = vld [vmem:[%s1251 + $0x28] sm:$0xff]
        %v1258 = vld [vmem:[%s1251 + $0x30] sm:$0xff]
        %v1259 = vld [vmem:[%s1251 + $0x38] sm:$0xff]
        %v1260 = vld [vmem:[%s1251 + $0x40] sm:$0xff]
        %v1261 = vld [vmem:[%s1251 + $0x48] sm:$0xff]
        %v1262 = vld [vmem:[%s1251 + $0x50] sm:$0xff]
        %v1263 = vld [vmem:[%s1251 + $0x58] sm:$0xff]
        %v1264 = vld [vmem:[%s1251 + $0x60] sm:$0xff]
        %v1265 = vld [vmem:[%s1251 + $0x68] sm:$0xff]
        %v1266 = vld [vmem:[%s1251 + $0x70] sm:$0xff]
        %v1267 = vld [vmem:[%s1251 + $0x78] sm:$0xff]
        %v1268 = vrot.slane %v890, 4
        %1270 = vmatprep.subr.mxu0 0.0
        %1271 = vmatpush1.msra.mxu0 %v1252
        %1272 = vmatprep.subr.mxu0 0.0
        %1273 = vmatpush1.msra.mxu0 %v1253
        %1274 = vmatprep.subr.mxu0 0.0
        %1275 = vmatpush1.msra.mxu0 %v1254
        %1276 = vmatprep.subr.mxu0 0.0
        %1277 = vmatpush1.msra.mxu0 %v1255
        %1278 = vmatprep.subr.mxu0 0.0
        %1279 = vmatpush1.msra.mxu0 %v1256
        %1280 = vmatprep.subr.mxu0 0.0
        %1281 = vmatpush1.msra.mxu0 %v1257
        %1282 = vmatprep.subr.mxu0 0.0
        %1283 = vmatpush1.msra.mxu0 %v1258
        %1284 = vmatprep.subr.mxu0 0.0
        %1285 = vmatpush1.msra.mxu0 %v1259
        %1286 = vmatprep.subr.mxu0 0.0
        %1287 = vmatpush1.msra.mxu0 %v1260
        %1288 = vmatprep.subr.mxu0 0.0
        %1289 = vmatpush1.msra.mxu0 %v1261
        %1290 = vmatprep.subr.mxu0 0.0
        %1291 = vmatpush1.msra.mxu0 %v1262
        %1292 = vmatprep.subr.mxu0 0.0
        %1293 = vmatpush1.msra.mxu0 %v1263
        %1294 = vmatprep.subr.mxu0 0.0
        %1295 = vmatpush1.msra.mxu0 %v1264
        %1296 = vmatprep.subr.mxu0 0.0
        %1297 = vmatpush1.msra.mxu0 %v1265
        %1298 = vmatprep.subr.mxu0 0.0
        %1299 = vmatpush1.msra.mxu0 %v1266
        %1300 = vmatprep.subr.mxu0 0.0
        %1301 = vmatpush1.msra.mxu0 %v1267
        %1302 = vmatprep.subr.mxu0 0.0
        %1303 = vmatpush1.msra.mxu0 0.0
        %1304 = vmatprep.subr.mxu0 0.0
        %1305 = vmatpush1.msra.mxu0 0.0
        %1306 = vmatprep.subr.mxu0 0.0
        %1307 = vmatpush1.msra.mxu0 0.0
        %1308 = vmatprep.subr.mxu0 0.0
        %1309 = vmatpush1.msra.mxu0 0.0
        %1310 = vmatprep.subr.mxu0 0.0
        %1311 = vmatpush1.msra.mxu0 0.0
        %1312 = vmatprep.subr.mxu0 0.0
        %1313 = vmatpush1.msra.mxu0 0.0
        %1314 = vmatprep.subr.mxu0 0.0
        %1315 = vmatpush1.msra.mxu0 0.0
        %1316 = vmatprep.subr.mxu0 0.0
        %1317 = vmatpush1.msra.mxu0 0.0
        %1318 = vmatprep.subr.mxu0 0.0
        %1319 = vmatpush1.msra.mxu0 0.0
        %1320 = vmatprep.subr.mxu0 0.0
        %1321 = vmatpush1.msra.mxu0 0.0
        %1322 = vmatprep.subr.mxu0 0.0
        %1323 = vmatpush1.msra.mxu0 0.0
        %1324 = vmatprep.subr.mxu0 0.0
        %1325 = vmatpush1.msra.mxu0 0.0
        %1326 = vmatprep.subr.mxu0 0.0
        %1327 = vmatpush1.msra.mxu0 0.0
        %1328 = vmatprep.subr.mxu0 0.0
        %1329 = vmatpush1.msra.mxu0 0.0
        %1330 = vmatprep.subr.mxu0 0.0
        %1331 = vmatpush1.msra.mxu0 0.0
        %1332 = vmatprep.subr.mxu0 0.0
        %1333 = vmatpush1.msra.mxu0 0.0
        %1334 = vmatprep.mubr.f32.mxu0 0.0
        %1335 = vmatmul.mubr.f32.gmra.mrb[0].mxu0 %v1268
        %v1336 = vpop.f32.mrb[0].mxu0
        %v1337 = vadd.f32 0.0, %v1336
        %v1338 = vpop.f32.mrb[0].mxu0
        %1339 = vdwg.mxu0
        %v1340 = vadd.f32 %v1250, %v1337
        %s1341 = scalar_lea.vmem [#allocation13], 640
        %v1342 = vld [vmem:[%s1341] sm:$0xff]
        %v1343 = vld [vmem:[%s1341 + $0x8] sm:$0xff]
        %v1344 = vld [vmem:[%s1341 + $0x10] sm:$0xff]
        %v1345 = vld [vmem:[%s1341 + $0x18] sm:$0xff]
        %v1346 = vld [vmem:[%s1341 + $0x20] sm:$0xff]
        %v1347 = vld [vmem:[%s1341 + $0x28] sm:$0xff]
        %v1348 = vld [vmem:[%s1341 + $0x30] sm:$0xff]
        %v1349 = vld [vmem:[%s1341 + $0x38] sm:$0xff]
        %v1350 = vld [vmem:[%s1341 + $0x40] sm:$0xff]
        %v1351 = vld [vmem:[%s1341 + $0x48] sm:$0xff]
        %v1352 = vld [vmem:[%s1341 + $0x50] sm:$0xff]
        %v1353 = vld [vmem:[%s1341 + $0x58] sm:$0xff]
        %v1354 = vld [vmem:[%s1341 + $0x60] sm:$0xff]
        %v1355 = vld [vmem:[%s1341 + $0x68] sm:$0xff]
        %v1356 = vld [vmem:[%s1341 + $0x70] sm:$0xff]
        %v1357 = vld [vmem:[%s1341 + $0x78] sm:$0xff]
        %v1358 = vrot.slane %v890, 5
        %1360 = vmatprep.subr.mxu0 0.0
        %1361 = vmatpush1.msra.mxu0 %v1342
        %1362 = vmatprep.subr.mxu0 0.0
        %1363 = vmatpush1.msra.mxu0 %v1343
        %1364 = vmatprep.subr.mxu0 0.0
        %1365 = vmatpush1.msra.mxu0 %v1344
        %1366 = vmatprep.subr.mxu0 0.0
        %1367 = vmatpush1.msra.mxu0 %v1345
        %1368 = vmatprep.subr.mxu0 0.0
        %1369 = vmatpush1.msra.mxu0 %v1346
        %1370 = vmatprep.subr.mxu0 0.0
        %1371 = vmatpush1.msra.mxu0 %v1347
        %1372 = vmatprep.subr.mxu0 0.0
        %1373 = vmatpush1.msra.mxu0 %v1348
        %1374 = vmatprep.subr.mxu0 0.0
        %1375 = vmatpush1.msra.mxu0 %v1349
        %1376 = vmatprep.subr.mxu0 0.0
        %1377 = vmatpush1.msra.mxu0 %v1350
        %1378 = vmatprep.subr.mxu0 0.0
        %1379 = vmatpush1.msra.mxu0 %v1351
        %1380 = vmatprep.subr.mxu0 0.0
        %1381 = vmatpush1.msra.mxu0 %v1352
        %1382 = vmatprep.subr.mxu0 0.0
        %1383 = vmatpush1.msra.mxu0 %v1353
        %1384 = vmatprep.subr.mxu0 0.0
        %1385 = vmatpush1.msra.mxu0 %v1354
        %1386 = vmatprep.subr.mxu0 0.0
        %1387 = vmatpush1.msra.mxu0 %v1355
        %1388 = vmatprep.subr.mxu0 0.0
        %1389 = vmatpush1.msra.mxu0 %v1356
        %1390 = vmatprep.subr.mxu0 0.0
        %1391 = vmatpush1.msra.mxu0 %v1357
        %1392 = vmatprep.subr.mxu0 0.0
        %1393 = vmatpush1.msra.mxu0 0.0
        %1394 = vmatprep.subr.mxu0 0.0
        %1395 = vmatpush1.msra.mxu0 0.0
        %1396 = vmatprep.subr.mxu0 0.0
        %1397 = vmatpush1.msra.mxu0 0.0
        %1398 = vmatprep.subr.mxu0 0.0
        %1399 = vmatpush1.msra.mxu0 0.0
        %1400 = vmatprep.subr.mxu0 0.0
        %1401 = vmatpush1.msra.mxu0 0.0
        %1402 = vmatprep.subr.mxu0 0.0
        %1403 = vmatpush1.msra.mxu0 0.0
        %1404 = vmatprep.subr.mxu0 0.0
        %1405 = vmatpush1.msra.mxu0 0.0
        %1406 = vmatprep.subr.mxu0 0.0
        %1407 = vmatpush1.msra.mxu0 0.0
        %1408 = vmatprep.subr.mxu0 0.0
        %1409 = vmatpush1.msra.mxu0 0.0
        %1410 = vmatprep.subr.mxu0 0.0
        %1411 = vmatpush1.msra.mxu0 0.0
        %1412 = vmatprep.subr.mxu0 0.0
        %1413 = vmatpush1.msra.mxu0 0.0
        %1414 = vmatprep.subr.mxu0 0.0
        %1415 = vmatpush1.msra.mxu0 0.0
        %1416 = vmatprep.subr.mxu0 0.0
        %1417 = vmatpush1.msra.mxu0 0.0
        %1418 = vmatprep.subr.mxu0 0.0
        %1419 = vmatpush1.msra.mxu0 0.0
        %1420 = vmatprep.subr.mxu0 0.0
        %1421 = vmatpush1.msra.mxu0 0.0
        %1422 = vmatprep.subr.mxu0 0.0
        %1423 = vmatpush1.msra.mxu0 0.0
        %1424 = vmatprep.mubr.f32.mxu0 0.0
        %1425 = vmatmul.mubr.f32.gmra.mrb[0].mxu0 %v1358
        %v1426 = vpop.f32.mrb[0].mxu0
        %v1427 = vadd.f32 0.0, %v1426
        %v1428 = vpop.f32.mrb[0].mxu0
        %1429 = vdwg.mxu0
        %v1430 = vadd.f32 %v1340, %v1427
        %s1431 = scalar_lea.vmem [#allocation13], 768
        %v1432 = vld [vmem:[%s1431] sm:$0xff]
        %v1433 = vld [vmem:[%s1431 + $0x8] sm:$0xff]
        %v1434 = vld [vmem:[%s1431 + $0x10] sm:$0xff]
        %v1435 = vld [vmem:[%s1431 + $0x18] sm:$0xff]
        %v1436 = vld [vmem:[%s1431 + $0x20] sm:$0xff]
        %v1437 = vld [vmem:[%s1431 + $0x28] sm:$0xff]
        %v1438 = vld [vmem:[%s1431 + $0x30] sm:$0xff]
        %v1439 = vld [vmem:[%s1431 + $0x38] sm:$0xff]
        %v1440 = vld [vmem:[%s1431 + $0x40] sm:$0xff]
        %v1441 = vld [vmem:[%s1431 + $0x48] sm:$0xff]
        %v1442 = vld [vmem:[%s1431 + $0x50] sm:$0xff]
        %v1443 = vld [vmem:[%s1431 + $0x58] sm:$0xff]
        %v1444 = vld [vmem:[%s1431 + $0x60] sm:$0xff]
        %v1445 = vld [vmem:[%s1431 + $0x68] sm:$0xff]
        %v1446 = vld [vmem:[%s1431 + $0x70] sm:$0xff]
        %v1447 = vld [vmem:[%s1431 + $0x78] sm:$0xff]
        %v1448 = vrot.slane %v890, 6
        %1450 = vmatprep.subr.mxu0 0.0
        %1451 = vmatpush1.msra.mxu0 %v1432
        %1452 = vmatprep.subr.mxu0 0.0
        %1453 = vmatpush1.msra.mxu0 %v1433
        %1454 = vmatprep.subr.mxu0 0.0
        %1455 = vmatpush1.msra.mxu0 %v1434
        %1456 = vmatprep.subr.mxu0 0.0
        %1457 = vmatpush1.msra.mxu0 %v1435
        %1458 = vmatprep.subr.mxu0 0.0
        %1459 = vmatpush1.msra.mxu0 %v1436
        %1460 = vmatprep.subr.mxu0 0.0
        %1461 = vmatpush1.msra.mxu0 %v1437
        %1462 = vmatprep.subr.mxu0 0.0
        %1463 = vmatpush1.msra.mxu0 %v1438
        %1464 = vmatprep.subr.mxu0 0.0
        %1465 = vmatpush1.msra.mxu0 %v1439
        %1466 = vmatprep.subr.mxu0 0.0
        %1467 = vmatpush1.msra.mxu0 %v1440
        %1468 = vmatprep.subr.mxu0 0.0
        %1469 = vmatpush1.msra.mxu0 %v1441
        %1470 = vmatprep.subr.mxu0 0.0
        %1471 = vmatpush1.msra.mxu0 %v1442
        %1472 = vmatprep.subr.mxu0 0.0
        %1473 = vmatpush1.msra.mxu0 %v1443
        %1474 = vmatprep.subr.mxu0 0.0
        %1475 = vmatpush1.msra.mxu0 %v1444
        %1476 = vmatprep.subr.mxu0 0.0
        %1477 = vmatpush1.msra.mxu0 %v1445
        %1478 = vmatprep.subr.mxu0 0.0
        %1479 = vmatpush1.msra.mxu0 %v1446
        %1480 = vmatprep.subr.mxu0 0.0
        %1481 = vmatpush1.msra.mxu0 %v1447
        %1482 = vmatprep.subr.mxu0 0.0
        %1483 = vmatpush1.msra.mxu0 0.0
        %1484 = vmatprep.subr.mxu0 0.0
        %1485 = vmatpush1.msra.mxu0 0.0
        %1486 = vmatprep.subr.mxu0 0.0
        %1487 = vmatpush1.msra.mxu0 0.0
        %1488 = vmatprep.subr.mxu0 0.0
        %1489 = vmatpush1.msra.mxu0 0.0
        %1490 = vmatprep.subr.mxu0 0.0
        %1491 = vmatpush1.msra.mxu0 0.0
        %1492 = vmatprep.subr.mxu0 0.0
        %1493 = vmatpush1.msra.mxu0 0.0
        %1494 = vmatprep.subr.mxu0 0.0
        %1495 = vmatpush1.msra.mxu0 0.0
        %1496 = vmatprep.subr.mxu0 0.0
        %1497 = vmatpush1.msra.mxu0 0.0
        %1498 = vmatprep.subr.mxu0 0.0
        %1499 = vmatpush1.msra.mxu0 0.0
        %1500 = vmatprep.subr.mxu0 0.0
        %1501 = vmatpush1.msra.mxu0 0.0
        %1502 = vmatprep.subr.mxu0 0.0
        %1503 = vmatpush1.msra.mxu0 0.0
        %1504 = vmatprep.subr.mxu0 0.0
        %1505 = vmatpush1.msra.mxu0 0.0
        %1506 = vmatprep.subr.mxu0 0.0
        %1507 = vmatpush1.msra.mxu0 0.0
        %1508 = vmatprep.subr.mxu0 0.0
        %1509 = vmatpush1.msra.mxu0 0.0
        %1510 = vmatprep.subr.mxu0 0.0
        %1511 = vmatpush1.msra.mxu0 0.0
        %1512 = vmatprep.subr.mxu0 0.0
        %1513 = vmatpush1.msra.mxu0 0.0
        %1514 = vmatprep.mubr.f32.mxu0 0.0
        %1515 = vmatmul.mubr.f32.gmra.mrb[0].mxu0 %v1448
        %v1516 = vpop.f32.mrb[0].mxu0
        %v1517 = vadd.f32 0.0, %v1516
        %v1518 = vpop.f32.mrb[0].mxu0
        %1519 = vdwg.mxu0
        %v1520 = vadd.f32 %v1430, %v1517
        %s1521 = scalar_lea.vmem [#allocation13], 896
        %v1522 = vld [vmem:[%s1521] sm:$0xff]
        %v1523 = vld [vmem:[%s1521 + $0x8] sm:$0xff]
        %v1524 = vld [vmem:[%s1521 + $0x10] sm:$0xff]
        %v1525 = vld [vmem:[%s1521 + $0x18] sm:$0xff]
        %v1526 = vld [vmem:[%s1521 + $0x20] sm:$0xff]
        %v1527 = vld [vmem:[%s1521 + $0x28] sm:$0xff]
        %v1528 = vld [vmem:[%s1521 + $0x30] sm:$0xff]
        %v1529 = vld [vmem:[%s1521 + $0x38] sm:$0xff]
        %v1530 = vld [vmem:[%s1521 + $0x40] sm:$0xff]
        %v1531 = vld [vmem:[%s1521 + $0x48] sm:$0xff]
        %v1532 = vld [vmem:[%s1521 + $0x50] sm:$0xff]
        %v1533 = vld [vmem:[%s1521 + $0x58] sm:$0xff]
        %v1534 = vld [vmem:[%s1521 + $0x60] sm:$0xff]
        %v1535 = vld [vmem:[%s1521 + $0x68] sm:$0xff]
        %v1536 = vld [vmem:[%s1521 + $0x70] sm:$0xff]
        %v1537 = vld [vmem:[%s1521 + $0x78] sm:$0xff]
        %v1538 = vrot.slane %v890, 7
        %1540 = vmatprep.subr.mxu0 0.0
        %1541 = vmatpush1.msra.mxu0 %v1522
        %1542 = vmatprep.subr.mxu0 0.0
        %1543 = vmatpush1.msra.mxu0 %v1523
        %1544 = vmatprep.subr.mxu0 0.0
        %1545 = vmatpush1.msra.mxu0 %v1524
        %1546 = vmatprep.subr.mxu0 0.0
        %1547 = vmatpush1.msra.mxu0 %v1525
        %1548 = vmatprep.subr.mxu0 0.0
        %1549 = vmatpush1.msra.mxu0 %v1526
        %1550 = vmatprep.subr.mxu0 0.0
        %1551 = vmatpush1.msra.mxu0 %v1527
        %1552 = vmatprep.subr.mxu0 0.0
        %1553 = vmatpush1.msra.mxu0 %v1528
        %1554 = vmatprep.subr.mxu0 0.0
        %1555 = vmatpush1.msra.mxu0 %v1529
        %1556 = vmatprep.subr.mxu0 0.0
        %1557 = vmatpush1.msra.mxu0 %v1530
        %1558 = vmatprep.subr.mxu0 0.0
        %1559 = vmatpush1.msra.mxu0 %v1531
        %1560 = vmatprep.subr.mxu0 0.0
        %1561 = vmatpush1.msra.mxu0 %v1532
        %1562 = vmatprep.subr.mxu0 0.0
        %1563 = vmatpush1.msra.mxu0 %v1533
        %1564 = vmatprep.subr.mxu0 0.0
        %1565 = vmatpush1.msra.mxu0 %v1534
        %1566 = vmatprep.subr.mxu0 0.0
        %1567 = vmatpush1.msra.mxu0 %v1535
        %1568 = vmatprep.subr.mxu0 0.0
        %1569 = vmatpush1.msra.mxu0 %v1536
        %1570 = vmatprep.subr.mxu0 0.0
        %1571 = vmatpush1.msra.mxu0 %v1537
        %1572 = vmatprep.subr.mxu0 0.0
        %1573 = vmatpush1.msra.mxu0 0.0
        %1574 = vmatprep.subr.mxu0 0.0
        %1575 = vmatpush1.msra.mxu0 0.0
        %1576 = vmatprep.subr.mxu0 0.0
        %1577 = vmatpush1.msra.mxu0 0.0
        %1578 = vmatprep.subr.mxu0 0.0
        %1579 = vmatpush1.msra.mxu0 0.0
        %1580 = vmatprep.subr.mxu0 0.0
        %1581 = vmatpush1.msra.mxu0 0.0
        %1582 = vmatprep.subr.mxu0 0.0
        %1583 = vmatpush1.msra.mxu0 0.0
        %1584 = vmatprep.subr.mxu0 0.0
        %1585 = vmatpush1.msra.mxu0 0.0
        %1586 = vmatprep.subr.mxu0 0.0
        %1587 = vmatpush1.msra.mxu0 0.0
        %1588 = vmatprep.subr.mxu0 0.0
        %1589 = vmatpush1.msra.mxu0 0.0
        %1590 = vmatprep.subr.mxu0 0.0
        %1591 = vmatpush1.msra.mxu0 0.0
        %1592 = vmatprep.subr.mxu0 0.0
        %1593 = vmatpush1.msra.mxu0 0.0
        %1594 = vmatprep.subr.mxu0 0.0
        %1595 = vmatpush1.msra.mxu0 0.0
        %1596 = vmatprep.subr.mxu0 0.0
        %1597 = vmatpush1.msra.mxu0 0.0
        %1598 = vmatprep.subr.mxu0 0.0
        %1599 = vmatpush1.msra.mxu0 0.0
        %1600 = vmatprep.subr.mxu0 0.0
        %1601 = vmatpush1.msra.mxu0 0.0
        %1602 = vmatprep.subr.mxu0 0.0
        %1603 = vmatpush1.msra.mxu0 0.0
        %1604 = vmatprep.mubr.f32.mxu0 0.0
        %1605 = vmatmul.mubr.f32.gmra.mrb[0].mxu0 %v1538
        %v1606 = vpop.f32.mrb[0].mxu0
        %v1607 = vadd.f32 0.0, %v1606
        %v1608 = vpop.f32.mrb[0].mxu0
        %1609 = vdwg.mxu0
        %v1610 = vadd.f32 %v1520, %v1607
        %s1611 = scalar_lea.vmem [#allocation13], 1024
        %v1612 = vld [vmem:[%s1611] sm:$0xff]
        %v1613 = vld [vmem:[%s1611 + $0x8] sm:$0xff]
        %v1614 = vld [vmem:[%s1611 + $0x10] sm:$0xff]
        %v1615 = vld [vmem:[%s1611 + $0x18] sm:$0xff]
        %v1616 = vld [vmem:[%s1611 + $0x20] sm:$0xff]
        %v1617 = vld [vmem:[%s1611 + $0x28] sm:$0xff]
        %v1618 = vld [vmem:[%s1611 + $0x30] sm:$0xff]
        %v1619 = vld [vmem:[%s1611 + $0x38] sm:$0xff]
        %v1620 = vld [vmem:[%s1611 + $0x40] sm:$0xff]
        %v1621 = vld [vmem:[%s1611 + $0x48] sm:$0xff]
        %v1622 = vld [vmem:[%s1611 + $0x50] sm:$0xff]
        %v1623 = vld [vmem:[%s1611 + $0x58] sm:$0xff]
        %v1624 = vld [vmem:[%s1611 + $0x60] sm:$0xff]
        %v1625 = vld [vmem:[%s1611 + $0x68] sm:$0xff]
        %v1626 = vld [vmem:[%s1611 + $0x70] sm:$0xff]
        %v1627 = vld [vmem:[%s1611 + $0x78] sm:$0xff]
        %1628 = vmatprep.subr.mxu0 0.0
        %1629 = vmatpush1.msra.mxu0 %v1612
        %1630 = vmatprep.subr.mxu0 0.0
        %1631 = vmatpush1.msra.mxu0 %v1613
        %1632 = vmatprep.subr.mxu0 0.0
        %1633 = vmatpush1.msra.mxu0 %v1614
        %1634 = vmatprep.subr.mxu0 0.0
        %1635 = vmatpush1.msra.mxu0 %v1615
        %1636 = vmatprep.subr.mxu0 0.0
        %1637 = vmatpush1.msra.mxu0 %v1616
        %1638 = vmatprep.subr.mxu0 0.0
        %1639 = vmatpush1.msra.mxu0 %v1617
        %1640 = vmatprep.subr.mxu0 0.0
        %1641 = vmatpush1.msra.mxu0 %v1618
        %1642 = vmatprep.subr.mxu0 0.0
        %1643 = vmatpush1.msra.mxu0 %v1619
        %1644 = vmatprep.subr.mxu0 0.0
        %1645 = vmatpush1.msra.mxu0 %v1620
        %1646 = vmatprep.subr.mxu0 0.0
        %1647 = vmatpush1.msra.mxu0 %v1621
        %1648 = vmatprep.subr.mxu0 0.0
        %1649 = vmatpush1.msra.mxu0 %v1622
        %1650 = vmatprep.subr.mxu0 0.0
        %1651 = vmatpush1.msra.mxu0 %v1623
        %1652 = vmatprep.subr.mxu0 0.0
        %1653 = vmatpush1.msra.mxu0 %v1624
        %1654 = vmatprep.subr.mxu0 0.0
        %1655 = vmatpush1.msra.mxu0 %v1625
        %1656 = vmatprep.subr.mxu0 0.0
        %1657 = vmatpush1.msra.mxu0 %v1626
        %1658 = vmatprep.subr.mxu0 0.0
        %1659 = vmatpush1.msra.mxu0 %v1627
        %1660 = vmatprep.subr.mxu0 0.0
        %1661 = vmatpush1.msra.mxu0 0.0
        %1662 = vmatprep.subr.mxu0 0.0
        %1663 = vmatpush1.msra.mxu0 0.0
        %1664 = vmatprep.subr.mxu0 0.0
        %1665 = vmatpush1.msra.mxu0 0.0
        %1666 = vmatprep.subr.mxu0 0.0
        %1667 = vmatpush1.msra.mxu0 0.0
        %1668 = vmatprep.subr.mxu0 0.0
        %1669 = vmatpush1.msra.mxu0 0.0
        %1670 = vmatprep.subr.mxu0 0.0
        %1671 = vmatpush1.msra.mxu0 0.0
        %1672 = vmatprep.subr.mxu0 0.0
        %1673 = vmatpush1.msra.mxu0 0.0
        %1674 = vmatprep.subr.mxu0 0.0
        %1675 = vmatpush1.msra.mxu0 0.0
        %1676 = vmatprep.subr.mxu0 0.0
        %1677 = vmatpush1.msra.mxu0 0.0
        %1678 = vmatprep.subr.mxu0 0.0
        %1679 = vmatpush1.msra.mxu0 0.0
        %1680 = vmatprep.subr.mxu0 0.0
        %1681 = vmatpush1.msra.mxu0 0.0
        %1682 = vmatprep.subr.mxu0 0.0
        %1683 = vmatpush1.msra.mxu0 0.0
        %1684 = vmatprep.subr.mxu0 0.0
        %1685 = vmatpush1.msra.mxu0 0.0
        %1686 = vmatprep.subr.mxu0 0.0
        %1687 = vmatpush1.msra.mxu0 0.0
        %1688 = vmatprep.subr.mxu0 0.0
        %1689 = vmatpush1.msra.mxu0 0.0
        %1690 = vmatprep.subr.mxu0 0.0
        %1691 = vmatpush1.msra.mxu0 0.0
        %1692 = vmatprep.mubr.f32.mxu0 0.0
        %1693 = vmatmul.mubr.f32.gmra.mrb[0].mxu0 %v891
        %v1694 = vpop.f32.mrb[0].mxu0
        %v1695 = vadd.f32 0.0, %v1694
        %v1696 = vpop.f32.mrb[0].mxu0
        %1697 = vdwg.mxu0
        %v1698 = vadd.f32 %v1610, %v1695
        %s1699 = scalar_lea.vmem [#allocation13], 1152
        %v1700 = vld [vmem:[%s1699] sm:$0xff]
        %v1701 = vld [vmem:[%s1699 + $0x8] sm:$0xff]
        %v1702 = vld [vmem:[%s1699 + $0x10] sm:$0xff]
        %v1703 = vld [vmem:[%s1699 + $0x18] sm:$0xff]
        %v1704 = vld [vmem:[%s1699 + $0x20] sm:$0xff]
        %v1705 = vld [vmem:[%s1699 + $0x28] sm:$0xff]
        %v1706 = vld [vmem:[%s1699 + $0x30] sm:$0xff]
        %v1707 = vld [vmem:[%s1699 + $0x38] sm:$0xff]
        %v1708 = vld [vmem:[%s1699 + $0x40] sm:$0xff]
        %v1709 = vld [vmem:[%s1699 + $0x48] sm:$0xff]
        %v1710 = vld [vmem:[%s1699 + $0x50] sm:$0xff]
        %v1711 = vld [vmem:[%s1699 + $0x58] sm:$0xff]
        %v1712 = vld [vmem:[%s1699 + $0x60] sm:$0xff]
        %v1713 = vld [vmem:[%s1699 + $0x68] sm:$0xff]
        %v1714 = vld [vmem:[%s1699 + $0x70] sm:$0xff]
        %v1715 = vld [vmem:[%s1699 + $0x78] sm:$0xff]
        %v1717 = vrot.slane %v891, 1
        %1719 = vmatprep.subr.mxu0 0.0
        %1720 = vmatpush1.msra.mxu0 %v1700
        %1721 = vmatprep.subr.mxu0 0.0
        %1722 = vmatpush1.msra.mxu0 %v1701
        %1723 = vmatprep.subr.mxu0 0.0
        %1724 = vmatpush1.msra.mxu0 %v1702
        %1725 = vmatprep.subr.mxu0 0.0
        %1726 = vmatpush1.msra.mxu0 %v1703
        %1727 = vmatprep.subr.mxu0 0.0
        %1728 = vmatpush1.msra.mxu0 %v1704
        %1729 = vmatprep.subr.mxu0 0.0
        %1730 = vmatpush1.msra.mxu0 %v1705
        %1731 = vmatprep.subr.mxu0 0.0
        %1732 = vmatpush1.msra.mxu0 %v1706
        %1733 = vmatprep.subr.mxu0 0.0
        %1734 = vmatpush1.msra.mxu0 %v1707
        %1735 = vmatprep.subr.mxu0 0.0
        %1736 = vmatpush1.msra.mxu0 %v1708
        %1737 = vmatprep.subr.mxu0 0.0
        %1738 = vmatpush1.msra.mxu0 %v1709
        %1739 = vmatprep.subr.mxu0 0.0
        %1740 = vmatpush1.msra.mxu0 %v1710
        %1741 = vmatprep.subr.mxu0 0.0
        %1742 = vmatpush1.msra.mxu0 %v1711
        %1743 = vmatprep.subr.mxu0 0.0
        %1744 = vmatpush1.msra.mxu0 %v1712
        %1745 = vmatprep.subr.mxu0 0.0
        %1746 = vmatpush1.msra.mxu0 %v1713
        %1747 = vmatprep.subr.mxu0 0.0
        %1748 = vmatpush1.msra.mxu0 %v1714
        %1749 = vmatprep.subr.mxu0 0.0
        %1750 = vmatpush1.msra.mxu0 %v1715
        %1751 = vmatprep.subr.mxu0 0.0
        %1752 = vmatpush1.msra.mxu0 0.0
        %1753 = vmatprep.subr.mxu0 0.0
        %1754 = vmatpush1.msra.mxu0 0.0
        %1755 = vmatprep.subr.mxu0 0.0
        %1756 = vmatpush1.msra.mxu0 0.0
        %1757 = vmatprep.subr.mxu0 0.0
        %1758 = vmatpush1.msra.mxu0 0.0
        %1759 = vmatprep.subr.mxu0 0.0
        %1760 = vmatpush1.msra.mxu0 0.0
        %1761 = vmatprep.subr.mxu0 0.0
        %1762 = vmatpush1.msra.mxu0 0.0
        %1763 = vmatprep.subr.mxu0 0.0
        %1764 = vmatpush1.msra.mxu0 0.0
        %1765 = vmatprep.subr.mxu0 0.0
        %1766 = vmatpush1.msra.mxu0 0.0
        %1767 = vmatprep.subr.mxu0 0.0
        %1768 = vmatpush1.msra.mxu0 0.0
        %1769 = vmatprep.subr.mxu0 0.0
        %1770 = vmatpush1.msra.mxu0 0.0
        %1771 = vmatprep.subr.mxu0 0.0
        %1772 = vmatpush1.msra.mxu0 0.0
        %1773 = vmatprep.subr.mxu0 0.0
        %1774 = vmatpush1.msra.mxu0 0.0
        %1775 = vmatprep.subr.mxu0 0.0
        %1776 = vmatpush1.msra.mxu0 0.0
        %1777 = vmatprep.subr.mxu0 0.0
        %1778 = vmatpush1.msra.mxu0 0.0
        %1779 = vmatprep.subr.mxu0 0.0
        %1780 = vmatpush1.msra.mxu0 0.0
        %1781 = vmatprep.subr.mxu0 0.0
        %1782 = vmatpush1.msra.mxu0 0.0
        %1783 = vmatprep.mubr.f32.mxu0 0.0
        %1784 = vmatmul.mubr.f32.gmra.mrb[0].mxu0 %v1717
        %v1785 = vpop.f32.mrb[0].mxu0
        %v1786 = vadd.f32 0.0, %v1785
        %v1787 = vpop.f32.mrb[0].mxu0
        %1788 = vdwg.mxu0
        %v1789 = vadd.f32 %v1698, %v1786
        %s1790 = scalar_lea.vmem [#allocation13], 1280
        %v1791 = vld [vmem:[%s1790] sm:$0xff]
        %v1792 = vld [vmem:[%s1790 + $0x8] sm:$0xff]
        %v1793 = vld [vmem:[%s1790 + $0x10] sm:$0xff]
        %v1794 = vld [vmem:[%s1790 + $0x18] sm:$0xff]
        %v1795 = vld [vmem:[%s1790 + $0x20] sm:$0xff]
        %v1796 = vld [vmem:[%s1790 + $0x28] sm:$0xff]
        %v1797 = vld [vmem:[%s1790 + $0x30] sm:$0xff]
        %v1798 = vld [vmem:[%s1790 + $0x38] sm:$0xff]
        %v1799 = vld [vmem:[%s1790 + $0x40] sm:$0xff]
        %v1800 = vld [vmem:[%s1790 + $0x48] sm:$0xff]
        %v1801 = vld [vmem:[%s1790 + $0x50] sm:$0xff]
        %v1802 = vld [vmem:[%s1790 + $0x58] sm:$0xff]
        %v1803 = vld [vmem:[%s1790 + $0x60] sm:$0xff]
        %v1804 = vld [vmem:[%s1790 + $0x68] sm:$0xff]
        %v1805 = vld [vmem:[%s1790 + $0x70] sm:$0xff]
        %v1806 = vld [vmem:[%s1790 + $0x78] sm:$0xff]
        %v1807 = vrot.slane %v891, 2
        %1809 = vmatprep.subr.mxu0 0.0
        %1810 = vmatpush1.msra.mxu0 %v1791
        %1811 = vmatprep.subr.mxu0 0.0
        %1812 = vmatpush1.msra.mxu0 %v1792
        %1813 = vmatprep.subr.mxu0 0.0
        %1814 = vmatpush1.msra.mxu0 %v1793
        %1815 = vmatprep.subr.mxu0 0.0
        %1816 = vmatpush1.msra.mxu0 %v1794
        %1817 = vmatprep.subr.mxu0 0.0
        %1818 = vmatpush1.msra.mxu0 %v1795
        %1819 = vmatprep.subr.mxu0 0.0
        %1820 = vmatpush1.msra.mxu0 %v1796
        %1821 = vmatprep.subr.mxu0 0.0
        %1822 = vmatpush1.msra.mxu0 %v1797
        %1823 = vmatprep.subr.mxu0 0.0
        %1824 = vmatpush1.msra.mxu0 %v1798
        %1825 = vmatprep.subr.mxu0 0.0
        %1826 = vmatpush1.msra.mxu0 %v1799
        %1827 = vmatprep.subr.mxu0 0.0
        %1828 = vmatpush1.msra.mxu0 %v1800
        %1829 = vmatprep.subr.mxu0 0.0
        %1830 = vmatpush1.msra.mxu0 %v1801
        %1831 = vmatprep.subr.mxu0 0.0
        %1832 = vmatpush1.msra.mxu0 %v1802
        %1833 = vmatprep.subr.mxu0 0.0
        %1834 = vmatpush1.msra.mxu0 %v1803
        %1835 = vmatprep.subr.mxu0 0.0
        %1836 = vmatpush1.msra.mxu0 %v1804
        %1837 = vmatprep.subr.mxu0 0.0
        %1838 = vmatpush1.msra.mxu0 %v1805
        %1839 = vmatprep.subr.mxu0 0.0
        %1840 = vmatpush1.msra.mxu0 %v1806
        %1841 = vmatprep.subr.mxu0 0.0
        %1842 = vmatpush1.msra.mxu0 0.0
        %1843 = vmatprep.subr.mxu0 0.0
        %1844 = vmatpush1.msra.mxu0 0.0
        %1845 = vmatprep.subr.mxu0 0.0
        %1846 = vmatpush1.msra.mxu0 0.0
        %1847 = vmatprep.subr.mxu0 0.0
        %1848 = vmatpush1.msra.mxu0 0.0
        %1849 = vmatprep.subr.mxu0 0.0
        %1850 = vmatpush1.msra.mxu0 0.0
        %1851 = vmatprep.subr.mxu0 0.0
        %1852 = vmatpush1.msra.mxu0 0.0
        %1853 = vmatprep.subr.mxu0 0.0
        %1854 = vmatpush1.msra.mxu0 0.0
        %1855 = vmatprep.subr.mxu0 0.0
        %1856 = vmatpush1.msra.mxu0 0.0
        %1857 = vmatprep.subr.mxu0 0.0
        %1858 = vmatpush1.msra.mxu0 0.0
        %1859 = vmatprep.subr.mxu0 0.0
        %1860 = vmatpush1.msra.mxu0 0.0
        %1861 = vmatprep.subr.mxu0 0.0
        %1862 = vmatpush1.msra.mxu0 0.0
        %1863 = vmatprep.subr.mxu0 0.0
        %1864 = vmatpush1.msra.mxu0 0.0
        %1865 = vmatprep.subr.mxu0 0.0
        %1866 = vmatpush1.msra.mxu0 0.0
        %1867 = vmatprep.subr.mxu0 0.0
        %1868 = vmatpush1.msra.mxu0 0.0
        %1869 = vmatprep.subr.mxu0 0.0
        %1870 = vmatpush1.msra.mxu0 0.0
        %1871 = vmatprep.subr.mxu0 0.0
        %1872 = vmatpush1.msra.mxu0 0.0
        %1873 = vmatprep.mubr.f32.mxu0 0.0
        %1874 = vmatmul.mubr.f32.gmra.mrb[0].mxu0 %v1807
        %v1875 = vpop.f32.mrb[0].mxu0
        %v1876 = vadd.f32 0.0, %v1875
        %v1877 = vpop.f32.mrb[0].mxu0
        %1878 = vdwg.mxu0
        %v1879 = vadd.f32 %v1789, %v1876
        %s1880 = scalar_lea.vmem [#allocation13], 1408
        %v1881 = vld [vmem:[%s1880] sm:$0xff]
        %v1882 = vld [vmem:[%s1880 + $0x8] sm:$0xff]
        %v1883 = vld [vmem:[%s1880 + $0x10] sm:$0xff]
        %v1884 = vld [vmem:[%s1880 + $0x18] sm:$0xff]
        %v1885 = vld [vmem:[%s1880 + $0x20] sm:$0xff]
        %v1886 = vld [vmem:[%s1880 + $0x28] sm:$0xff]
        %v1887 = vld [vmem:[%s1880 + $0x30] sm:$0xff]
        %v1888 = vld [vmem:[%s1880 + $0x38] sm:$0xff]
        %v1889 = vld [vmem:[%s1880 + $0x40] sm:$0xff]
        %v1890 = vld [vmem:[%s1880 + $0x48] sm:$0xff]
        %v1891 = vld [vmem:[%s1880 + $0x50] sm:$0xff]
        %v1892 = vld [vmem:[%s1880 + $0x58] sm:$0xff]
        %v1893 = vld [vmem:[%s1880 + $0x60] sm:$0xff]
        %v1894 = vld [vmem:[%s1880 + $0x68] sm:$0xff]
        %v1895 = vld [vmem:[%s1880 + $0x70] sm:$0xff]
        %v1896 = vld [vmem:[%s1880 + $0x78] sm:$0xff]
        %v1897 = vrot.slane %v891, 3
        %1899 = vmatprep.subr.mxu0 0.0
        %1900 = vmatpush1.msra.mxu0 %v1881
        %1901 = vmatprep.subr.mxu0 0.0
        %1902 = vmatpush1.msra.mxu0 %v1882
        %1903 = vmatprep.subr.mxu0 0.0
        %1904 = vmatpush1.msra.mxu0 %v1883
        %1905 = vmatprep.subr.mxu0 0.0
        %1906 = vmatpush1.msra.mxu0 %v1884
        %1907 = vmatprep.subr.mxu0 0.0
        %1908 = vmatpush1.msra.mxu0 %v1885
        %1909 = vmatprep.subr.mxu0 0.0
        %1910 = vmatpush1.msra.mxu0 %v1886
        %1911 = vmatprep.subr.mxu0 0.0
        %1912 = vmatpush1.msra.mxu0 %v1887
        %1913 = vmatprep.subr.mxu0 0.0
        %1914 = vmatpush1.msra.mxu0 %v1888
        %1915 = vmatprep.subr.mxu0 0.0
        %1916 = vmatpush1.msra.mxu0 %v1889
        %1917 = vmatprep.subr.mxu0 0.0
        %1918 = vmatpush1.msra.mxu0 %v1890
        %1919 = vmatprep.subr.mxu0 0.0
        %1920 = vmatpush1.msra.mxu0 %v1891
        %1921 = vmatprep.subr.mxu0 0.0
        %1922 = vmatpush1.msra.mxu0 %v1892
        %1923 = vmatprep.subr.mxu0 0.0
        %1924 = vmatpush1.msra.mxu0 %v1893
        %1925 = vmatprep.subr.mxu0 0.0
        %1926 = vmatpush1.msra.mxu0 %v1894
        %1927 = vmatprep.subr.mxu0 0.0
        %1928 = vmatpush1.msra.mxu0 %v1895
        %1929 = vmatprep.subr.mxu0 0.0
        %1930 = vmatpush1.msra.mxu0 %v1896
        %1931 = vmatprep.subr.mxu0 0.0
        %1932 = vmatpush1.msra.mxu0 0.0
        %1933 = vmatprep.subr.mxu0 0.0
        %1934 = vmatpush1.msra.mxu0 0.0
        %1935 = vmatprep.subr.mxu0 0.0
        %1936 = vmatpush1.msra.mxu0 0.0
        %1937 = vmatprep.subr.mxu0 0.0
        %1938 = vmatpush1.msra.mxu0 0.0
        %1939 = vmatprep.subr.mxu0 0.0
        %1940 = vmatpush1.msra.mxu0 0.0
        %1941 = vmatprep.subr.mxu0 0.0
        %1942 = vmatpush1.msra.mxu0 0.0
        %1943 = vmatprep.subr.mxu0 0.0
        %1944 = vmatpush1.msra.mxu0 0.0
        %1945 = vmatprep.subr.mxu0 0.0
        %1946 = vmatpush1.msra.mxu0 0.0
        %1947 = vmatprep.subr.mxu0 0.0
        %1948 = vmatpush1.msra.mxu0 0.0
        %1949 = vmatprep.subr.mxu0 0.0
        %1950 = vmatpush1.msra.mxu0 0.0
        %1951 = vmatprep.subr.mxu0 0.0
        %1952 = vmatpush1.msra.mxu0 0.0
        %1953 = vmatprep.subr.mxu0 0.0
        %1954 = vmatpush1.msra.mxu0 0.0
        %1955 = vmatprep.subr.mxu0 0.0
        %1956 = vmatpush1.msra.mxu0 0.0
        %1957 = vmatprep.subr.mxu0 0.0
        %1958 = vmatpush1.msra.mxu0 0.0
        %1959 = vmatprep.subr.mxu0 0.0
        %1960 = vmatpush1.msra.mxu0 0.0
        %1961 = vmatprep.subr.mxu0 0.0
        %1962 = vmatpush1.msra.mxu0 0.0
        %1963 = vmatprep.mubr.f32.mxu0 0.0
        %1964 = vmatmul.mubr.f32.gmra.mrb[0].mxu0 %v1897
        %v1965 = vpop.f32.mrb[0].mxu0
        %v1966 = vadd.f32 0.0, %v1965
        %v1967 = vpop.f32.mrb[0].mxu0
        %1968 = vdwg.mxu0
        %v1969 = vadd.f32 %v1879, %v1966
        %s1970 = scalar_lea.vmem [#allocation13], 1536
        %v1971 = vld [vmem:[%s1970] sm:$0xff]
        %v1972 = vld [vmem:[%s1970 + $0x8] sm:$0xff]
        %v1973 = vld [vmem:[%s1970 + $0x10] sm:$0xff]
        %v1974 = vld [vmem:[%s1970 + $0x18] sm:$0xff]
        %v1975 = vld [vmem:[%s1970 + $0x20] sm:$0xff]
        %v1976 = vld [vmem:[%s1970 + $0x28] sm:$0xff]
        %v1977 = vld [vmem:[%s1970 + $0x30] sm:$0xff]
        %v1978 = vld [vmem:[%s1970 + $0x38] sm:$0xff]
        %v1979 = vld [vmem:[%s1970 + $0x40] sm:$0xff]
        %v1980 = vld [vmem:[%s1970 + $0x48] sm:$0xff]
        %v1981 = vld [vmem:[%s1970 + $0x50] sm:$0xff]
        %v1982 = vld [vmem:[%s1970 + $0x58] sm:$0xff]
        %v1983 = vld [vmem:[%s1970 + $0x60] sm:$0xff]
        %v1984 = vld [vmem:[%s1970 + $0x68] sm:$0xff]
        %v1985 = vld [vmem:[%s1970 + $0x70] sm:$0xff]
        %v1986 = vld [vmem:[%s1970 + $0x78] sm:$0xff]
        %v1987 = vrot.slane %v891, 4
        %1989 = vmatprep.subr.mxu0 0.0
        %1990 = vmatpush1.msra.mxu0 %v1971
        %1991 = vmatprep.subr.mxu0 0.0
        %1992 = vmatpush1.msra.mxu0 %v1972
        %1993 = vmatprep.subr.mxu0 0.0
        %1994 = vmatpush1.msra.mxu0 %v1973
        %1995 = vmatprep.subr.mxu0 0.0
        %1996 = vmatpush1.msra.mxu0 %v1974
        %1997 = vmatprep.subr.mxu0 0.0
        %1998 = vmatpush1.msra.mxu0 %v1975
        %1999 = vmatprep.subr.mxu0 0.0
        %2000 = vmatpush1.msra.mxu0 %v1976
        %2001 = vmatprep.subr.mxu0 0.0
        %2002 = vmatpush1.msra.mxu0 %v1977
        %2003 = vmatprep.subr.mxu0 0.0
        %2004 = vmatpush1.msra.mxu0 %v1978
        %2005 = vmatprep.subr.mxu0 0.0
        %2006 = vmatpush1.msra.mxu0 %v1979
        %2007 = vmatprep.subr.mxu0 0.0
        %2008 = vmatpush1.msra.mxu0 %v1980
        %2009 = vmatprep.subr.mxu0 0.0
        %2010 = vmatpush1.msra.mxu0 %v1981
        %2011 = vmatprep.subr.mxu0 0.0
        %2012 = vmatpush1.msra.mxu0 %v1982
        %2013 = vmatprep.subr.mxu0 0.0
        %2014 = vmatpush1.msra.mxu0 %v1983
        %2015 = vmatprep.subr.mxu0 0.0
        %2016 = vmatpush1.msra.mxu0 %v1984
        %2017 = vmatprep.subr.mxu0 0.0
        %2018 = vmatpush1.msra.mxu0 %v1985
        %2019 = vmatprep.subr.mxu0 0.0
        %2020 = vmatpush1.msra.mxu0 %v1986
        %2021 = vmatprep.subr.mxu0 0.0
        %2022 = vmatpush1.msra.mxu0 0.0
        %2023 = vmatprep.subr.mxu0 0.0
        %2024 = vmatpush1.msra.mxu0 0.0
        %2025 = vmatprep.subr.mxu0 0.0
        %2026 = vmatpush1.msra.mxu0 0.0
        %2027 = vmatprep.subr.mxu0 0.0
        %2028 = vmatpush1.msra.mxu0 0.0
        %2029 = vmatprep.subr.mxu0 0.0
        %2030 = vmatpush1.msra.mxu0 0.0
        %2031 = vmatprep.subr.mxu0 0.0
        %2032 = vmatpush1.msra.mxu0 0.0
        %2033 = vmatprep.subr.mxu0 0.0
        %2034 = vmatpush1.msra.mxu0 0.0
        %2035 = vmatprep.subr.mxu0 0.0
        %2036 = vmatpush1.msra.mxu0 0.0
        %2037 = vmatprep.subr.mxu0 0.0
        %2038 = vmatpush1.msra.mxu0 0.0
        %2039 = vmatprep.subr.mxu0 0.0
        %2040 = vmatpush1.msra.mxu0 0.0
        %2041 = vmatprep.subr.mxu0 0.0
        %2042 = vmatpush1.msra.mxu0 0.0
        %2043 = vmatprep.subr.mxu0 0.0
        %2044 = vmatpush1.msra.mxu0 0.0
        %2045 = vmatprep.subr.mxu0 0.0
        %2046 = vmatpush1.msra.mxu0 0.0
        %2047 = vmatprep.subr.mxu0 0.0
        %2048 = vmatpush1.msra.mxu0 0.0
        %2049 = vmatprep.subr.mxu0 0.0
        %2050 = vmatpush1.msra.mxu0 0.0
        %2051 = vmatprep.subr.mxu0 0.0
        %2052 = vmatpush1.msra.mxu0 0.0
        %2053 = vmatprep.mubr.f32.mxu0 0.0
        %2054 = vmatmul.mubr.f32.gmra.mrb[0].mxu0 %v1987
        %v2055 = vpop.f32.mrb[0].mxu0
        %v2056 = vadd.f32 0.0, %v2055
        %v2057 = vpop.f32.mrb[0].mxu0
        %2058 = vdwg.mxu0
        %v2059 = vadd.f32 %v1969, %v2056
        %s2060 = scalar_lea.vmem [#allocation13], 1664
        %v2061 = vld [vmem:[%s2060] sm:$0xff]
        %v2062 = vld [vmem:[%s2060 + $0x8] sm:$0xff]
        %v2063 = vld [vmem:[%s2060 + $0x10] sm:$0xff]
        %v2064 = vld [vmem:[%s2060 + $0x18] sm:$0xff]
        %v2065 = vld [vmem:[%s2060 + $0x20] sm:$0xff]
        %v2066 = vld [vmem:[%s2060 + $0x28] sm:$0xff]
        %v2067 = vld [vmem:[%s2060 + $0x30] sm:$0xff]
        %v2068 = vld [vmem:[%s2060 + $0x38] sm:$0xff]
        %v2069 = vld [vmem:[%s2060 + $0x40] sm:$0xff]
        %v2070 = vld [vmem:[%s2060 + $0x48] sm:$0xff]
        %v2071 = vld [vmem:[%s2060 + $0x50] sm:$0xff]
        %v2072 = vld [vmem:[%s2060 + $0x58] sm:$0xff]
        %v2073 = vld [vmem:[%s2060 + $0x60] sm:$0xff]
        %v2074 = vld [vmem:[%s2060 + $0x68] sm:$0xff]
        %v2075 = vld [vmem:[%s2060 + $0x70] sm:$0xff]
        %v2076 = vld [vmem:[%s2060 + $0x78] sm:$0xff]
        %v2077 = vrot.slane %v891, 5
        %2079 = vmatprep.subr.mxu0 0.0
        %2080 = vmatpush1.msra.mxu0 %v2061
        %2081 = vmatprep.subr.mxu0 0.0
        %2082 = vmatpush1.msra.mxu0 %v2062
        %2083 = vmatprep.subr.mxu0 0.0
        %2084 = vmatpush1.msra.mxu0 %v2063
        %2085 = vmatprep.subr.mxu0 0.0
        %2086 = vmatpush1.msra.mxu0 %v2064
        %2087 = vmatprep.subr.mxu0 0.0
        %2088 = vmatpush1.msra.mxu0 %v2065
        %2089 = vmatprep.subr.mxu0 0.0
        %2090 = vmatpush1.msra.mxu0 %v2066
        %2091 = vmatprep.subr.mxu0 0.0
        %2092 = vmatpush1.msra.mxu0 %v2067
        %2093 = vmatprep.subr.mxu0 0.0
        %2094 = vmatpush1.msra.mxu0 %v2068
        %2095 = vmatprep.subr.mxu0 0.0
        %2096 = vmatpush1.msra.mxu0 %v2069
        %2097 = vmatprep.subr.mxu0 0.0
        %2098 = vmatpush1.msra.mxu0 %v2070
        %2099 = vmatprep.subr.mxu0 0.0
        %2100 = vmatpush1.msra.mxu0 %v2071
        %2101 = vmatprep.subr.mxu0 0.0
        %2102 = vmatpush1.msra.mxu0 %v2072
        %2103 = vmatprep.subr.mxu0 0.0
        %2104 = vmatpush1.msra.mxu0 %v2073
        %2105 = vmatprep.subr.mxu0 0.0
        %2106 = vmatpush1.msra.mxu0 %v2074
        %2107 = vmatprep.subr.mxu0 0.0
        %2108 = vmatpush1.msra.mxu0 %v2075
        %2109 = vmatprep.subr.mxu0 0.0
        %2110 = vmatpush1.msra.mxu0 %v2076
        %2111 = vmatprep.subr.mxu0 0.0
        %2112 = vmatpush1.msra.mxu0 0.0
        %2113 = vmatprep.subr.mxu0 0.0
        %2114 = vmatpush1.msra.mxu0 0.0
        %2115 = vmatprep.subr.mxu0 0.0
        %2116 = vmatpush1.msra.mxu0 0.0
        %2117 = vmatprep.subr.mxu0 0.0
        %2118 = vmatpush1.msra.mxu0 0.0
        %2119 = vmatprep.subr.mxu0 0.0
        %2120 = vmatpush1.msra.mxu0 0.0
        %2121 = vmatprep.subr.mxu0 0.0
        %2122 = vmatpush1.msra.mxu0 0.0
        %2123 = vmatprep.subr.mxu0 0.0
        %2124 = vmatpush1.msra.mxu0 0.0
        %2125 = vmatprep.subr.mxu0 0.0
        %2126 = vmatpush1.msra.mxu0 0.0
        %2127 = vmatprep.subr.mxu0 0.0
        %2128 = vmatpush1.msra.mxu0 0.0
        %2129 = vmatprep.subr.mxu0 0.0
        %2130 = vmatpush1.msra.mxu0 0.0
        %2131 = vmatprep.subr.mxu0 0.0
        %2132 = vmatpush1.msra.mxu0 0.0
        %2133 = vmatprep.subr.mxu0 0.0
        %2134 = vmatpush1.msra.mxu0 0.0
        %2135 = vmatprep.subr.mxu0 0.0
        %2136 = vmatpush1.msra.mxu0 0.0
        %2137 = vmatprep.subr.mxu0 0.0
        %2138 = vmatpush1.msra.mxu0 0.0
        %2139 = vmatprep.subr.mxu0 0.0
        %2140 = vmatpush1.msra.mxu0 0.0
        %2141 = vmatprep.subr.mxu0 0.0
        %2142 = vmatpush1.msra.mxu0 0.0
        %2143 = vmatprep.mubr.f32.mxu0 0.0
        %2144 = vmatmul.mubr.f32.gmra.mrb[0].mxu0 %v2077
        %v2145 = vpop.f32.mrb[0].mxu0
        %v2146 = vadd.f32 0.0, %v2145
        %v2147 = vpop.f32.mrb[0].mxu0
        %2148 = vdwg.mxu0
        %v2149 = vadd.f32 %v2059, %v2146
        %s2150 = scalar_lea.vmem [#allocation13], 1792
        %v2151 = vld [vmem:[%s2150] sm:$0xff]
        %v2152 = vld [vmem:[%s2150 + $0x8] sm:$0xff]
        %v2153 = vld [vmem:[%s2150 + $0x10] sm:$0xff]
        %v2154 = vld [vmem:[%s2150 + $0x18] sm:$0xff]
        %v2155 = vld [vmem:[%s2150 + $0x20] sm:$0xff]
        %v2156 = vld [vmem:[%s2150 + $0x28] sm:$0xff]
        %v2157 = vld [vmem:[%s2150 + $0x30] sm:$0xff]
        %v2158 = vld [vmem:[%s2150 + $0x38] sm:$0xff]
        %v2159 = vld [vmem:[%s2150 + $0x40] sm:$0xff]
        %v2160 = vld [vmem:[%s2150 + $0x48] sm:$0xff]
        %v2161 = vld [vmem:[%s2150 + $0x50] sm:$0xff]
        %v2162 = vld [vmem:[%s2150 + $0x58] sm:$0xff]
        %v2163 = vld [vmem:[%s2150 + $0x60] sm:$0xff]
        %v2164 = vld [vmem:[%s2150 + $0x68] sm:$0xff]
        %v2165 = vld [vmem:[%s2150 + $0x70] sm:$0xff]
        %v2166 = vld [vmem:[%s2150 + $0x78] sm:$0xff]
        %v2167 = vrot.slane %v891, 6
        %2169 = vmatprep.subr.mxu0 0.0
        %2170 = vmatpush1.msra.mxu0 %v2151
        %2171 = vmatprep.subr.mxu0 0.0
        %2172 = vmatpush1.msra.mxu0 %v2152
        %2173 = vmatprep.subr.mxu0 0.0
        %2174 = vmatpush1.msra.mxu0 %v2153
        %2175 = vmatprep.subr.mxu0 0.0
        %2176 = vmatpush1.msra.mxu0 %v2154
        %2177 = vmatprep.subr.mxu0 0.0
        %2178 = vmatpush1.msra.mxu0 %v2155
        %2179 = vmatprep.subr.mxu0 0.0
        %2180 = vmatpush1.msra.mxu0 %v2156
        %2181 = vmatprep.subr.mxu0 0.0
        %2182 = vmatpush1.msra.mxu0 %v2157
        %2183 = vmatprep.subr.mxu0 0.0
        %2184 = vmatpush1.msra.mxu0 %v2158
        %2185 = vmatprep.subr.mxu0 0.0
        %2186 = vmatpush1.msra.mxu0 %v2159
        %2187 = vmatprep.subr.mxu0 0.0
        %2188 = vmatpush1.msra.mxu0 %v2160
        %2189 = vmatprep.subr.mxu0 0.0
        %2190 = vmatpush1.msra.mxu0 %v2161
        %2191 = vmatprep.subr.mxu0 0.0
        %2192 = vmatpush1.msra.mxu0 %v2162
        %2193 = vmatprep.subr.mxu0 0.0
        %2194 = vmatpush1.msra.mxu0 %v2163
        %2195 = vmatprep.subr.mxu0 0.0
        %2196 = vmatpush1.msra.mxu0 %v2164
        %2197 = vmatprep.subr.mxu0 0.0
        %2198 = vmatpush1.msra.mxu0 %v2165
        %2199 = vmatprep.subr.mxu0 0.0
        %2200 = vmatpush1.msra.mxu0 %v2166
        %2201 = vmatprep.subr.mxu0 0.0
        %2202 = vmatpush1.msra.mxu0 0.0
        %2203 = vmatprep.subr.mxu0 0.0
        %2204 = vmatpush1.msra.mxu0 0.0
        %2205 = vmatprep.subr.mxu0 0.0
        %2206 = vmatpush1.msra.mxu0 0.0
        %2207 = vmatprep.subr.mxu0 0.0
        %2208 = vmatpush1.msra.mxu0 0.0
        %2209 = vmatprep.subr.mxu0 0.0
        %2210 = vmatpush1.msra.mxu0 0.0
        %2211 = vmatprep.subr.mxu0 0.0
        %2212 = vmatpush1.msra.mxu0 0.0
        %2213 = vmatprep.subr.mxu0 0.0
        %2214 = vmatpush1.msra.mxu0 0.0
        %2215 = vmatprep.subr.mxu0 0.0
        %2216 = vmatpush1.msra.mxu0 0.0
        %2217 = vmatprep.subr.mxu0 0.0
        %2218 = vmatpush1.msra.mxu0 0.0
        %2219 = vmatprep.subr.mxu0 0.0
        %2220 = vmatpush1.msra.mxu0 0.0
        %2221 = vmatprep.subr.mxu0 0.0
        %2222 = vmatpush1.msra.mxu0 0.0
        %2223 = vmatprep.subr.mxu0 0.0
        %2224 = vmatpush1.msra.mxu0 0.0
        %2225 = vmatprep.subr.mxu0 0.0
        %2226 = vmatpush1.msra.mxu0 0.0
        %2227 = vmatprep.subr.mxu0 0.0
        %2228 = vmatpush1.msra.mxu0 0.0
        %2229 = vmatprep.subr.mxu0 0.0
        %2230 = vmatpush1.msra.mxu0 0.0
        %2231 = vmatprep.subr.mxu0 0.0
        %2232 = vmatpush1.msra.mxu0 0.0
        %2233 = vmatprep.mubr.f32.mxu0 0.0
        %2234 = vmatmul.mubr.f32.gmra.mrb[0].mxu0 %v2167
        %v2235 = vpop.f32.mrb[0].mxu0
        %v2236 = vadd.f32 0.0, %v2235
        %v2237 = vpop.f32.mrb[0].mxu0
        %2238 = vdwg.mxu0
        %v2239 = vadd.f32 %v2149, %v2236
        %s2240 = scalar_lea.vmem [#allocation13], 1920
        %v2241 = vld [vmem:[%s2240] sm:$0xff]
        %v2242 = vld [vmem:[%s2240 + $0x8] sm:$0xff]
        %v2243 = vld [vmem:[%s2240 + $0x10] sm:$0xff]
        %v2244 = vld [vmem:[%s2240 + $0x18] sm:$0xff]
        %v2245 = vld [vmem:[%s2240 + $0x20] sm:$0xff]
        %v2246 = vld [vmem:[%s2240 + $0x28] sm:$0xff]
        %v2247 = vld [vmem:[%s2240 + $0x30] sm:$0xff]
        %v2248 = vld [vmem:[%s2240 + $0x38] sm:$0xff]
        %v2249 = vld [vmem:[%s2240 + $0x40] sm:$0xff]
        %v2250 = vld [vmem:[%s2240 + $0x48] sm:$0xff]
        %v2251 = vld [vmem:[%s2240 + $0x50] sm:$0xff]
        %v2252 = vld [vmem:[%s2240 + $0x58] sm:$0xff]
        %v2253 = vld [vmem:[%s2240 + $0x60] sm:$0xff]
        %v2254 = vld [vmem:[%s2240 + $0x68] sm:$0xff]
        %v2255 = vld [vmem:[%s2240 + $0x70] sm:$0xff]
        %v2256 = vld [vmem:[%s2240 + $0x78] sm:$0xff]
        %v2257 = vrot.slane %v891, 7
        %2259 = vmatprep.subr.mxu0 0.0
        %2260 = vmatpush1.msra.mxu0 %v2241
        %2261 = vmatprep.subr.mxu0 0.0
        %2262 = vmatpush1.msra.mxu0 %v2242
        %2263 = vmatprep.subr.mxu0 0.0
        %2264 = vmatpush1.msra.mxu0 %v2243
        %2265 = vmatprep.subr.mxu0 0.0
        %2266 = vmatpush1.msra.mxu0 %v2244
        %2267 = vmatprep.subr.mxu0 0.0
        %2268 = vmatpush1.msra.mxu0 %v2245
        %2269 = vmatprep.subr.mxu0 0.0
        %2270 = vmatpush1.msra.mxu0 %v2246
        %2271 = vmatprep.subr.mxu0 0.0
        %2272 = vmatpush1.msra.mxu0 %v2247
        %2273 = vmatprep.subr.mxu0 0.0
        %2274 = vmatpush1.msra.mxu0 %v2248
        %2275 = vmatprep.subr.mxu0 0.0
        %2276 = vmatpush1.msra.mxu0 %v2249
        %2277 = vmatprep.subr.mxu0 0.0
        %2278 = vmatpush1.msra.mxu0 %v2250
        %2279 = vmatprep.subr.mxu0 0.0
        %2280 = vmatpush1.msra.mxu0 %v2251
        %2281 = vmatprep.subr.mxu0 0.0
        %2282 = vmatpush1.msra.mxu0 %v2252
        %2283 = vmatprep.subr.mxu0 0.0
        %2284 = vmatpush1.msra.mxu0 %v2253
        %2285 = vmatprep.subr.mxu0 0.0
        %2286 = vmatpush1.msra.mxu0 %v2254
        %2287 = vmatprep.subr.mxu0 0.0
        %2288 = vmatpush1.msra.mxu0 %v2255
        %2289 = vmatprep.subr.mxu0 0.0
        %2290 = vmatpush1.msra.mxu0 %v2256
        %2291 = vmatprep.subr.mxu0 0.0
        %2292 = vmatpush1.msra.mxu0 0.0
        %2293 = vmatprep.subr.mxu0 0.0
        %2294 = vmatpush1.msra.mxu0 0.0
        %2295 = vmatprep.subr.mxu0 0.0
        %2296 = vmatpush1.msra.mxu0 0.0
        %2297 = vmatprep.subr.mxu0 0.0
        %2298 = vmatpush1.msra.mxu0 0.0
        %2299 = vmatprep.subr.mxu0 0.0
        %2300 = vmatpush1.msra.mxu0 0.0
        %2301 = vmatprep.subr.mxu0 0.0
        %2302 = vmatpush1.msra.mxu0 0.0
        %2303 = vmatprep.subr.mxu0 0.0
        %2304 = vmatpush1.msra.mxu0 0.0
        %2305 = vmatprep.subr.mxu0 0.0
        %2306 = vmatpush1.msra.mxu0 0.0
        %2307 = vmatprep.subr.mxu0 0.0
        %2308 = vmatpush1.msra.mxu0 0.0
        %2309 = vmatprep.subr.mxu0 0.0
        %2310 = vmatpush1.msra.mxu0 0.0
        %2311 = vmatprep.subr.mxu0 0.0
        %2312 = vmatpush1.msra.mxu0 0.0
        %2313 = vmatprep.subr.mxu0 0.0
        %2314 = vmatpush1.msra.mxu0 0.0
        %2315 = vmatprep.subr.mxu0 0.0
        %2316 = vmatpush1.msra.mxu0 0.0
        %2317 = vmatprep.subr.mxu0 0.0
        %2318 = vmatpush1.msra.mxu0 0.0
        %2319 = vmatprep.subr.mxu0 0.0
        %2320 = vmatpush1.msra.mxu0 0.0
        %2321 = vmatprep.subr.mxu0 0.0
        %2322 = vmatpush1.msra.mxu0 0.0
        %2323 = vmatprep.mubr.f32.mxu0 0.0
        %2324 = vmatmul.mubr.f32.gmra.mrb[0].mxu0 %v2257
        %v2325 = vpop.f32.mrb[0].mxu0
        %v2326 = vadd.f32 0.0, %v2325
        %v2327 = vpop.f32.mrb[0].mxu0
        %2328 = vdwg.mxu0
        %v2329 = vadd.f32 %v2239, %v2326
        %v2331 = vlaneseq
        %v2332 = vshrl.u32 %v2331, 7
        %v2333 = vsub.s32 0, %v2332
        %v2334 = vrot.slane %v2329, %v2333
        %2336 = vst [vmem:[%s363] sm:$0xff] %v2334
        %s2337 = sand.u32 %s188, 1
        %s2338 = scalar_lea.sflag [#allocation5], %s2337
        %s2339 = sand.u32 %s188, 1
        %s2340 = smul.addr %s2339, 8
        %s2341 = scalar_lea.vmem [#allocation15], %s2340
        // Predicated region
        $region73: #{tpu_custom_call.1} parent=47 // pred_check
          %p2342 = pneg %p198
        $region74: #{tpu_custom_call.1} parent=47 // pred_check_branch
          %2344 = sbr.rel (%p2342) target = $region76
        $region75: #{tpu_custom_call.1} parent=47 // pred_region
          %s2346 = ssub.s32 128, 128
          %2347 = vsyncadd %s2338, %s2346
          %s2348 = smul.addr %s28, 128
          %s2349 = scalar_lea.hbm %s7, %s2348
          %s2351 = sshll.u32 %s2341, 4
          %s2352 = int_to_ptr.vmem [resolvable:$true] %s2351
          %2354 = dma.vmem_to_hbm [thread:$0]  %s2352, 128, %s2349, %s2338
        $region76: #{tpu_custom_call.1} parent=47 // pred_fallthru
          _
      $region48: #{tpu_custom_call.1} parent=5 // pred_fallthru
        _
      %p2355 = scmp.le.s32.totalorder 2, %s23
      // Predicated region
      $region77: #{tpu_custom_call.1} parent=5 // pred_check
        %p2356 = pneg %p2355
      $region78: #{tpu_custom_call.1} parent=5 // pred_check_branch
        %2358 = sbr.rel (%p2356) target = $region80
      $region79: #{tpu_custom_call.1} parent=5 // pred_region
        %s2359 = ssub.s32 %s23, 2
        // Predicated region
        $region81: #{tpu_custom_call.1} parent=79 // pred_check
          %p2360 = pneg %p204
        $region82: #{tpu_custom_call.1} parent=79 // pred_check_branch
          %2362 = sbr.rel (%p2360) target = $region84
        $region83: #{tpu_custom_call.1} parent=79 // pred_region
          %s2363 = sand.u32 %s189, 1
          %s2364 = scalar_lea.sflag [#allocation5], %s2363
          %s2365 = sand.u32 %s189, 1
          %s2366 = smul.addr %s2365, 8
          %s2367 = scalar_lea.vmem [#allocation15], %s2366
          %2368 = dma.done %s2364, 128
        $region84: #{tpu_custom_call.1} parent=79 // pred_fallthru
          _
      $region80: #{tpu_custom_call.1} parent=5 // pred_fallthru
        _
    $region6: #{tpu_custom_call.1} parent=1 // loop_footer
      %s27 = sadd.s32 1, %s23
    $region7: #{tpu_custom_call.1} parent=1 // loop_footer_branch
      %22 = sbr.rel target = $region3
    $region8: #{tpu_custom_call.1} parent=1 // loop_exit
      _
    %2369 = vsyncpa [#allocation4], 1
    %s2370 = scalar_lea.sflag [#allocation4], 1
    %2371 = vsyncpa %s2370, 1
    %2372 = vsyncpa [#allocation14], 1
    %2373 = vsyncpa [#allocation5], 1
    %s2374 = scalar_lea.sflag [#allocation5], 1
    %2375 = vsyncpa %s2374, 1
    %2376 = vsyncpa [#allocation6], 1
    %s2377 = scalar_lea.sflag [#allocation6], 1
    %2378 = vsyncpa %s2377, 1
    %2379 = vsyncpa [#allocation9], 1
    %2380 = vsyncpa [#allocation12], 1

</llo_original>
